<compile_context>
chip_gen: v6e
topology: v6e:2x2x1
jax: 0.10.0
libtpu: 0.0.40
codegen_flags: <defaults>
</compile_context>

<pallas_src>
import functools

import jax
import jax.numpy as jnp
from jax.experimental import pallas as pl
from jax.experimental.pallas import tpu as pltpu


# ----------------------------- kernel ---------------------------------------

def _layernorm(x, gamma, beta, eps=1e-5):
    # x: (..., D) f32; gamma/beta: (D,) — matches torch.nn.LayerNorm(dim)
    mean = jnp.mean(x, axis=-1, keepdims=True)
    var = jnp.mean((x - mean) ** 2, axis=-1, keepdims=True)
    return (x - mean) * jax.lax.rsqrt(var + eps) * gamma + beta


def transformer_kernel(x_ref, vec_ref, b1_ref, wqkv_ref, wout_ref, w1_ref, w2_ref,
                       o_ref, *, heads, dim_head, depth):
    TB, N, D = x_ref.shape
    inner = heads * dim_head
    scale = dim_head ** (-0.5)
    R = TB * N

    # Resident activation: one (R, D) f32 slab for the whole depth loop.
    x = x_ref[...].astype(jnp.float32).reshape(R, D)

    for l in range(depth):                                    # static unroll
        vl = vec_ref[l]                                       # (6, D) f32
        ln1_g, ln1_b, b_out = vl[0], vl[1], vl[2]
        ln2_g, ln2_b, b2 = vl[3], vl[4], vl[5]

        # ---------------- PreNorm(Attention) + residual ----------------
        xn = _layernorm(x, ln1_g, ln1_b)                      # (R, D) f32
        qkv = jnp.dot(xn.astype(jnp.bfloat16), wqkv_ref[l],
                      preferred_element_type=jnp.float32)     # (R, 3*inner)
        qkv = qkv.reshape(TB, N, 3 * inner)                   # batched view for attn

        head_outs = []
        for h in range(heads):                                # small static unroll
            q_sl = slice(h * dim_head, (h + 1) * dim_head)
            k_sl = slice(inner + h * dim_head, inner + (h + 1) * dim_head)
            v_sl = slice(2 * inner + h * dim_head, 2 * inner + (h + 1) * dim_head)
            qh = qkv[:, :, q_sl].astype(jnp.bfloat16)         # (TB, N, dh)
            kh = qkv[:, :, k_sl].astype(jnp.bfloat16)
            vh = qkv[:, :, v_sl].astype(jnp.bfloat16)
            # single-batch-dim einsums batched over the TB slabs in the block
            dots = jnp.einsum('bnd,bmd->bnm', qh, kh,
                              preferred_element_type=jnp.float32) * scale
            dots = dots - jnp.max(dots, axis=-1, keepdims=True)   # stable softmax
            p = jnp.exp(dots)
            p = p * pl.reciprocal(jnp.sum(p, axis=-1, keepdims=True), approx=True)
            head_outs.append(
                jnp.einsum('bnm,bmd->bnd', p.astype(jnp.bfloat16), vh,
                           preferred_element_type=jnp.float32))   # (TB, N, dh)

        # 'b p h n d -> b p n (h d)': lane-concat of head outputs, then ONE
        # output projection with K = inner (single MXU pass).
        attn = jnp.concatenate(head_outs, axis=-1).reshape(R, inner)
        y = jnp.dot(attn.astype(jnp.bfloat16), wout_ref[l],
                    preferred_element_type=jnp.float32) + b_out   # (R, D)
        x = x + y                                             # residual

        # ---------------- PreNorm(FeedForward) + residual ----------------
        xn = _layernorm(x, ln2_g, ln2_b)
        h1 = jnp.dot(xn.astype(jnp.bfloat16), w1_ref[l],
                     preferred_element_type=jnp.float32) + b1_ref[l]
        h1 = h1 * jax.nn.sigmoid(h1)                          # SiLU, f32 on VPU/EUP
        y = jnp.dot(h1.astype(jnp.bfloat16), w2_ref[l],
                    preferred_element_type=jnp.float32) + b2
        x = x + y                                             # residual
        # TODO(synk): dropout layers are identity in eval mode, so they are omitted.

    o_ref[...] = x.reshape(TB, N, D).astype(o_ref.dtype)      # single whole-block store


# ----------------------------- wrapper ---------------------------------------

def _choose_tb(bp, n, target_rows=512):
    """Largest divisor of bp with tb*n <= target_rows, preferring an EVEN grid."""
    divisors = [t for t in range(1, bp + 1) if bp % t == 0]
    fits = [t for t in divisors if t * n <= target_rows] or [1]
    even_grid = [t for t in fits if (bp // t) % 2 == 0]
    return max(even_grid) if even_grid else max(fits)


def _padded_bytes(a):
    """Approximate VMEM footprint with (8, 128) tiling of the last two dims."""
    shape = (1, 1) + tuple(a.shape)
    lead = 1
    for d in shape[:-2]:
        lead *= d
    r = -(-shape[-2] // 8) * 8
    c = -(-shape[-1] // 128) * 128
    return lead * r * c * a.dtype.itemsize


def transformer_forward(x, params, heads, dim_head):
    B, P, N, D = x.shape
    BP = B * P
    xf = x.reshape(BP, N, D)

    TB = _choose_tb(BP, N)
    grid = (BP // TB,)
    depth = params["w_qkv"].shape[0]

    # Per-layer 1-D params stacked into one (depth, 6, D) f32 array.
    vec = jnp.stack([params["ln1_g"], params["ln1_b"], params["b_out"],
                     params["ln2_g"], params["ln2_b"], params["b2"]], axis=1)
    b1 = params["b1"]                                          # (depth, mlp_dim) f32
    # bf16 weights for the MXU (halves DMA bytes); f32 accumulation in-kernel.
    wqkv = params["w_qkv"].astype(jnp.bfloat16)
    wout = params["w_out"].astype(jnp.bfloat16)
    w1 = params["w1"].astype(jnp.bfloat16)
    w2 = params["w2"].astype(jnp.bfloat16)
    args = (vec, b1, wqkv, wout, w1, w2)

    # VMEM budget: weights (x2 default buffers) + double-buffered in/out tiles.
    io_tile = TB * (-(-N // 8) * 8) * (-(-D // 128) * 128) * x.dtype.itemsize
    vmem_est = 2 * sum(_padded_bytes(a) for a in args) + 4 * io_tile
    vmem_limit = 32 * 1024 * 1024          # within scoped/physical limits on v5e/v6e/v7x
    assert vmem_est < vmem_limit, (vmem_est, vmem_limit)

    def full_spec(a):
        return pl.BlockSpec(a.shape, lambda i, _n=a.ndim: (0,) * _n)

    kern = functools.partial(transformer_kernel,
                             heads=heads, dim_head=dim_head, depth=depth)
    out = pl.pallas_call(
        kern,
        out_shape=jax.ShapeDtypeStruct((BP, N, D), x.dtype),
        grid=grid,
        in_specs=[pl.BlockSpec((TB, N, D), lambda i: (i, 0, 0))]
                 + [full_spec(a) for a in args],
        out_specs=pl.BlockSpec((TB, N, D), lambda i: (i, 0, 0)),
        compiler_params=pltpu.CompilerParams(
            dimension_semantics=("parallel",),
            vmem_limit_bytes=vmem_limit),
    )(xf, *args)
    return out.reshape(B, P, N, D)


# ----------------------------- parameter init --------------------------------

def init_params(key, dim, depth, heads, dim_head, mlp_dim):
    inner = heads * dim_head
    key, k1, k2, k3, k4 = jax.random.split(key, 5)
    return {
        "ln1_g": jnp.ones((depth, dim), jnp.float32),
        "ln1_b": jnp.zeros((depth, dim), jnp.float32),
        "w_qkv": 0.02 * jax.random.normal(k1, (depth, dim, 3 * inner), jnp.float32),
        "w_out": 0.02 * jax.random.normal(k2, (depth, inner, dim), jnp.float32),
        "b_out": jnp.zeros((depth, dim), jnp.float32),
        "ln2_g": jnp.ones((depth, dim), jnp.float32),
        "ln2_b": jnp.zeros((depth, dim), jnp.float32),
        "w1": 0.02 * jax.random.normal(k3, (depth, dim, mlp_dim), jnp.float32),
        "b1": jnp.zeros((depth, mlp_dim), jnp.float32),
        "w2": 0.02 * jax.random.normal(k4, (depth, mlp_dim, dim), jnp.float32),
        "b2": jnp.zeros((depth, dim), jnp.float32),
    }


# ----------------------------- pure-JAX reference -----------------------------

def transformer_reference(x, params, heads, dim_head):
    B, P, N, D = x.shape
    depth = params["w_qkv"].shape[0]
    inner = heads * dim_head
    scale = dim_head ** (-0.5)

    def ln(t, g, b, eps=1e-5):
        m = t.mean(-1, keepdims=True)
        v = ((t - m) ** 2).mean(-1, keepdims=True)
        return (t - m) / jnp.sqrt(v + eps) * g + b

    out = x
    for l in range(depth):
        xn = ln(out, params["ln1_g"][l], params["ln1_b"][l])
        qkv = xn @ params["w_qkv"][l]
        q, k, v = jnp.split(qkv, 3, axis=-1)
        def split_heads(t):
            return t.reshape(B, P, N, heads, dim_head).transpose(0, 1, 3, 2, 4)
        q, k, v = map(split_heads, (q, k, v))
        dots = jnp.einsum('bphnd,bphmd->bphnm', q, k) * scale
        attn = jax.nn.softmax(dots, axis=-1)
        o = jnp.einsum('bphnm,bphmd->bphnd', attn, v)
        o = o.transpose(0, 1, 3, 2, 4).reshape(B, P, N, inner)
        out = out + (o @ params["w_out"][l] + params["b_out"][l])
        xn = ln(out, params["ln2_g"][l], params["ln2_b"][l])
        h1 = xn @ params["w1"][l] + params["b1"][l]
        h1 = h1 * jax.nn.sigmoid(h1)
        out = out + (h1 @ params["w2"][l] + params["b2"][l])
    return out


# ----------------------------- main -------------------------------------------

if __name__ == "__main__":
    # Small shapes consistent with the module's 'b p n d' input convention.
    B, P, N = 2, 4, 8
    dim, depth, heads, dim_head, mlp_dim = 32, 2, 2, 8, 64

    key = jax.random.PRNGKey(0)
    kx, kp = jax.random.split(key)
    x = jax.random.normal(kx, (B, P, N, dim), jnp.float32)
    params = init_params(kp, dim, depth, heads, dim_head, mlp_dim)

    out = transformer_forward(x, params, heads, dim_head)
    jax.block_until_ready(out)
    assert out.shape == (B, P, N, dim)

    # Loose tolerance: bf16 MXU operands + approx softmax reciprocal.
    ref = transformer_reference(x, params, heads, dim_head)
    assert jnp.allclose(out, ref, atol=2e-2, rtol=2e-2), \
        float(jnp.max(jnp.abs(out - ref)))
    print("KERNEL_OK")
</pallas_src>

<mosaic_0001>
module attributes {stable_mosaic.version = 11 : i64} {
  func.func @transformer_kernel(%arg0: i32, %arg1: memref<4x8x32xf32, #tpu.memory_space<vmem>>, %arg2: memref<2x6x32xf32, #tpu.memory_space<vmem>>, %arg3: memref<2x64xf32, #tpu.memory_space<vmem>>, %arg4: memref<2x32x48xbf16, #tpu.memory_space<vmem>>, %arg5: memref<2x16x32xbf16, #tpu.memory_space<vmem>>, %arg6: memref<2x32x64xbf16, #tpu.memory_space<vmem>>, %arg7: memref<2x64x32xbf16, #tpu.memory_space<vmem>>, %arg8: memref<4x8x32xf32, #tpu.memory_space<vmem>>) attributes {dimension_semantics = [#tpu.dimension_semantics<parallel>], iteration_bounds = array<i64: 2>, scalar_prefetch = 0 : i64, scratch_operands = 0 : i64, tpu.core_type = #tpu.core_type<tc>, window_params = [{transform_indices = @transform_0, window_bounds = array<i64: 4, 8, 32>}, {pipeline_mode = #tpu.pipeline_mode<synchronous>, transform_indices = @transform_1, window_bounds = array<i64: 2, 6, 32>}, {pipeline_mode = #tpu.pipeline_mode<synchronous>, transform_indices = @transform_2, window_bounds = array<i64: 2, 64>}, {pipeline_mode = #tpu.pipeline_mode<synchronous>, transform_indices = @transform_3, window_bounds = array<i64: 2, 32, 48>}, {pipeline_mode = #tpu.pipeline_mode<synchronous>, transform_indices = @transform_4, window_bounds = array<i64: 2, 16, 32>}, {pipeline_mode = #tpu.pipeline_mode<synchronous>, transform_indices = @transform_5, window_bounds = array<i64: 2, 32, 64>}, {pipeline_mode = #tpu.pipeline_mode<synchronous>, transform_indices = @transform_6, window_bounds = array<i64: 2, 64, 32>}, {transform_indices = @transform_7, window_bounds = array<i64: 4, 8, 32>}]} {
    %c0 = arith.constant 0 : index
    %c0_0 = arith.constant 0 : index
    %c0_1 = arith.constant 0 : index
    %0 = vector.load %arg1[%c0, %c0_0, %c0_1] : memref<4x8x32xf32, #tpu.memory_space<vmem>>, vector<4x8x32xf32>
    %1 = vector.shape_cast %0 : vector<4x8x32xf32> to vector<32x32xf32>
    %c0_2 = arith.constant 0 : index
    %c0_3 = arith.constant 0 : index
    %c0_4 = arith.constant 0 : index
    %2 = vector.load %arg2[%c0_2, %c0_3, %c0_4] : memref<2x6x32xf32, #tpu.memory_space<vmem>>, vector<1x6x32xf32>
    %3 = vector.shape_cast %2 : vector<1x6x32xf32> to vector<6x32xf32>
    %4 = vector.extract_strided_slice %3 {offsets = [0, 0], sizes = [1, 32], strides = [1, 1]} : vector<6x32xf32> to vector<1x32xf32>
    %5 = vector.shape_cast %4 : vector<1x32xf32> to vector<32xf32>
    %6 = vector.extract_strided_slice %3 {offsets = [1, 0], sizes = [1, 32], strides = [1, 1]} : vector<6x32xf32> to vector<1x32xf32>
    %7 = vector.shape_cast %6 : vector<1x32xf32> to vector<32xf32>
    %8 = vector.extract_strided_slice %3 {offsets = [2, 0], sizes = [1, 32], strides = [1, 1]} : vector<6x32xf32> to vector<1x32xf32>
    %9 = vector.shape_cast %8 : vector<1x32xf32> to vector<32xf32>
    %10 = vector.extract_strided_slice %3 {offsets = [3, 0], sizes = [1, 32], strides = [1, 1]} : vector<6x32xf32> to vector<1x32xf32>
    %11 = vector.shape_cast %10 : vector<1x32xf32> to vector<32xf32>
    %12 = vector.extract_strided_slice %3 {offsets = [4, 0], sizes = [1, 32], strides = [1, 1]} : vector<6x32xf32> to vector<1x32xf32>
    %13 = vector.shape_cast %12 : vector<1x32xf32> to vector<32xf32>
    %14 = vector.extract_strided_slice %3 {offsets = [5, 0], sizes = [1, 32], strides = [1, 1]} : vector<6x32xf32> to vector<1x32xf32>
    %15 = vector.shape_cast %14 : vector<1x32xf32> to vector<32xf32>
    %cst = arith.constant dense<0.000000e+00> : vector<32xf32>
    %16 = vector.multi_reduction <add>, %1, %cst [1] : vector<32x32xf32> to vector<32xf32>
    %17 = vector.shape_cast %16 : vector<32xf32> to vector<32x1xf32>
    %cst_5 = arith.constant 3.200000e+01 : f32
    %18 = vector.broadcast %cst_5 : f32 to vector<32x1xf32>
    %19 = arith.divf %17, %18 : vector<32x1xf32>
    %20 = vector.broadcast %19 : vector<32x1xf32> to vector<32x32xf32>
    %21 = arith.subf %1, %20 : vector<32x32xf32>
    %22 = arith.mulf %21, %21 : vector<32x32xf32>
    %cst_6 = arith.constant dense<0.000000e+00> : vector<32xf32>
    %23 = vector.multi_reduction <add>, %22, %cst_6 [1] : vector<32x32xf32> to vector<32xf32>
    %24 = vector.shape_cast %23 : vector<32xf32> to vector<32x1xf32>
    %cst_7 = arith.constant 3.200000e+01 : f32
    %25 = vector.broadcast %cst_7 : f32 to vector<32x1xf32>
    %26 = arith.divf %24, %25 : vector<32x1xf32>
    %27 = vector.broadcast %19 : vector<32x1xf32> to vector<32x32xf32>
    %28 = arith.subf %1, %27 : vector<32x32xf32>
    %cst_8 = arith.constant 9.99999974E-6 : f32
    %29 = vector.broadcast %cst_8 : f32 to vector<32x1xf32>
    %30 = arith.addf %26, %29 : vector<32x1xf32>
    %31 = math.rsqrt %30 : vector<32x1xf32>
    %32 = vector.broadcast %31 : vector<32x1xf32> to vector<32x32xf32>
    %33 = arith.mulf %28, %32 : vector<32x32xf32>
    %34 = vector.shape_cast %5 : vector<32xf32> to vector<1x32xf32>
    %35 = vector.broadcast %34 : vector<1x32xf32> to vector<32x32xf32>
    %36 = arith.mulf %33, %35 : vector<32x32xf32>
    %37 = vector.shape_cast %7 : vector<32xf32> to vector<1x32xf32>
    %38 = vector.broadcast %37 : vector<1x32xf32> to vector<32x32xf32>
    %39 = arith.addf %36, %38 : vector<32x32xf32>
    %40 = arith.truncf %39 : vector<32x32xf32> to vector<32x32xbf16>
    %c0_9 = arith.constant 0 : index
    %c0_10 = arith.constant 0 : index
    %c0_11 = arith.constant 0 : index
    %41 = vector.load %arg4[%c0_9, %c0_10, %c0_11] : memref<2x32x48xbf16, #tpu.memory_space<vmem>>, vector<1x32x48xbf16>
    %42 = vector.shape_cast %41 : vector<1x32x48xbf16> to vector<32x48xbf16>
    %cst_12 = arith.constant dense<0.000000e+00> : vector<32x48xf32>
    %43 = tpu.matmul %40, %42, %cst_12 {dimension_numbers = #tpu.dot_dimension_numbers<[1], [0], [0], [1], [0, 0, 1, 1], [], []>} : vector<32x32xbf16>, vector<32x48xbf16>, vector<32x48xf32> -> vector<32x48xf32>
    %44 = vector.shape_cast %43 : vector<32x48xf32> to vector<4x8x48xf32>
    %45 = vector.extract_strided_slice %44 {offsets = [0, 0, 0], sizes = [4, 8, 8], strides = [1, 1, 1]} : vector<4x8x48xf32> to vector<4x8x8xf32>
    %46 = arith.truncf %45 : vector<4x8x8xf32> to vector<4x8x8xbf16>
    %47 = vector.extract_strided_slice %44 {offsets = [0, 0, 16], sizes = [4, 8, 8], strides = [1, 1, 1]} : vector<4x8x48xf32> to vector<4x8x8xf32>
    %48 = arith.truncf %47 : vector<4x8x8xf32> to vector<4x8x8xbf16>
    %49 = vector.extract_strided_slice %44 {offsets = [0, 0, 32], sizes = [4, 8, 8], strides = [1, 1, 1]} : vector<4x8x48xf32> to vector<4x8x8xf32>
    %50 = arith.truncf %49 : vector<4x8x8xf32> to vector<4x8x8xbf16>
    "tpu.trace_start"() <{level = 10 : i32, message = "bnd,bmd->bnm"}> : () -> ()
    %cst_13 = arith.constant dense<0.000000e+00> : vector<4x8x8xf32>
    %51 = tpu.matmul %46, %48, %cst_13 {dimension_numbers = #tpu.dot_dimension_numbers<[2], [2], [1], [1], [0, 0, 0, 1, 1, 1], [0], [0]>} : vector<4x8x8xbf16>, vector<4x8x8xbf16>, vector<4x8x8xf32> -> vector<4x8x8xf32>
    "tpu.trace_stop"() : () -> ()
    %cst_14 = arith.constant 0.353553385 : f32
    %52 = vector.broadcast %cst_14 : f32 to vector<4x8x8xf32>
    %53 = arith.mulf %51, %52 : vector<4x8x8xf32>
    %cst_15 = arith.constant dense<0xFF800000> : vector<4x8xf32>
    %54 = vector.multi_reduction <maximumf>, %53, %cst_15 [2] : vector<4x8x8xf32> to vector<4x8xf32>
    %55 = vector.shape_cast %54 : vector<4x8xf32> to vector<4x8x1xf32>
    %56 = vector.broadcast %55 : vector<4x8x1xf32> to vector<4x8x8xf32>
    %57 = arith.subf %53, %56 : vector<4x8x8xf32>
    %58 = math.exp %57 : vector<4x8x8xf32>
    %cst_16 = arith.constant dense<0.000000e+00> : vector<4x8xf32>
    %59 = vector.multi_reduction <add>, %58, %cst_16 [2] : vector<4x8x8xf32> to vector<4x8xf32>
    %60 = vector.shape_cast %59 : vector<4x8xf32> to vector<4x8x1xf32>
    %61 = tpu.reciprocal %60 {approx = true} : vector<4x8x1xf32> -> vector<4x8x1xf32>
    %62 = vector.broadcast %61 : vector<4x8x1xf32> to vector<4x8x8xf32>
    %63 = arith.mulf %58, %62 : vector<4x8x8xf32>
    %64 = arith.truncf %63 : vector<4x8x8xf32> to vector<4x8x8xbf16>
    "tpu.trace_start"() <{level = 10 : i32, message = "bnm,bmd->bnd"}> : () -> ()
    %cst_17 = arith.constant dense<0.000000e+00> : vector<4x8x8xf32>
    %65 = tpu.matmul %64, %50, %cst_17 {dimension_numbers = #tpu.dot_dimension_numbers<[2], [1], [1], [2], [0, 0, 0, 1, 1, 2], [0], [0]>} : vector<4x8x8xbf16>, vector<4x8x8xbf16>, vector<4x8x8xf32> -> vector<4x8x8xf32>
    "tpu.trace_stop"() : () -> ()
    %66 = vector.extract_strided_slice %44 {offsets = [0, 0, 8], sizes = [4, 8, 8], strides = [1, 1, 1]} : vector<4x8x48xf32> to vector<4x8x8xf32>
    %67 = arith.truncf %66 : vector<4x8x8xf32> to vector<4x8x8xbf16>
    %68 = vector.extract_strided_slice %44 {offsets = [0, 0, 24], sizes = [4, 8, 8], strides = [1, 1, 1]} : vector<4x8x48xf32> to vector<4x8x8xf32>
    %69 = arith.truncf %68 : vector<4x8x8xf32> to vector<4x8x8xbf16>
    %70 = vector.extract_strided_slice %44 {offsets = [0, 0, 40], sizes = [4, 8, 8], strides = [1, 1, 1]} : vector<4x8x48xf32> to vector<4x8x8xf32>
    %71 = arith.truncf %70 : vector<4x8x8xf32> to vector<4x8x8xbf16>
    "tpu.trace_start"() <{level = 10 : i32, message = "bnd,bmd->bnm"}> : () -> ()
    %cst_18 = arith.constant dense<0.000000e+00> : vector<4x8x8xf32>
    %72 = tpu.matmul %67, %69, %cst_18 {dimension_numbers = #tpu.dot_dimension_numbers<[2], [2], [1], [1], [0, 0, 0, 1, 1, 1], [0], [0]>} : vector<4x8x8xbf16>, vector<4x8x8xbf16>, vector<4x8x8xf32> -> vector<4x8x8xf32>
    "tpu.trace_stop"() : () -> ()
    %cst_19 = arith.constant 0.353553385 : f32
    %73 = vector.broadcast %cst_19 : f32 to vector<4x8x8xf32>
    %74 = arith.mulf %72, %73 : vector<4x8x8xf32>
    %cst_20 = arith.constant dense<0xFF800000> : vector<4x8xf32>
    %75 = vector.multi_reduction <maximumf>, %74, %cst_20 [2] : vector<4x8x8xf32> to vector<4x8xf32>
    %76 = vector.shape_cast %75 : vector<4x8xf32> to vector<4x8x1xf32>
    %77 = vector.broadcast %76 : vector<4x8x1xf32> to vector<4x8x8xf32>
    %78 = arith.subf %74, %77 : vector<4x8x8xf32>
    %79 = math.exp %78 : vector<4x8x8xf32>
    %cst_21 = arith.constant dense<0.000000e+00> : vector<4x8xf32>
    %80 = vector.multi_reduction <add>, %79, %cst_21 [2] : vector<4x8x8xf32> to vector<4x8xf32>
    %81 = vector.shape_cast %80 : vector<4x8xf32> to vector<4x8x1xf32>
    %82 = tpu.reciprocal %81 {approx = true} : vector<4x8x1xf32> -> vector<4x8x1xf32>
    %83 = vector.broadcast %82 : vector<4x8x1xf32> to vector<4x8x8xf32>
    %84 = arith.mulf %79, %83 : vector<4x8x8xf32>
    %85 = arith.truncf %84 : vector<4x8x8xf32> to vector<4x8x8xbf16>
    "tpu.trace_start"() <{level = 10 : i32, message = "bnm,bmd->bnd"}> : () -> ()
    %cst_22 = arith.constant dense<0.000000e+00> : vector<4x8x8xf32>
    %86 = tpu.matmul %85, %71, %cst_22 {dimension_numbers = #tpu.dot_dimension_numbers<[2], [1], [1], [2], [0, 0, 0, 1, 1, 2], [0], [0]>} : vector<4x8x8xbf16>, vector<4x8x8xbf16>, vector<4x8x8xf32> -> vector<4x8x8xf32>
    "tpu.trace_stop"() : () -> ()
    %87 = tpu.concatenate %65, %86 in 2 : vector<4x8x8xf32>, vector<4x8x8xf32> -> vector<4x8x16xf32>
    %88 = vector.shape_cast %87 : vector<4x8x16xf32> to vector<32x16xf32>
    %89 = arith.truncf %88 : vector<32x16xf32> to vector<32x16xbf16>
    %c0_23 = arith.constant 0 : index
    %c0_24 = arith.constant 0 : index
    %c0_25 = arith.constant 0 : index
    %90 = vector.load %arg5[%c0_23, %c0_24, %c0_25] : memref<2x16x32xbf16, #tpu.memory_space<vmem>>, vector<1x16x32xbf16>
    %91 = vector.shape_cast %90 : vector<1x16x32xbf16> to vector<16x32xbf16>
    %cst_26 = arith.constant dense<0.000000e+00> : vector<32x32xf32>
    %92 = tpu.matmul %89, %91, %cst_26 {dimension_numbers = #tpu.dot_dimension_numbers<[1], [0], [0], [1], [0, 0, 1, 1], [], []>} : vector<32x16xbf16>, vector<16x32xbf16>, vector<32x32xf32> -> vector<32x32xf32>
    %93 = vector.shape_cast %9 : vector<32xf32> to vector<1x32xf32>
    %94 = vector.broadcast %93 : vector<1x32xf32> to vector<32x32xf32>
    %95 = arith.addf %92, %94 : vector<32x32xf32>
    %96 = arith.addf %1, %95 : vector<32x32xf32>
    %cst_27 = arith.constant dense<0.000000e+00> : vector<32xf32>
    %97 = vector.multi_reduction <add>, %96, %cst_27 [1] : vector<32x32xf32> to vector<32xf32>
    %98 = vector.shape_cast %97 : vector<32xf32> to vector<32x1xf32>
    %cst_28 = arith.constant 3.200000e+01 : f32
    %99 = vector.broadcast %cst_28 : f32 to vector<32x1xf32>
    %100 = arith.divf %98, %99 : vector<32x1xf32>
    %101 = vector.broadcast %100 : vector<32x1xf32> to vector<32x32xf32>
    %102 = arith.subf %96, %101 : vector<32x32xf32>
    %103 = arith.mulf %102, %102 : vector<32x32xf32>
    %cst_29 = arith.constant dense<0.000000e+00> : vector<32xf32>
    %104 = vector.multi_reduction <add>, %103, %cst_29 [1] : vector<32x32xf32> to vector<32xf32>
    %105 = vector.shape_cast %104 : vector<32xf32> to vector<32x1xf32>
    %cst_30 = arith.constant 3.200000e+01 : f32
    %106 = vector.broadcast %cst_30 : f32 to vector<32x1xf32>
    %107 = arith.divf %105, %106 : vector<32x1xf32>
    %108 = vector.broadcast %100 : vector<32x1xf32> to vector<32x32xf32>
    %109 = arith.subf %96, %108 : vector<32x32xf32>
    %cst_31 = arith.constant 9.99999974E-6 : f32
    %110 = vector.broadcast %cst_31 : f32 to vector<32x1xf32>
    %111 = arith.addf %107, %110 : vector<32x1xf32>
    %112 = math.rsqrt %111 : vector<32x1xf32>
    %113 = vector.broadcast %112 : vector<32x1xf32> to vector<32x32xf32>
    %114 = arith.mulf %109, %113 : vector<32x32xf32>
    %115 = vector.shape_cast %11 : vector<32xf32> to vector<1x32xf32>
    %116 = vector.broadcast %115 : vector<1x32xf32> to vector<32x32xf32>
    %117 = arith.mulf %114, %116 : vector<32x32xf32>
    %118 = vector.shape_cast %13 : vector<32xf32> to vector<1x32xf32>
    %119 = vector.broadcast %118 : vector<1x32xf32> to vector<32x32xf32>
    %120 = arith.addf %117, %119 : vector<32x32xf32>
    %121 = arith.truncf %120 : vector<32x32xf32> to vector<32x32xbf16>
    %c0_32 = arith.constant 0 : index
    %c0_33 = arith.constant 0 : index
    %c0_34 = arith.constant 0 : index
    %122 = vector.load %arg6[%c0_32, %c0_33, %c0_34] : memref<2x32x64xbf16, #tpu.memory_space<vmem>>, vector<1x32x64xbf16>
    %123 = vector.shape_cast %122 : vector<1x32x64xbf16> to vector<32x64xbf16>
    %cst_35 = arith.constant dense<0.000000e+00> : vector<32x64xf32>
    %124 = tpu.matmul %121, %123, %cst_35 {dimension_numbers = #tpu.dot_dimension_numbers<[1], [0], [0], [1], [0, 0, 1, 1], [], []>} : vector<32x32xbf16>, vector<32x64xbf16>, vector<32x64xf32> -> vector<32x64xf32>
    %c0_36 = arith.constant 0 : index
    %c0_37 = arith.constant 0 : index
    %125 = vector.load %arg3[%c0_36, %c0_37] : memref<2x64xf32, #tpu.memory_space<vmem>>, vector<1x64xf32>
    %126 = vector.shape_cast %125 : vector<1x64xf32> to vector<64xf32>
    %127 = vector.shape_cast %126 : vector<64xf32> to vector<1x64xf32>
    %128 = vector.broadcast %127 : vector<1x64xf32> to vector<32x64xf32>
    %129 = arith.addf %124, %128 : vector<32x64xf32>
    %130 = arith.negf %129 : vector<32x64xf32>
    %131 = math.exp %130 : vector<32x64xf32>
    %cst_38 = arith.constant 1.000000e+00 : f32
    %132 = vector.broadcast %cst_38 : f32 to vector<32x64xf32>
    %133 = arith.addf %132, %131 : vector<32x64xf32>
    %134 = arith.divf %132, %133 : vector<32x64xf32>
    %135 = arith.mulf %129, %134 : vector<32x64xf32>
    %136 = arith.truncf %135 : vector<32x64xf32> to vector<32x64xbf16>
    %c0_39 = arith.constant 0 : index
    %c0_40 = arith.constant 0 : index
    %c0_41 = arith.constant 0 : index
    %137 = vector.load %arg7[%c0_39, %c0_40, %c0_41] : memref<2x64x32xbf16, #tpu.memory_space<vmem>>, vector<1x64x32xbf16>
    %138 = vector.shape_cast %137 : vector<1x64x32xbf16> to vector<64x32xbf16>
    %cst_42 = arith.constant dense<0.000000e+00> : vector<32x32xf32>
    %139 = tpu.matmul %136, %138, %cst_42 {dimension_numbers = #tpu.dot_dimension_numbers<[1], [0], [0], [1], [0, 0, 1, 1], [], []>} : vector<32x64xbf16>, vector<64x32xbf16>, vector<32x32xf32> -> vector<32x32xf32>
    %140 = vector.shape_cast %15 : vector<32xf32> to vector<1x32xf32>
    %141 = vector.broadcast %140 : vector<1x32xf32> to vector<32x32xf32>
    %142 = arith.addf %139, %141 : vector<32x32xf32>
    %143 = arith.addf %96, %142 : vector<32x32xf32>
    %c1 = arith.constant 1 : index
    %c0_43 = arith.constant 0 : index
    %c0_44 = arith.constant 0 : index
    %144 = vector.load %arg2[%c1, %c0_43, %c0_44] : memref<2x6x32xf32, #tpu.memory_space<vmem>>, vector<1x6x32xf32>
    %145 = vector.shape_cast %144 : vector<1x6x32xf32> to vector<6x32xf32>
    %146 = vector.extract_strided_slice %145 {offsets = [0, 0], sizes = [1, 32], strides = [1, 1]} : vector<6x32xf32> to vector<1x32xf32>
    %147 = vector.shape_cast %146 : vector<1x32xf32> to vector<32xf32>
    %148 = vector.extract_strided_slice %145 {offsets = [1, 0], sizes = [1, 32], strides = [1, 1]} : vector<6x32xf32> to vector<1x32xf32>
    %149 = vector.shape_cast %148 : vector<1x32xf32> to vector<32xf32>
    %150 = vector.extract_strided_slice %145 {offsets = [2, 0], sizes = [1, 32], strides = [1, 1]} : vector<6x32xf32> to vector<1x32xf32>
    %151 = vector.shape_cast %150 : vector<1x32xf32> to vector<32xf32>
    %152 = vector.extract_strided_slice %145 {offsets = [3, 0], sizes = [1, 32], strides = [1, 1]} : vector<6x32xf32> to vector<1x32xf32>
    %153 = vector.shape_cast %152 : vector<1x32xf32> to vector<32xf32>
    %154 = vector.extract_strided_slice %145 {offsets = [4, 0], sizes = [1, 32], strides = [1, 1]} : vector<6x32xf32> to vector<1x32xf32>
    %155 = vector.shape_cast %154 : vector<1x32xf32> to vector<32xf32>
    %156 = vector.extract_strided_slice %145 {offsets = [5, 0], sizes = [1, 32], strides = [1, 1]} : vector<6x32xf32> to vector<1x32xf32>
    %157 = vector.shape_cast %156 : vector<1x32xf32> to vector<32xf32>
    %cst_45 = arith.constant dense<0.000000e+00> : vector<32xf32>
    %158 = vector.multi_reduction <add>, %143, %cst_45 [1] : vector<32x32xf32> to vector<32xf32>
    %159 = vector.shape_cast %158 : vector<32xf32> to vector<32x1xf32>
    %cst_46 = arith.constant 3.200000e+01 : f32
    %160 = vector.broadcast %cst_46 : f32 to vector<32x1xf32>
    %161 = arith.divf %159, %160 : vector<32x1xf32>
    %162 = vector.broadcast %161 : vector<32x1xf32> to vector<32x32xf32>
    %163 = arith.subf %143, %162 : vector<32x32xf32>
    %164 = arith.mulf %163, %163 : vector<32x32xf32>
    %cst_47 = arith.constant dense<0.000000e+00> : vector<32xf32>
    %165 = vector.multi_reduction <add>, %164, %cst_47 [1] : vector<32x32xf32> to vector<32xf32>
    %166 = vector.shape_cast %165 : vector<32xf32> to vector<32x1xf32>
    %cst_48 = arith.constant 3.200000e+01 : f32
    %167 = vector.broadcast %cst_48 : f32 to vector<32x1xf32>
    %168 = arith.divf %166, %167 : vector<32x1xf32>
    %169 = vector.broadcast %161 : vector<32x1xf32> to vector<32x32xf32>
    %170 = arith.subf %143, %169 : vector<32x32xf32>
    %cst_49 = arith.constant 9.99999974E-6 : f32
    %171 = vector.broadcast %cst_49 : f32 to vector<32x1xf32>
    %172 = arith.addf %168, %171 : vector<32x1xf32>
    %173 = math.rsqrt %172 : vector<32x1xf32>
    %174 = vector.broadcast %173 : vector<32x1xf32> to vector<32x32xf32>
    %175 = arith.mulf %170, %174 : vector<32x32xf32>
    %176 = vector.shape_cast %147 : vector<32xf32> to vector<1x32xf32>
    %177 = vector.broadcast %176 : vector<1x32xf32> to vector<32x32xf32>
    %178 = arith.mulf %175, %177 : vector<32x32xf32>
    %179 = vector.shape_cast %149 : vector<32xf32> to vector<1x32xf32>
    %180 = vector.broadcast %179 : vector<1x32xf32> to vector<32x32xf32>
    %181 = arith.addf %178, %180 : vector<32x32xf32>
    %182 = arith.truncf %181 : vector<32x32xf32> to vector<32x32xbf16>
    %c1_50 = arith.constant 1 : index
    %c0_51 = arith.constant 0 : index
    %c0_52 = arith.constant 0 : index
    %183 = vector.load %arg4[%c1_50, %c0_51, %c0_52] : memref<2x32x48xbf16, #tpu.memory_space<vmem>>, vector<1x32x48xbf16>
    %184 = vector.shape_cast %183 : vector<1x32x48xbf16> to vector<32x48xbf16>
    %cst_53 = arith.constant dense<0.000000e+00> : vector<32x48xf32>
    %185 = tpu.matmul %182, %184, %cst_53 {dimension_numbers = #tpu.dot_dimension_numbers<[1], [0], [0], [1], [0, 0, 1, 1], [], []>} : vector<32x32xbf16>, vector<32x48xbf16>, vector<32x48xf32> -> vector<32x48xf32>
    %186 = vector.shape_cast %185 : vector<32x48xf32> to vector<4x8x48xf32>
    %187 = vector.extract_strided_slice %186 {offsets = [0, 0, 0], sizes = [4, 8, 8], strides = [1, 1, 1]} : vector<4x8x48xf32> to vector<4x8x8xf32>
    %188 = arith.truncf %187 : vector<4x8x8xf32> to vector<4x8x8xbf16>
    %189 = vector.extract_strided_slice %186 {offsets = [0, 0, 16], sizes = [4, 8, 8], strides = [1, 1, 1]} : vector<4x8x48xf32> to vector<4x8x8xf32>
    %190 = arith.truncf %189 : vector<4x8x8xf32> to vector<4x8x8xbf16>
    %191 = vector.extract_strided_slice %186 {offsets = [0, 0, 32], sizes = [4, 8, 8], strides = [1, 1, 1]} : vector<4x8x48xf32> to vector<4x8x8xf32>
    %192 = arith.truncf %191 : vector<4x8x8xf32> to vector<4x8x8xbf16>
    "tpu.trace_start"() <{level = 10 : i32, message = "bnd,bmd->bnm"}> : () -> ()
    %cst_54 = arith.constant dense<0.000000e+00> : vector<4x8x8xf32>
    %193 = tpu.matmul %188, %190, %cst_54 {dimension_numbers = #tpu.dot_dimension_numbers<[2], [2], [1], [1], [0, 0, 0, 1, 1, 1], [0], [0]>} : vector<4x8x8xbf16>, vector<4x8x8xbf16>, vector<4x8x8xf32> -> vector<4x8x8xf32>
    "tpu.trace_stop"() : () -> ()
    %cst_55 = arith.constant 0.353553385 : f32
    %194 = vector.broadcast %cst_55 : f32 to vector<4x8x8xf32>
    %195 = arith.mulf %193, %194 : vector<4x8x8xf32>
    %cst_56 = arith.constant dense<0xFF800000> : vector<4x8xf32>
    %196 = vector.multi_reduction <maximumf>, %195, %cst_56 [2] : vector<4x8x8xf32> to vector<4x8xf32>
    %197 = vector.shape_cast %196 : vector<4x8xf32> to vector<4x8x1xf32>
    %198 = vector.broadcast %197 : vector<4x8x1xf32> to vector<4x8x8xf32>
    %199 = arith.subf %195, %198 : vector<4x8x8xf32>
    %200 = math.exp %199 : vector<4x8x8xf32>
    %cst_57 = arith.constant dense<0.000000e+00> : vector<4x8xf32>
    %201 = vector.multi_reduction <add>, %200, %cst_57 [2] : vector<4x8x8xf32> to vector<4x8xf32>
    %202 = vector.shape_cast %201 : vector<4x8xf32> to vector<4x8x1xf32>
    %203 = tpu.reciprocal %202 {approx = true} : vector<4x8x1xf32> -> vector<4x8x1xf32>
    %204 = vector.broadcast %203 : vector<4x8x1xf32> to vector<4x8x8xf32>
    %205 = arith.mulf %200, %204 : vector<4x8x8xf32>
    %206 = arith.truncf %205 : vector<4x8x8xf32> to vector<4x8x8xbf16>
    "tpu.trace_start"() <{level = 10 : i32, message = "bnm,bmd->bnd"}> : () -> ()
    %cst_58 = arith.constant dense<0.000000e+00> : vector<4x8x8xf32>
    %207 = tpu.matmul %206, %192, %cst_58 {dimension_numbers = #tpu.dot_dimension_numbers<[2], [1], [1], [2], [0, 0, 0, 1, 1, 2], [0], [0]>} : vector<4x8x8xbf16>, vector<4x8x8xbf16>, vector<4x8x8xf32> -> vector<4x8x8xf32>
    "tpu.trace_stop"() : () -> ()
    %208 = vector.extract_strided_slice %186 {offsets = [0, 0, 8], sizes = [4, 8, 8], strides = [1, 1, 1]} : vector<4x8x48xf32> to vector<4x8x8xf32>
    %209 = arith.truncf %208 : vector<4x8x8xf32> to vector<4x8x8xbf16>
    %210 = vector.extract_strided_slice %186 {offsets = [0, 0, 24], sizes = [4, 8, 8], strides = [1, 1, 1]} : vector<4x8x48xf32> to vector<4x8x8xf32>
    %211 = arith.truncf %210 : vector<4x8x8xf32> to vector<4x8x8xbf16>
    %212 = vector.extract_strided_slice %186 {offsets = [0, 0, 40], sizes = [4, 8, 8], strides = [1, 1, 1]} : vector<4x8x48xf32> to vector<4x8x8xf32>
    %213 = arith.truncf %212 : vector<4x8x8xf32> to vector<4x8x8xbf16>
    "tpu.trace_start"() <{level = 10 : i32, message = "bnd,bmd->bnm"}> : () -> ()
    %cst_59 = arith.constant dense<0.000000e+00> : vector<4x8x8xf32>
    %214 = tpu.matmul %209, %211, %cst_59 {dimension_numbers = #tpu.dot_dimension_numbers<[2], [2], [1], [1], [0, 0, 0, 1, 1, 1], [0], [0]>} : vector<4x8x8xbf16>, vector<4x8x8xbf16>, vector<4x8x8xf32> -> vector<4x8x8xf32>
    "tpu.trace_stop"() : () -> ()
    %cst_60 = arith.constant 0.353553385 : f32
    %215 = vector.broadcast %cst_60 : f32 to vector<4x8x8xf32>
    %216 = arith.mulf %214, %215 : vector<4x8x8xf32>
    %cst_61 = arith.constant dense<0xFF800000> : vector<4x8xf32>
    %217 = vector.multi_reduction <maximumf>, %216, %cst_61 [2] : vector<4x8x8xf32> to vector<4x8xf32>
    %218 = vector.shape_cast %217 : vector<4x8xf32> to vector<4x8x1xf32>
    %219 = vector.broadcast %218 : vector<4x8x1xf32> to vector<4x8x8xf32>
    %220 = arith.subf %216, %219 : vector<4x8x8xf32>
    %221 = math.exp %220 : vector<4x8x8xf32>
    %cst_62 = arith.constant dense<0.000000e+00> : vector<4x8xf32>
    %222 = vector.multi_reduction <add>, %221, %cst_62 [2] : vector<4x8x8xf32> to vector<4x8xf32>
    %223 = vector.shape_cast %222 : vector<4x8xf32> to vector<4x8x1xf32>
    %224 = tpu.reciprocal %223 {approx = true} : vector<4x8x1xf32> -> vector<4x8x1xf32>
    %225 = vector.broadcast %224 : vector<4x8x1xf32> to vector<4x8x8xf32>
    %226 = arith.mulf %221, %225 : vector<4x8x8xf32>
    %227 = arith.truncf %226 : vector<4x8x8xf32> to vector<4x8x8xbf16>
    "tpu.trace_start"() <{level = 10 : i32, message = "bnm,bmd->bnd"}> : () -> ()
    %cst_63 = arith.constant dense<0.000000e+00> : vector<4x8x8xf32>
    %228 = tpu.matmul %227, %213, %cst_63 {dimension_numbers = #tpu.dot_dimension_numbers<[2], [1], [1], [2], [0, 0, 0, 1, 1, 2], [0], [0]>} : vector<4x8x8xbf16>, vector<4x8x8xbf16>, vector<4x8x8xf32> -> vector<4x8x8xf32>
    "tpu.trace_stop"() : () -> ()
    %229 = tpu.concatenate %207, %228 in 2 : vector<4x8x8xf32>, vector<4x8x8xf32> -> vector<4x8x16xf32>
    %230 = vector.shape_cast %229 : vector<4x8x16xf32> to vector<32x16xf32>
    %231 = arith.truncf %230 : vector<32x16xf32> to vector<32x16xbf16>
    %c1_64 = arith.constant 1 : index
    %c0_65 = arith.constant 0 : index
    %c0_66 = arith.constant 0 : index
    %232 = vector.load %arg5[%c1_64, %c0_65, %c0_66] : memref<2x16x32xbf16, #tpu.memory_space<vmem>>, vector<1x16x32xbf16>
    %233 = vector.shape_cast %232 : vector<1x16x32xbf16> to vector<16x32xbf16>
    %cst_67 = arith.constant dense<0.000000e+00> : vector<32x32xf32>
    %234 = tpu.matmul %231, %233, %cst_67 {dimension_numbers = #tpu.dot_dimension_numbers<[1], [0], [0], [1], [0, 0, 1, 1], [], []>} : vector<32x16xbf16>, vector<16x32xbf16>, vector<32x32xf32> -> vector<32x32xf32>
    %235 = vector.shape_cast %151 : vector<32xf32> to vector<1x32xf32>
    %236 = vector.broadcast %235 : vector<1x32xf32> to vector<32x32xf32>
    %237 = arith.addf %234, %236 : vector<32x32xf32>
    %238 = arith.addf %143, %237 : vector<32x32xf32>
    %cst_68 = arith.constant dense<0.000000e+00> : vector<32xf32>
    %239 = vector.multi_reduction <add>, %238, %cst_68 [1] : vector<32x32xf32> to vector<32xf32>
    %240 = vector.shape_cast %239 : vector<32xf32> to vector<32x1xf32>
    %cst_69 = arith.constant 3.200000e+01 : f32
    %241 = vector.broadcast %cst_69 : f32 to vector<32x1xf32>
    %242 = arith.divf %240, %241 : vector<32x1xf32>
    %243 = vector.broadcast %242 : vector<32x1xf32> to vector<32x32xf32>
    %244 = arith.subf %238, %243 : vector<32x32xf32>
    %245 = arith.mulf %244, %244 : vector<32x32xf32>
    %cst_70 = arith.constant dense<0.000000e+00> : vector<32xf32>
    %246 = vector.multi_reduction <add>, %245, %cst_70 [1] : vector<32x32xf32> to vector<32xf32>
    %247 = vector.shape_cast %246 : vector<32xf32> to vector<32x1xf32>
    %cst_71 = arith.constant 3.200000e+01 : f32
    %248 = vector.broadcast %cst_71 : f32 to vector<32x1xf32>
    %249 = arith.divf %247, %248 : vector<32x1xf32>
    %250 = vector.broadcast %242 : vector<32x1xf32> to vector<32x32xf32>
    %251 = arith.subf %238, %250 : vector<32x32xf32>
    %cst_72 = arith.constant 9.99999974E-6 : f32
    %252 = vector.broadcast %cst_72 : f32 to vector<32x1xf32>
    %253 = arith.addf %249, %252 : vector<32x1xf32>
    %254 = math.rsqrt %253 : vector<32x1xf32>
    %255 = vector.broadcast %254 : vector<32x1xf32> to vector<32x32xf32>
    %256 = arith.mulf %251, %255 : vector<32x32xf32>
    %257 = vector.shape_cast %153 : vector<32xf32> to vector<1x32xf32>
    %258 = vector.broadcast %257 : vector<1x32xf32> to vector<32x32xf32>
    %259 = arith.mulf %256, %258 : vector<32x32xf32>
    %260 = vector.shape_cast %155 : vector<32xf32> to vector<1x32xf32>
    %261 = vector.broadcast %260 : vector<1x32xf32> to vector<32x32xf32>
    %262 = arith.addf %259, %261 : vector<32x32xf32>
    %263 = arith.truncf %262 : vector<32x32xf32> to vector<32x32xbf16>
    %c1_73 = arith.constant 1 : index
    %c0_74 = arith.constant 0 : index
    %c0_75 = arith.constant 0 : index
    %264 = vector.load %arg6[%c1_73, %c0_74, %c0_75] : memref<2x32x64xbf16, #tpu.memory_space<vmem>>, vector<1x32x64xbf16>
    %265 = vector.shape_cast %264 : vector<1x32x64xbf16> to vector<32x64xbf16>
    %cst_76 = arith.constant dense<0.000000e+00> : vector<32x64xf32>
    %266 = tpu.matmul %263, %265, %cst_76 {dimension_numbers = #tpu.dot_dimension_numbers<[1], [0], [0], [1], [0, 0, 1, 1], [], []>} : vector<32x32xbf16>, vector<32x64xbf16>, vector<32x64xf32> -> vector<32x64xf32>
    %c1_77 = arith.constant 1 : index
    %c0_78 = arith.constant 0 : index
    %267 = vector.load %arg3[%c1_77, %c0_78] : memref<2x64xf32, #tpu.memory_space<vmem>>, vector<1x64xf32>
    %268 = vector.shape_cast %267 : vector<1x64xf32> to vector<64xf32>
    %269 = vector.shape_cast %268 : vector<64xf32> to vector<1x64xf32>
    %270 = vector.broadcast %269 : vector<1x64xf32> to vector<32x64xf32>
    %271 = arith.addf %266, %270 : vector<32x64xf32>
    %272 = arith.negf %271 : vector<32x64xf32>
    %273 = math.exp %272 : vector<32x64xf32>
    %cst_79 = arith.constant 1.000000e+00 : f32
    %274 = vector.broadcast %cst_79 : f32 to vector<32x64xf32>
    %275 = arith.addf %274, %273 : vector<32x64xf32>
    %276 = arith.divf %274, %275 : vector<32x64xf32>
    %277 = arith.mulf %271, %276 : vector<32x64xf32>
    %278 = arith.truncf %277 : vector<32x64xf32> to vector<32x64xbf16>
    %c1_80 = arith.constant 1 : index
    %c0_81 = arith.constant 0 : index
    %c0_82 = arith.constant 0 : index
    %279 = vector.load %arg7[%c1_80, %c0_81, %c0_82] : memref<2x64x32xbf16, #tpu.memory_space<vmem>>, vector<1x64x32xbf16>
    %280 = vector.shape_cast %279 : vector<1x64x32xbf16> to vector<64x32xbf16>
    %cst_83 = arith.constant dense<0.000000e+00> : vector<32x32xf32>
    %281 = tpu.matmul %278, %280, %cst_83 {dimension_numbers = #tpu.dot_dimension_numbers<[1], [0], [0], [1], [0, 0, 1, 1], [], []>} : vector<32x64xbf16>, vector<64x32xbf16>, vector<32x32xf32> -> vector<32x32xf32>
    %282 = vector.shape_cast %157 : vector<32xf32> to vector<1x32xf32>
    %283 = vector.broadcast %282 : vector<1x32xf32> to vector<32x32xf32>
    %284 = arith.addf %281, %283 : vector<32x32xf32>
    %285 = arith.addf %238, %284 : vector<32x32xf32>
    %286 = vector.shape_cast %285 : vector<32x32xf32> to vector<4x8x32xf32>
    %c0_84 = arith.constant 0 : index
    %c0_85 = arith.constant 0 : index
    %c0_86 = arith.constant 0 : index
    %287 = vector.load %arg8[%c0_84, %c0_85, %c0_86] : memref<4x8x32xf32, #tpu.memory_space<vmem>>, vector<4x8x32xf32>
    tpu.vector_store %arg8[%c0_84, %c0_85, %c0_86], %286 {strides = array<i32>} : memref<4x8x32xf32, #tpu.memory_space<vmem>>, vector<4x8x32xf32>,
    return
  }
  func.func @transform_0(%arg0: i32) -> (i32, i32, i32) {
    %c0_i32 = arith.constant 0 : i32
    %c0_i32_0 = arith.constant 0 : i32
    %c0_i32_1 = arith.constant 0 : i32
    return %arg0, %c0_i32, %c0_i32_0 : i32, i32, i32
  }
  func.func @transform_1(%arg0: i32) -> (i32, i32, i32) {
    %c0_i32 = arith.constant 0 : i32
    %c0_i32_0 = arith.constant 0 : i32
    %c0_i32_1 = arith.constant 0 : i32
    %c0_i32_2 = arith.constant 0 : i32
    return %c0_i32, %c0_i32_0, %c0_i32_1 : i32, i32, i32
  }
  func.func @transform_2(%arg0: i32) -> (i32, i32) {
    %c0_i32 = arith.constant 0 : i32
    %c0_i32_0 = arith.constant 0 : i32
    %c0_i32_1 = arith.constant 0 : i32
    return %c0_i32, %c0_i32_0 : i32, i32
  }
  func.func @transform_3(%arg0: i32) -> (i32, i32, i32) {
    %c0_i32 = arith.constant 0 : i32
    %c0_i32_0 = arith.constant 0 : i32
    %c0_i32_1 = arith.constant 0 : i32
    %c0_i32_2 = arith.constant 0 : i32
    return %c0_i32, %c0_i32_0, %c0_i32_1 : i32, i32, i32
  }
  func.func @transform_4(%arg0: i32) -> (i32, i32, i32) {
    %c0_i32 = arith.constant 0 : i32
    %c0_i32_0 = arith.constant 0 : i32
    %c0_i32_1 = arith.constant 0 : i32
    %c0_i32_2 = arith.constant 0 : i32
    return %c0_i32, %c0_i32_0, %c0_i32_1 : i32, i32, i32
  }
  func.func @transform_5(%arg0: i32) -> (i32, i32, i32) {
    %c0_i32 = arith.constant 0 : i32
    %c0_i32_0 = arith.constant 0 : i32
    %c0_i32_1 = arith.constant 0 : i32
    %c0_i32_2 = arith.constant 0 : i32
    return %c0_i32, %c0_i32_0, %c0_i32_1 : i32, i32, i32
  }
  func.func @transform_6(%arg0: i32) -> (i32, i32, i32) {
    %c0_i32 = arith.constant 0 : i32
    %c0_i32_0 = arith.constant 0 : i32
    %c0_i32_1 = arith.constant 0 : i32
    %c0_i32_2 = arith.constant 0 : i32
    return %c0_i32, %c0_i32_0, %c0_i32_1 : i32, i32, i32
  }
  func.func @transform_7(%arg0: i32) -> (i32, i32, i32) {
    %c0_i32 = arith.constant 0 : i32
    %c0_i32_0 = arith.constant 0 : i32
    %c0_i32_1 = arith.constant 0 : i32
    return %arg0, %c0_i32, %c0_i32_0 : i32, i32, i32
  }
}

</mosaic_0001>

<llo_original>
// kernel: tpu_custom_call.1
$region0: #{tpu_custom_call.1}
  #allocation0 [shape = 'u32[]', space=smem, size = 0x4, offset = 0x4, fixed_abs, tag = 'smem constant byte address 0x4 - core index']
  #allocation1 [shape = 'u32[144,128]{1,0:T(1,128)}', space=vmem, size = 0x12000, scoped, tag = 'internal scratch']
  %s0 = inlined_call_operand.vmem [shape: f32[8,8,32], index: 0, kind: input, shape index: {}]
  %s1 = inlined_call_operand.vmem [shape: f32[2,6,32], index: 1, kind: input, shape index: {}]
  %s2 = inlined_call_operand.vmem [shape: f32[2,64], index: 2, kind: input, shape index: {}]
  %s3 = inlined_call_operand.vmem [shape: bf16[2,32,48], index: 3, kind: input, shape index: {}]
  %s4 = inlined_call_operand.hbm [shape: bf16[2,16,32], index: 4, kind: input, shape index: {}]
  %s5 = inlined_call_operand.hbm [shape: bf16[2,32,64], index: 5, kind: input, shape index: {}]
  %s6 = inlined_call_operand.vmem [shape: bf16[2,64,32], index: 6, kind: input, shape index: {}]
  %s7 = inlined_call_operand.hbm [shape: f32[8,8,32], index: 7, kind: output, shape index: {}]
  %s8 = sld [smem:[#allocation0]]
  $region69: #{tpu_custom_call.1} parent=0
    _
  %s10 = ssub.s32 1, %s8
  %s11 = scalar_select 0, %s10, %s8
  $region1: #{tpu_custom_call.1} parent=0
    #allocation2 [shape = 'u8[8192]{0}', space=vmem, size = 0x2000, scoped, tag = 'input window, operand 4, single buffered']
    #allocation3 [shape = 's32[2]{0}', space=sflag, size = 0x8, scoped, tag = 'scoped memory for tpu_custom_call.1']
    #allocation4 [shape = 's32[2]{0}', space=sflag, size = 0x8, scoped, tag = 'scoped memory for tpu_custom_call.1']
    #allocation5 [shape = 'u8[16384]{0}', space=vmem, size = 0x4000, scoped, tag = 'input window, operand 5, single buffered']
    #allocation6 [shape = 's32[1]{0}', space=sflag, size = 0x4, scoped, tag = 'scoped memory for tpu_custom_call.1']
    #allocation7 [shape = 'u8[32768]{0}', space=vmem, size = 0x8000, scoped, tag = 'output window, operand 0']
    %12 = vsyncpa [#allocation3], 0
    %13 = vsyncpa [#allocation6], 0
    %14 = vsyncpa [#allocation4], 0
    %s15 = scalar_lea.sflag [#allocation4], 1
    %16 = vsyncpa %s15, 0
    loop: start=0, step=1, limit=4
    $region2: #{tpu_custom_call.1} parent=1 // loop_pre_header
      _
    $region3: #{tpu_custom_call.1} parent=1 // loop_header
      %s18 = sphi 0, %s22
      %p19 = scmp.ge.s32.totalorder %s18, 4
      %s28 = sphi 0, %s30
      %s31 = sphi 0, %s28
      %s32 = sphi 0, %s31
      %s48 = sphi 0, %s32
      %s52 = sphi 0, %s52
      %s54 = sphi 0, %s52
      %s55 = sphi 0, %s54
      %s69 = sphi 0, %s55
      %s73 = sphi 0, %s73
      %s75 = sphi 0, %s73
      %s76 = sphi 0, %s75
      %s90 = sphi 0, %s76
      %s94 = sphi 0, %s94
      %s96 = sphi 0, %s94
      %s97 = sphi 0, %s96
      %s111 = sphi 0, %s97
      %s115 = sphi 0, %s115
      %s117 = sphi 0, %s115
      %s118 = sphi 0, %s117
      %s132 = sphi 0, %s118
      %s136 = sphi 0, %s136
      %s138 = sphi 0, %s136
      %s139 = sphi 0, %s138
      %s153 = sphi 0, %s139
      %s157 = sphi 0, %s157
      %s159 = sphi 0, %s157
      %s160 = sphi 0, %s159
      %s174 = sphi 0, %s160
      %s180 = sphi 0, %s182
      %s183 = sphi 0, %s180
      %s184 = sphi 0, %s183
      %s200 = sphi 0, %s184
    $region4: #{tpu_custom_call.1} parent=1 // loop_header_branch
      %21 = sbr.rel (%p19) target = $region8
    $region5: #{tpu_custom_call.1} parent=1 // loop_body
      %s23 = ssub.s32 %s18, 1
      %s24 = ssub.s32 %s18, 2
      %s25 = sadd.s32 %s18, 1
      %s26 = ssub.s32 %s18, %s25
      %p27 = scmp.eq.s32.totalorder %s26, 0
      %s29 = sadd.s32 %s28, 1
      %s30 = scalar_select %p27, %s28, %s29
      %p33 = pneg %p27
      %p34 = scmp.eq.s32.totalorder %s18, 1
      %p35 = por %p33, %p34
      %p36 = scmp.ne.s32.totalorder %s28, %s31
      %p37 = scmp.eq.s32.totalorder %s18, 0
      %p38 = por %p36, %p37
      %p39 = scmp.ne.s32.totalorder %s28, %s31
      %p40 = scmp.eq.s32.totalorder %s23, 1
      %p41 = por %p39, %p40
      %p42 = scmp.ne.s32.totalorder %s31, %s32
      %p43 = scmp.eq.s32.totalorder %s23, 0
      %p44 = por %p42, %p43
      %p45 = scmp.ne.s32.totalorder %s31, %s32
      %p46 = scmp.eq.s32.totalorder %s24, 1
      %p47 = por %p45, %p46
      %p49 = scmp.ne.s32.totalorder %s32, %s48
      %p50 = scmp.eq.s32.totalorder %s24, 0
      %p51 = por %p49, %p50
      %s53 = sadd.s32 %s52, 1
      %p56 = scmp.eq.s32.totalorder %s18, 1
      %p57 = scmp.ne.s32.totalorder %s52, %s54
      %p58 = scmp.eq.s32.totalorder %s18, 0
      %p59 = por %p57, %p58
      %p60 = scmp.ne.s32.totalorder %s52, %s54
      %p61 = scmp.eq.s32.totalorder %s23, 1
      %p62 = por %p60, %p61
      %p63 = scmp.ne.s32.totalorder %s54, %s55
      %p64 = scmp.eq.s32.totalorder %s23, 0
      %p65 = por %p63, %p64
      %p66 = scmp.ne.s32.totalorder %s54, %s55
      %p67 = scmp.eq.s32.totalorder %s24, 1
      %p68 = por %p66, %p67
      %p70 = scmp.ne.s32.totalorder %s55, %s69
      %p71 = scmp.eq.s32.totalorder %s24, 0
      %p72 = por %p70, %p71
      %s74 = sadd.s32 %s73, 1
      %p77 = scmp.eq.s32.totalorder %s18, 1
      %p78 = scmp.ne.s32.totalorder %s73, %s75
      %p79 = scmp.eq.s32.totalorder %s18, 0
      %p80 = por %p78, %p79
      %p81 = scmp.ne.s32.totalorder %s73, %s75
      %p82 = scmp.eq.s32.totalorder %s23, 1
      %p83 = por %p81, %p82
      %p84 = scmp.ne.s32.totalorder %s75, %s76
      %p85 = scmp.eq.s32.totalorder %s23, 0
      %p86 = por %p84, %p85
      %p87 = scmp.ne.s32.totalorder %s75, %s76
      %p88 = scmp.eq.s32.totalorder %s24, 1
      %p89 = por %p87, %p88
      %p91 = scmp.ne.s32.totalorder %s76, %s90
      %p92 = scmp.eq.s32.totalorder %s24, 0
      %p93 = por %p91, %p92
      %s95 = sadd.s32 %s94, 1
      %p98 = scmp.eq.s32.totalorder %s18, 1
      %p99 = scmp.ne.s32.totalorder %s94, %s96
      %p100 = scmp.eq.s32.totalorder %s18, 0
      %p101 = por %p99, %p100
      %p102 = scmp.ne.s32.totalorder %s94, %s96
      %p103 = scmp.eq.s32.totalorder %s23, 1
      %p104 = por %p102, %p103
      %p105 = scmp.ne.s32.totalorder %s96, %s97
      %p106 = scmp.eq.s32.totalorder %s23, 0
      %p107 = por %p105, %p106
      %p108 = scmp.ne.s32.totalorder %s96, %s97
      %p109 = scmp.eq.s32.totalorder %s24, 1
      %p110 = por %p108, %p109
      %p112 = scmp.ne.s32.totalorder %s97, %s111
      %p113 = scmp.eq.s32.totalorder %s24, 0
      %p114 = por %p112, %p113
      %s116 = sadd.s32 %s115, 1
      %p119 = scmp.eq.s32.totalorder %s18, 1
      %p120 = scmp.ne.s32.totalorder %s115, %s117
      %p121 = scmp.eq.s32.totalorder %s18, 0
      %p122 = por %p120, %p121
      %p123 = scmp.ne.s32.totalorder %s115, %s117
      %p124 = scmp.eq.s32.totalorder %s23, 1
      %p125 = por %p123, %p124
      %p126 = scmp.ne.s32.totalorder %s117, %s118
      %p127 = scmp.eq.s32.totalorder %s23, 0
      %p128 = por %p126, %p127
      %p129 = scmp.ne.s32.totalorder %s117, %s118
      %p130 = scmp.eq.s32.totalorder %s24, 1
      %p131 = por %p129, %p130
      %p133 = scmp.ne.s32.totalorder %s118, %s132
      %p134 = scmp.eq.s32.totalorder %s24, 0
      %p135 = por %p133, %p134
      %s137 = sadd.s32 %s136, 1
      %p140 = scmp.eq.s32.totalorder %s18, 1
      %p141 = scmp.ne.s32.totalorder %s136, %s138
      %p142 = scmp.eq.s32.totalorder %s18, 0
      %p143 = por %p141, %p142
      %p144 = scmp.ne.s32.totalorder %s136, %s138
      %p145 = scmp.eq.s32.totalorder %s23, 1
      %p146 = por %p144, %p145
      %p147 = scmp.ne.s32.totalorder %s138, %s139
      %p148 = scmp.eq.s32.totalorder %s23, 0
      %p149 = por %p147, %p148
      %p150 = scmp.ne.s32.totalorder %s138, %s139
      %p151 = scmp.eq.s32.totalorder %s24, 1
      %p152 = por %p150, %p151
      %p154 = scmp.ne.s32.totalorder %s139, %s153
      %p155 = scmp.eq.s32.totalorder %s24, 0
      %p156 = por %p154, %p155
      %s158 = sadd.s32 %s157, 1
      %p161 = scmp.eq.s32.totalorder %s18, 1
      %p162 = scmp.ne.s32.totalorder %s157, %s159
      %p163 = scmp.eq.s32.totalorder %s18, 0
      %p164 = por %p162, %p163
      %p165 = scmp.ne.s32.totalorder %s157, %s159
      %p166 = scmp.eq.s32.totalorder %s23, 1
      %p167 = por %p165, %p166
      %p168 = scmp.ne.s32.totalorder %s159, %s160
      %p169 = scmp.eq.s32.totalorder %s23, 0
      %p170 = por %p168, %p169
      %p171 = scmp.ne.s32.totalorder %s159, %s160
      %p172 = scmp.eq.s32.totalorder %s24, 1
      %p173 = por %p171, %p172
      %p175 = scmp.ne.s32.totalorder %s160, %s174
      %p176 = scmp.eq.s32.totalorder %s24, 0
      %p177 = por %p175, %p176
      %s178 = ssub.s32 %s18, %s25
      %p179 = scmp.eq.s32.totalorder %s178, 0
      %s181 = sadd.s32 %s180, 1
      %s182 = scalar_select %p179, %s180, %s181
      %p185 = pneg %p179
      %p186 = scmp.eq.s32.totalorder %s18, 1
      %p187 = por %p185, %p186
      %p188 = scmp.ne.s32.totalorder %s180, %s183
      %p189 = scmp.eq.s32.totalorder %s18, 0
      %p190 = por %p188, %p189
      %p191 = scmp.ne.s32.totalorder %s180, %s183
      %p192 = scmp.eq.s32.totalorder %s23, 1
      %p193 = por %p191, %p192
      %p194 = scmp.ne.s32.totalorder %s183, %s184
      %p195 = scmp.eq.s32.totalorder %s23, 0
      %p196 = por %p194, %p195
      %p197 = scmp.ne.s32.totalorder %s183, %s184
      %p198 = scmp.eq.s32.totalorder %s24, 1
      %p199 = por %p197, %p198
      %p201 = scmp.ne.s32.totalorder %s184, %s200
      %p202 = scmp.eq.s32.totalorder %s24, 0
      %p203 = por %p201, %p202
      %p204 = scmp.le.s32.totalorder 1, %s18
      %p205 = scmp.lt.s32.totalorder %s18, 3
      %p206 = pnand %p204, %p205
      %p207 = pneg %p206
      // Predicated region
      $region9: #{tpu_custom_call.1} parent=5 // pred_check
        _
      $region10: #{tpu_custom_call.1} parent=5 // pred_check_branch
        %209 = sbr.rel (%p206) target = $region12
      $region11: #{tpu_custom_call.1} parent=5 // pred_region
        %s210 = ssub.s32 %s18, 1
        // Predicated region
        $region13: #{tpu_custom_call.1} parent=11 // pred_check
          %p211 = pneg %p65
        $region14: #{tpu_custom_call.1} parent=11 // pred_check_branch
          %213 = sbr.rel (%p211) target = $region16
        $region15: #{tpu_custom_call.1} parent=11 // pred_region
          _
        $region16: #{tpu_custom_call.1} parent=11 // pred_fallthru
          _
        // Predicated region
        $region17: #{tpu_custom_call.1} parent=11 // pred_check
          %p214 = pneg %p86
        $region18: #{tpu_custom_call.1} parent=11 // pred_check_branch
          %216 = sbr.rel (%p214) target = $region20
        $region19: #{tpu_custom_call.1} parent=11 // pred_region
          _
        $region20: #{tpu_custom_call.1} parent=11 // pred_fallthru
          _
        // Predicated region
        $region21: #{tpu_custom_call.1} parent=11 // pred_check
          %p217 = pneg %p107
        $region22: #{tpu_custom_call.1} parent=11 // pred_check_branch
          %219 = sbr.rel (%p217) target = $region24
        $region23: #{tpu_custom_call.1} parent=11 // pred_region
          _
        $region24: #{tpu_custom_call.1} parent=11 // pred_fallthru
          _
        // Predicated region
        $region25: #{tpu_custom_call.1} parent=11 // pred_check
          %p220 = pneg %p128
        $region26: #{tpu_custom_call.1} parent=11 // pred_check_branch
          %222 = sbr.rel (%p220) target = $region28
        $region27: #{tpu_custom_call.1} parent=11 // pred_region
          %s224 = ssub.s32 256, 256
          %225 = vsyncadd [#allocation3], %s224
          %s226 = sshll.u32 [#allocation2], 4
          %s227 = int_to_ptr.vmem [resolvable:$true] %s226
          %232 = dma.hbm_to_vmem [thread:$0]  %s4, 256, %s227, [#allocation3], 64, 64, 4
        $region28: #{tpu_custom_call.1} parent=11 // pred_fallthru
          _
        // Predicated region
        $region29: #{tpu_custom_call.1} parent=11 // pred_check
          %p233 = pneg %p149
        $region30: #{tpu_custom_call.1} parent=11 // pred_check_branch
          %235 = sbr.rel (%p233) target = $region32
        $region31: #{tpu_custom_call.1} parent=11 // pred_region
          %s237 = ssub.s32 512, 512
          %238 = vsyncadd [#allocation6], %s237
          %s239 = sshll.u32 [#allocation5], 4
          %s240 = int_to_ptr.vmem [resolvable:$true] %s239
          %245 = dma.hbm_to_vmem [thread:$0]  %s5, 512, %s240, [#allocation6], 64, 64, 4
        $region32: #{tpu_custom_call.1} parent=11 // pred_fallthru
          _
        // Predicated region
        $region33: #{tpu_custom_call.1} parent=11 // pred_check
          %p246 = pneg %p170
        $region34: #{tpu_custom_call.1} parent=11 // pred_check_branch
          %248 = sbr.rel (%p246) target = $region36
        $region35: #{tpu_custom_call.1} parent=11 // pred_region
          _
        $region36: #{tpu_custom_call.1} parent=11 // pred_fallthru
          _
      $region12: #{tpu_custom_call.1} parent=5 // pred_fallthru
        _
      %p249 = scmp.lt.s32.totalorder %s18, 2
      // Predicated region
      $region37: #{tpu_custom_call.1} parent=5 // pred_check
        %p250 = pneg %p249
      $region38: #{tpu_custom_call.1} parent=5 // pred_check_branch
        %252 = sbr.rel (%p250) target = $region40
      $region39: #{tpu_custom_call.1} parent=5 // pred_region
        // Predicated region
        $region41: #{tpu_custom_call.1} parent=39 // pred_check
          %p253 = pneg %p38
        $region42: #{tpu_custom_call.1} parent=39 // pred_check_branch
          %255 = sbr.rel (%p253) target = $region44
        $region43: #{tpu_custom_call.1} parent=39 // pred_region
          %s256 = smul.u32 4, %s18
          %p257 = scmp.lt.s32.totalorder %s256, 7
          %s258 = scalar_select %p257, %s256, 7
          %s259 = smul.addr %s258, 8
          %s260 = scalar_lea.vmem %s0, %s259
          %s261 = smul.u32 4, %s18
        $region44: #{tpu_custom_call.1} parent=39 // pred_fallthru
          _
      $region40: #{tpu_custom_call.1} parent=5 // pred_fallthru
        _
      %p262 = scmp.le.s32.totalorder 1, %s18
      %p263 = scmp.lt.s32.totalorder %s18, 3
      %p264 = pnand %p262, %p263
      %p265 = pneg %p264
      // Predicated region
      $region45: #{tpu_custom_call.1} parent=5 // pred_check
        _
      $region46: #{tpu_custom_call.1} parent=5 // pred_check_branch
        %267 = sbr.rel (%p264) target = $region48
      $region47: #{tpu_custom_call.1} parent=5 // pred_region
        %s268 = ssub.s32 %s18, 1
        // Predicated region
        $region49: #{tpu_custom_call.1} parent=47 // pred_check
          %p269 = pneg %p128
        $region50: #{tpu_custom_call.1} parent=47 // pred_check_branch
          %271 = sbr.rel (%p269) target = $region52
        $region51: #{tpu_custom_call.1} parent=47 // pred_region
          %272 = dma.done [#allocation3], 256
        $region52: #{tpu_custom_call.1} parent=47 // pred_fallthru
          _
        // Predicated region
        $region53: #{tpu_custom_call.1} parent=47 // pred_check
          %p273 = pneg %p149
        $region54: #{tpu_custom_call.1} parent=47 // pred_check_branch
          %275 = sbr.rel (%p273) target = $region56
        $region55: #{tpu_custom_call.1} parent=47 // pred_region
          %276 = dma.done [#allocation6], 512
        $region56: #{tpu_custom_call.1} parent=47 // pred_fallthru
          _
        %s277 = smul.u32 4, %s23
        %p278 = scmp.lt.s32.totalorder %s277, 7
        %s279 = scalar_select %p278, %s277, 7
        %s280 = smul.addr %s279, 8
        %s281 = scalar_lea.vmem %s0, %s280
        %p282 = pneg %p44
        %p283 = pneg %p41
        %p284 = pneg %p65
        %p285 = pneg %p62
        %p286 = pneg %p86
        %p287 = pneg %p83
        %p288 = pneg %p107
        %p289 = pneg %p104
        %p290 = pneg %p128
        %p291 = pneg %p125
        %p292 = pneg %p149
        %p293 = pneg %p146
        %p294 = pneg %p170
        %p295 = pneg %p167
        %p296 = pneg %p196
        %p297 = pneg %p193
        %s298 = sand.u32 %s183, 1
        %s299 = scalar_lea.sflag [#allocation4], %s298
        %s300 = sand.u32 %s183, 1
        %s301 = smul.addr %s300, 32
        %s302 = scalar_lea.vmem [#allocation7], %s301
        %s303 = smul.u32 4, %s23
        %p304 = scmp.lt.s32.totalorder %s303, 7
        %s305 = scalar_select %p304, %s303, 7
        %s306 = smul.addr %s305, 8
        %s307 = scalar_lea.vmem %s0, %s306
        %s308 = smul.u32 4, %s23
        %s309 = smul.u32 4, %s23
        %v311 = vld [vmem:[%s307] sm:$0xff]
        %v312 = vld [vmem:[%s307 + $0x8] sm:$0xff]
        %v313 = vld [vmem:[%s307 + $0x10] sm:$0xff]
        %v314 = vld [vmem:[%s307 + $0x18] sm:$0xff]
        %v315 = vld [vmem:[%s1] sm:$0x3f]
        %vm316 = vcmask 261120
        %v317 = vsel %vm316, %v311, 0.0
        %318 = vadd.xlane.f32.xlu0 %v317
        %v319 = vpop.xlane.xlu0 %318
        %v320 = vsel %vm316, %v312, 0.0
        %321 = vadd.xlane.f32.xlu0 %v320
        %v322 = vpop.xlane.xlu0 %321
        %v323 = vsel %vm316, %v313, 0.0
        %324 = vadd.xlane.f32.xlu0 %v323
        %v325 = vpop.xlane.xlu0 %324
        %v326 = vsel %vm316, %v314, 0.0
        %327 = vadd.xlane.f32.xlu0 %v326
        %v328 = vpop.xlane.xlu0 %327
        %v329 = vrcp.pop 32.0
        %v330 = vmul.f32 %v319, %v329
        %v331 = vmul.f32 %v322, %v329
        %v332 = vmul.f32 %v325, %v329
        %v333 = vmul.f32 %v328, %v329
        %v334 = vsub.f32 %v311, %v330
        %v335 = vsub.f32 %v312, %v331
        %v336 = vsub.f32 %v313, %v332
        %v337 = vsub.f32 %v314, %v333
        %v338 = vmul.f32 %v334, %v334
        %v339 = vmul.f32 %v335, %v335
        %v340 = vmul.f32 %v336, %v336
        %v341 = vmul.f32 %v337, %v337
        %v342 = vsel %vm316, %v338, 0.0
        %343 = vadd.xlane.f32.xlu0 %v342
        %v344 = vpop.xlane.xlu0 %343
        %v345 = vsel %vm316, %v339, 0.0
        %346 = vadd.xlane.f32.xlu0 %v345
        %v347 = vpop.xlane.xlu0 %346
        %v348 = vsel %vm316, %v340, 0.0
        %349 = vadd.xlane.f32.xlu0 %v348
        %v350 = vpop.xlane.xlu0 %349
        %v351 = vsel %vm316, %v341, 0.0
        %352 = vadd.xlane.f32.xlu0 %v351
        %v353 = vpop.xlane.xlu0 %352
        %v354 = vmul.f32 %v344, %v329
        %v355 = vmul.f32 %v347, %v329
        %v356 = vmul.f32 %v350, %v329
        %v357 = vmul.f32 %v353, %v329
        %v358 = vadd.f32 %v354, 1e-05
        %v359 = vadd.f32 %v355, 1e-05
        %v360 = vadd.f32 %v356, 1e-05
        %v361 = vadd.f32 %v357, 1e-05
        %v362 = vrsqrt.pop %v358
        %v363 = vrsqrt.pop %v359
        %v364 = vrsqrt.pop %v360
        %v365 = vrsqrt.pop %v361
        %v366 = vmul.f32 %v334, %v362
        %v367 = vmul.f32 %v335, %v363
        %v368 = vmul.f32 %v336, %v364
        %v369 = vmul.f32 %v337, %v365
        %v370 = vlaneseq
        %v371 = vshrl.u32 %v370, 7
        %v372 = vsub.s32 0, %v371
        %v373 = vrot.slane %v315, %v372
        %v374 = vmul.f32 %v366, %v373
        %v375 = vmul.f32 %v367, %v373
        %v376 = vmul.f32 %v368, %v373
        %v377 = vmul.f32 %v369, %v373
        %v378 = vlaneseq
        %v379 = vshrl.u32 %v378, 7
        %v380 = vsub.s32 1, %v379
        %v381 = vrot.slane %v315, %v380
        %v382 = vadd.f32 %v374, %v381
        %v383 = vadd.f32 %v375, %v381
        %v384 = vadd.f32 %v376, %v381
        %v385 = vadd.f32 %v377, %v381
        %v386 = vpack.c.bf16 %v383, %v382
        %v387 = vpack.c.bf16 %v385, %v384
        %v388 = vld [vmem:[%s3] sm:$0xf]
        %v389 = vld [vmem:[%s3 + $0x4] sm:$0xf]
        %v390 = vld [vmem:[%s3 + $0x8] sm:$0xf]
        %v391 = vld [vmem:[%s3 + $0xc] sm:$0xf]
        %v396 = vunpack.c.l.b16 %v388
        %v397 = vunpack.c.l.b16 %v389
        %v398 = vunpack.c.l.b16 %v390
        %v399 = vunpack.c.l.b16 %v391
        %v400 = vpack.c.b16 %v397, %v396
        %v401 = vpack.c.b16 %v399, %v398
        %v405 = vsel %vm316, %v386, 0
        %v408 = vsel %vm316, %v387, 0
        %410 = vmatprep.subr.bf16.mxu0 0
        %411 = vmatpush1.bf16.msra.mxu0 0
        %412 = vmatprep.subr.bf16.mxu0 0
        %413 = vmatpush1.bf16.msra.mxu0 0
        %414 = vmatprep.subr.bf16.mxu0 0
        %415 = vmatpush1.bf16.msra.mxu0 0
        %416 = vmatprep.subr.bf16.mxu0 0
        %417 = vmatpush1.bf16.msra.mxu0 0
        %418 = vmatprep.subr.bf16.mxu0 0
        %419 = vmatpush1.bf16.msra.mxu0 0
        %420 = vmatprep.subr.bf16.mxu0 0
        %421 = vmatpush1.bf16.msra.mxu0 0
        %422 = vmatprep.subr.bf16.mxu0 0
        %423 = vmatpush1.bf16.msra.mxu0 %v401
        %424 = vmatprep.subr.bf16.mxu0 0
        %425 = vmatpush1.bf16.msra.mxu0 %v400
        %426 = vmatprep.subr.bf16.mxu0 0
        %427 = vmatpush2.bf16.msra.mxu0 0
        %428 = vmatprep.subr.bf16.mxu0 0
        %429 = vmatpush2.bf16.msra.mxu0 0
        %430 = vmatprep.subr.bf16.mxu0 0
        %431 = vmatpush2.bf16.msra.mxu0 0
        %432 = vmatprep.subr.bf16.mxu0 0
        %433 = vmatpush2.bf16.msra.mxu0 0
        %434 = vmatprep.subr.bf16.mxu0 0
        %435 = vmatpush2.bf16.msra.mxu0 0
        %436 = vmatprep.subr.bf16.mxu0 0
        %437 = vmatpush2.bf16.msra.mxu0 0
        %438 = vmatprep.subr.bf16.mxu0 0
        %439 = vmatpush2.bf16.msra.mxu0 0
        %440 = vmatprep.subr.bf16.mxu0 0
        %441 = vmatpush2.bf16.msra.mxu0 0
        %442 = vmatprep.mubr.bf16.mxu0 0
        %443 = vmatmul.mubr.bf16.gmra.mxu0 %v405
        %v444 = vpop.f32.mrf.mxu0
        %v445 = vadd.f32 0.0, %v444
        %v446 = vpop.f32.mrf.mxu0
        %v447 = vpop.f32.mrf.mxu0
        %v448 = vadd.f32 0.0, %v447
        %v449 = vpop.f32.mrf.mxu0
        %450 = vmatprep.mubr.bf16.mxu0 0
        %451 = vmatmul.mubr.bf16.gmra.mxu0 %v408
        %v452 = vpop.f32.mrf.mxu0
        %v453 = vadd.f32 0.0, %v452
        %v454 = vpop.f32.mrf.mxu0
        %v455 = vpop.f32.mrf.mxu0
        %v456 = vadd.f32 0.0, %v455
        %v457 = vpop.f32.mrf.mxu0
        %458 = vdwg.mxu0
        %v459 = vpack.c.bf16 %v445, %v445
        %v460 = vpack.c.bf16 %v448, %v448
        %v461 = vpack.c.bf16 %v453, %v453
        %v462 = vpack.c.bf16 %v456, %v456
        %464 = vrot.lane.b32.xlu0 %v459, 112
        %v465 = vpop.permute.xlu0 %464
        %vm466 = vcmask 64512
        %v468 = vsel %vm466, %v459, 0
        %v471 = vsel %vm466, %v465, 0
        %473 = vmatprep.subr.bf16.mxu0 0
        %474 = vmatpush1.bf16.xpose.msra.mxu0 0
        %475 = vmatprep.subr.bf16.mxu0 0
        %476 = vmatpush1.bf16.xpose.msra.mxu0 0
        %477 = vmatprep.subr.bf16.mxu0 0
        %478 = vmatpush1.bf16.xpose.msra.mxu0 0
        %479 = vmatprep.subr.bf16.mxu0 0
        %480 = vmatpush1.bf16.xpose.msra.mxu0 0
        %481 = vmatprep.subr.bf16.mxu0 0
        %482 = vmatpush1.bf16.xpose.msra.mxu0 0
        %483 = vmatprep.subr.bf16.mxu0 0
        %484 = vmatpush1.bf16.xpose.msra.mxu0 0
        %485 = vmatprep.subr.bf16.mxu0 0
        %486 = vmatpush1.bf16.xpose.msra.mxu0 0
        %487 = vmatprep.subr.bf16.mxu0 0
        %488 = vmatpush1.bf16.xpose.msra.mxu0 %v471
        %489 = vmatprep.subr.bf16.mxu0 0
        %490 = vmatpush2.bf16.xpose.msra.mxu0 0
        %491 = vmatprep.subr.bf16.mxu0 0
        %492 = vmatpush2.bf16.xpose.msra.mxu0 0
        %493 = vmatprep.subr.bf16.mxu0 0
        %494 = vmatpush2.bf16.xpose.msra.mxu0 0
        %495 = vmatprep.subr.bf16.mxu0 0
        %496 = vmatpush2.bf16.xpose.msra.mxu0 0
        %497 = vmatprep.subr.bf16.mxu0 0
        %498 = vmatpush2.bf16.xpose.msra.mxu0 0
        %499 = vmatprep.subr.bf16.mxu0 0
        %500 = vmatpush2.bf16.xpose.msra.mxu0 0
        %501 = vmatprep.subr.bf16.mxu0 0
        %502 = vmatpush2.bf16.xpose.msra.mxu0 0
        %503 = vmatprep.subr.bf16.mxu0 0
        %504 = vmatpush2.bf16.xpose.msra.mxu0 0
        %505 = vmatprep.mubr.bf16.mxu0 0
        %506 = vmatmul.mubr.bf16.gmra.mxu0 %v468
        %v507 = vpop.f32.mrf.mxu0
        %v508 = vadd.f32 0.0, %v507
        %v509 = vpop.f32.mrf.mxu0
        %v510 = vpop.f32.mrf.mxu0
        %v511 = vpop.f32.mrf.mxu0
        %512 = vdwg.mxu0
        %514 = vrot.lane.b32.xlu0 %v460, 112
        %v515 = vpop.permute.xlu0 %514
        %v517 = vsel %vm466, %v460, 0
        %v520 = vsel %vm466, %v515, 0
        %522 = vmatprep.subr.bf16.mxu0 0
        %523 = vmatpush1.bf16.xpose.msra.mxu0 0
        %524 = vmatprep.subr.bf16.mxu0 0
        %525 = vmatpush1.bf16.xpose.msra.mxu0 0
        %526 = vmatprep.subr.bf16.mxu0 0
        %527 = vmatpush1.bf16.xpose.msra.mxu0 0
        %528 = vmatprep.subr.bf16.mxu0 0
        %529 = vmatpush1.bf16.xpose.msra.mxu0 0
        %530 = vmatprep.subr.bf16.mxu0 0
        %531 = vmatpush1.bf16.xpose.msra.mxu0 0
        %532 = vmatprep.subr.bf16.mxu0 0
        %533 = vmatpush1.bf16.xpose.msra.mxu0 0
        %534 = vmatprep.subr.bf16.mxu0 0
        %535 = vmatpush1.bf16.xpose.msra.mxu0 0
        %536 = vmatprep.subr.bf16.mxu0 0
        %537 = vmatpush1.bf16.xpose.msra.mxu0 %v520
        %538 = vmatprep.subr.bf16.mxu0 0
        %539 = vmatpush2.bf16.xpose.msra.mxu0 0
        %540 = vmatprep.subr.bf16.mxu0 0
        %541 = vmatpush2.bf16.xpose.msra.mxu0 0
        %542 = vmatprep.subr.bf16.mxu0 0
        %543 = vmatpush2.bf16.xpose.msra.mxu0 0
        %544 = vmatprep.subr.bf16.mxu0 0
        %545 = vmatpush2.bf16.xpose.msra.mxu0 0
        %546 = vmatprep.subr.bf16.mxu0 0
        %547 = vmatpush2.bf16.xpose.msra.mxu0 0
        %548 = vmatprep.subr.bf16.mxu0 0
        %549 = vmatpush2.bf16.xpose.msra.mxu0 0
        %550 = vmatprep.subr.bf16.mxu0 0
        %551 = vmatpush2.bf16.xpose.msra.mxu0 0
        %552 = vmatprep.subr.bf16.mxu0 0
        %553 = vmatpush2.bf16.xpose.msra.mxu0 0
        %554 = vmatprep.mubr.bf16.mxu0 0
        %555 = vmatmul.mubr.bf16.gmra.mxu0 %v517
        %v556 = vpop.f32.mrf.mxu0
        %v557 = vadd.f32 0.0, %v556
        %v558 = vpop.f32.mrf.mxu0
        %v559 = vpop.f32.mrf.mxu0
        %v560 = vpop.f32.mrf.mxu0
        %561 = vdwg.mxu0
        %563 = vrot.lane.b32.xlu0 %v461, 112
        %v564 = vpop.permute.xlu0 %563
        %v566 = vsel %vm466, %v461, 0
        %v569 = vsel %vm466, %v564, 0
        %571 = vmatprep.subr.bf16.mxu0 0
        %572 = vmatpush1.bf16.xpose.msra.mxu0 0
        %573 = vmatprep.subr.bf16.mxu0 0
        %574 = vmatpush1.bf16.xpose.msra.mxu0 0
        %575 = vmatprep.subr.bf16.mxu0 0
        %576 = vmatpush1.bf16.xpose.msra.mxu0 0
        %577 = vmatprep.subr.bf16.mxu0 0
        %578 = vmatpush1.bf16.xpose.msra.mxu0 0
        %579 = vmatprep.subr.bf16.mxu0 0
        %580 = vmatpush1.bf16.xpose.msra.mxu0 0
        %581 = vmatprep.subr.bf16.mxu0 0
        %582 = vmatpush1.bf16.xpose.msra.mxu0 0
        %583 = vmatprep.subr.bf16.mxu0 0
        %584 = vmatpush1.bf16.xpose.msra.mxu0 0
        %585 = vmatprep.subr.bf16.mxu0 0
        %586 = vmatpush1.bf16.xpose.msra.mxu0 %v569
        %587 = vmatprep.subr.bf16.mxu0 0
        %588 = vmatpush2.bf16.xpose.msra.mxu0 0
        %589 = vmatprep.subr.bf16.mxu0 0
        %590 = vmatpush2.bf16.xpose.msra.mxu0 0
        %591 = vmatprep.subr.bf16.mxu0 0
        %592 = vmatpush2.bf16.xpose.msra.mxu0 0
        %593 = vmatprep.subr.bf16.mxu0 0
        %594 = vmatpush2.bf16.xpose.msra.mxu0 0
        %595 = vmatprep.subr.bf16.mxu0 0
        %596 = vmatpush2.bf16.xpose.msra.mxu0 0
        %597 = vmatprep.subr.bf16.mxu0 0
        %598 = vmatpush2.bf16.xpose.msra.mxu0 0
        %599 = vmatprep.subr.bf16.mxu0 0
        %600 = vmatpush2.bf16.xpose.msra.mxu0 0
        %601 = vmatprep.subr.bf16.mxu0 0
        %602 = vmatpush2.bf16.xpose.msra.mxu0 0
        %603 = vmatprep.mubr.bf16.mxu0 0
        %604 = vmatmul.mubr.bf16.gmra.mxu0 %v566
        %v605 = vpop.f32.mrf.mxu0
        %v606 = vadd.f32 0.0, %v605
        %v607 = vpop.f32.mrf.mxu0
        %v608 = vpop.f32.mrf.mxu0
        %v609 = vpop.f32.mrf.mxu0
        %610 = vdwg.mxu0
        %612 = vrot.lane.b32.xlu0 %v462, 112
        %v613 = vpop.permute.xlu0 %612
        %v615 = vsel %vm466, %v462, 0
        %v618 = vsel %vm466, %v613, 0
        %620 = vmatprep.subr.bf16.mxu0 0
        %621 = vmatpush1.bf16.xpose.msra.mxu0 0
        %622 = vmatprep.subr.bf16.mxu0 0
        %623 = vmatpush1.bf16.xpose.msra.mxu0 0
        %624 = vmatprep.subr.bf16.mxu0 0
        %625 = vmatpush1.bf16.xpose.msra.mxu0 0
        %626 = vmatprep.subr.bf16.mxu0 0
        %627 = vmatpush1.bf16.xpose.msra.mxu0 0
        %628 = vmatprep.subr.bf16.mxu0 0
        %629 = vmatpush1.bf16.xpose.msra.mxu0 0
        %630 = vmatprep.subr.bf16.mxu0 0
        %631 = vmatpush1.bf16.xpose.msra.mxu0 0
        %632 = vmatprep.subr.bf16.mxu0 0
        %633 = vmatpush1.bf16.xpose.msra.mxu0 0
        %634 = vmatprep.subr.bf16.mxu0 0
        %635 = vmatpush1.bf16.xpose.msra.mxu0 %v618
        %636 = vmatprep.subr.bf16.mxu0 0
        %637 = vmatpush2.bf16.xpose.msra.mxu0 0
        %638 = vmatprep.subr.bf16.mxu0 0
        %639 = vmatpush2.bf16.xpose.msra.mxu0 0
        %640 = vmatprep.subr.bf16.mxu0 0
        %641 = vmatpush2.bf16.xpose.msra.mxu0 0
        %642 = vmatprep.subr.bf16.mxu0 0
        %643 = vmatpush2.bf16.xpose.msra.mxu0 0
        %644 = vmatprep.subr.bf16.mxu0 0
        %645 = vmatpush2.bf16.xpose.msra.mxu0 0
        %646 = vmatprep.subr.bf16.mxu0 0
        %647 = vmatpush2.bf16.xpose.msra.mxu0 0
        %648 = vmatprep.subr.bf16.mxu0 0
        %649 = vmatpush2.bf16.xpose.msra.mxu0 0
        %650 = vmatprep.subr.bf16.mxu0 0
        %651 = vmatpush2.bf16.xpose.msra.mxu0 0
        %652 = vmatprep.mubr.bf16.mxu0 0
        %653 = vmatmul.mubr.bf16.gmra.mxu0 %v615
        %v654 = vpop.f32.mrf.mxu0
        %v655 = vadd.f32 0.0, %v654
        %v656 = vpop.f32.mrf.mxu0
        %v657 = vpop.f32.mrf.mxu0
        %v658 = vpop.f32.mrf.mxu0
        %659 = vdwg.mxu0
        %v660 = vmul.f32 %v508, 0.35355338
        %v661 = vmul.f32 %v557, 0.35355338
        %v662 = vmul.f32 %v606, 0.35355338
        %v663 = vmul.f32 %v655, 0.35355338
        %v664 = vsel %vm466, %v660, -inf
        %665 = vmax.xlane.f32.xlu0 %v664
        %v666 = vpop.xlane.xlu0 %665
        %v667 = vsel %vm466, %v661, -inf
        %668 = vmax.xlane.f32.xlu0 %v667
        %v669 = vpop.xlane.xlu0 %668
        %v670 = vsel %vm466, %v662, -inf
        %671 = vmax.xlane.f32.xlu0 %v670
        %v672 = vpop.xlane.xlu0 %671
        %v673 = vsel %vm466, %v663, -inf
        %674 = vmax.xlane.f32.xlu0 %v673
        %v675 = vpop.xlane.xlu0 %674
        %v676 = vsub.f32 %v660, %v666
        %v677 = vsub.f32 %v661, %v669
        %v678 = vsub.f32 %v662, %v672
        %v679 = vsub.f32 %v663, %v675
        %v680 = vmul.f32 %v676, 1.442695
        %v681 = vpow.pop %v680
        %v682 = vmul.f32 %v677, 1.442695
        %v683 = vpow.pop %v682
        %v684 = vmul.f32 %v678, 1.442695
        %v685 = vpow.pop %v684
        %v686 = vmul.f32 %v679, 1.442695
        %v687 = vpow.pop %v686
        %v688 = vsel %vm466, %v681, 0.0
        %689 = vadd.xlane.f32.xlu0 %v688
        %v690 = vpop.xlane.xlu0 %689
        %v691 = vsel %vm466, %v683, 0.0
        %692 = vadd.xlane.f32.xlu0 %v691
        %v693 = vpop.xlane.xlu0 %692
        %v694 = vsel %vm466, %v685, 0.0
        %695 = vadd.xlane.f32.xlu0 %v694
        %v696 = vpop.xlane.xlu0 %695
        %v697 = vsel %vm466, %v687, 0.0
        %698 = vadd.xlane.f32.xlu0 %v697
        %v699 = vpop.xlane.xlu0 %698
        %v700 = vrcp.pop %v690
        %v701 = vrcp.pop %v693
        %v702 = vrcp.pop %v696
        %v703 = vrcp.pop %v699
        %v704 = vmul.f32 %v681, %v700
        %v705 = vmul.f32 %v683, %v701
        %v706 = vmul.f32 %v685, %v702
        %v707 = vmul.f32 %v687, %v703
        %v708 = vpack.c.bf16 %v704, %v704
        %v709 = vpack.c.bf16 %v705, %v705
        %v710 = vpack.c.bf16 %v706, %v706
        %v711 = vpack.c.bf16 %v707, %v707
        %712 = vrot.lane.b32.xlu0 %v459, 96
        %v713 = vpop.permute.xlu0 %712
        %v715 = vsel %vm466, %v708, 0
        %vm717 = vcmask 1043456
        %v719 = vsel %vm717, %v713, 0
        %721 = vmatprep.subr.bf16.mxu0 0
        %722 = vmatpush1.bf16.msra.mxu0 0
        %723 = vmatprep.subr.bf16.mxu0 0
        %724 = vmatpush1.bf16.msra.mxu0 0
        %725 = vmatprep.subr.bf16.mxu0 0
        %726 = vmatpush1.bf16.msra.mxu0 0
        %727 = vmatprep.subr.bf16.mxu0 0
        %728 = vmatpush1.bf16.msra.mxu0 0
        %729 = vmatprep.subr.bf16.mxu0 0
        %730 = vmatpush1.bf16.msra.mxu0 0
        %731 = vmatprep.subr.bf16.mxu0 0
        %732 = vmatpush1.bf16.msra.mxu0 0
        %733 = vmatprep.subr.bf16.mxu0 0
        %734 = vmatpush1.bf16.msra.mxu0 0
        %735 = vmatprep.subr.bf16.mxu0 0
        %736 = vmatpush1.bf16.msra.mxu0 %v719
        %737 = vmatprep.subr.bf16.mxu0 0
        %738 = vmatpush2.bf16.msra.mxu0 0
        %739 = vmatprep.subr.bf16.mxu0 0
        %740 = vmatpush2.bf16.msra.mxu0 0
        %741 = vmatprep.subr.bf16.mxu0 0
        %742 = vmatpush2.bf16.msra.mxu0 0
        %743 = vmatprep.subr.bf16.mxu0 0
        %744 = vmatpush2.bf16.msra.mxu0 0
        %745 = vmatprep.subr.bf16.mxu0 0
        %746 = vmatpush2.bf16.msra.mxu0 0
        %747 = vmatprep.subr.bf16.mxu0 0
        %748 = vmatpush2.bf16.msra.mxu0 0
        %749 = vmatprep.subr.bf16.mxu0 0
        %750 = vmatpush2.bf16.msra.mxu0 0
        %751 = vmatprep.subr.bf16.mxu0 0
        %752 = vmatpush2.bf16.msra.mxu0 0
        %753 = vmatprep.mubr.bf16.mxu0 0
        %754 = vmatmul.mubr.bf16.gmra.mxu0 %v715
        %v755 = vpop.f32.mrf.mxu0
        %v756 = vadd.f32 0.0, %v755
        %v757 = vpop.f32.mrf.mxu0
        %v758 = vpop.f32.mrf.mxu0
        %v759 = vpop.f32.mrf.mxu0
        %760 = vdwg.mxu0
        %761 = vrot.lane.b32.xlu0 %v460, 96
        %v762 = vpop.permute.xlu0 %761
        %v764 = vsel %vm466, %v709, 0
        %v767 = vsel %vm717, %v762, 0
        %769 = vmatprep.subr.bf16.mxu0 0
        %770 = vmatpush1.bf16.msra.mxu0 0
        %771 = vmatprep.subr.bf16.mxu0 0
        %772 = vmatpush1.bf16.msra.mxu0 0
        %773 = vmatprep.subr.bf16.mxu0 0
        %774 = vmatpush1.bf16.msra.mxu0 0
        %775 = vmatprep.subr.bf16.mxu0 0
        %776 = vmatpush1.bf16.msra.mxu0 0
        %777 = vmatprep.subr.bf16.mxu0 0
        %778 = vmatpush1.bf16.msra.mxu0 0
        %779 = vmatprep.subr.bf16.mxu0 0
        %780 = vmatpush1.bf16.msra.mxu0 0
        %781 = vmatprep.subr.bf16.mxu0 0
        %782 = vmatpush1.bf16.msra.mxu0 0
        %783 = vmatprep.subr.bf16.mxu0 0
        %784 = vmatpush1.bf16.msra.mxu0 %v767
        %785 = vmatprep.subr.bf16.mxu0 0
        %786 = vmatpush2.bf16.msra.mxu0 0
        %787 = vmatprep.subr.bf16.mxu0 0
        %788 = vmatpush2.bf16.msra.mxu0 0
        %789 = vmatprep.subr.bf16.mxu0 0
        %790 = vmatpush2.bf16.msra.mxu0 0
        %791 = vmatprep.subr.bf16.mxu0 0
        %792 = vmatpush2.bf16.msra.mxu0 0
        %793 = vmatprep.subr.bf16.mxu0 0
        %794 = vmatpush2.bf16.msra.mxu0 0
        %795 = vmatprep.subr.bf16.mxu0 0
        %796 = vmatpush2.bf16.msra.mxu0 0
        %797 = vmatprep.subr.bf16.mxu0 0
        %798 = vmatpush2.bf16.msra.mxu0 0
        %799 = vmatprep.subr.bf16.mxu0 0
        %800 = vmatpush2.bf16.msra.mxu0 0
        %801 = vmatprep.mubr.bf16.mxu0 0
        %802 = vmatmul.mubr.bf16.gmra.mxu0 %v764
        %v803 = vpop.f32.mrf.mxu0
        %v804 = vadd.f32 0.0, %v803
        %v805 = vpop.f32.mrf.mxu0
        %v806 = vpop.f32.mrf.mxu0
        %v807 = vpop.f32.mrf.mxu0
        %808 = vdwg.mxu0
        %809 = vrot.lane.b32.xlu0 %v461, 96
        %v810 = vpop.permute.xlu0 %809
        %v812 = vsel %vm466, %v710, 0
        %v815 = vsel %vm717, %v810, 0
        %817 = vmatprep.subr.bf16.mxu0 0
        %818 = vmatpush1.bf16.msra.mxu0 0
        %819 = vmatprep.subr.bf16.mxu0 0
        %820 = vmatpush1.bf16.msra.mxu0 0
        %821 = vmatprep.subr.bf16.mxu0 0
        %822 = vmatpush1.bf16.msra.mxu0 0
        %823 = vmatprep.subr.bf16.mxu0 0
        %824 = vmatpush1.bf16.msra.mxu0 0
        %825 = vmatprep.subr.bf16.mxu0 0
        %826 = vmatpush1.bf16.msra.mxu0 0
        %827 = vmatprep.subr.bf16.mxu0 0
        %828 = vmatpush1.bf16.msra.mxu0 0
        %829 = vmatprep.subr.bf16.mxu0 0
        %830 = vmatpush1.bf16.msra.mxu0 0
        %831 = vmatprep.subr.bf16.mxu0 0
        %832 = vmatpush1.bf16.msra.mxu0 %v815
        %833 = vmatprep.subr.bf16.mxu0 0
        %834 = vmatpush2.bf16.msra.mxu0 0
        %835 = vmatprep.subr.bf16.mxu0 0
        %836 = vmatpush2.bf16.msra.mxu0 0
        %837 = vmatprep.subr.bf16.mxu0 0
        %838 = vmatpush2.bf16.msra.mxu0 0
        %839 = vmatprep.subr.bf16.mxu0 0
        %840 = vmatpush2.bf16.msra.mxu0 0
        %841 = vmatprep.subr.bf16.mxu0 0
        %842 = vmatpush2.bf16.msra.mxu0 0
        %843 = vmatprep.subr.bf16.mxu0 0
        %844 = vmatpush2.bf16.msra.mxu0 0
        %845 = vmatprep.subr.bf16.mxu0 0
        %846 = vmatpush2.bf16.msra.mxu0 0
        %847 = vmatprep.subr.bf16.mxu0 0
        %848 = vmatpush2.bf16.msra.mxu0 0
        %849 = vmatprep.mubr.bf16.mxu0 0
        %850 = vmatmul.mubr.bf16.gmra.mxu0 %v812
        %v851 = vpop.f32.mrf.mxu0
        %v852 = vadd.f32 0.0, %v851
        %v853 = vpop.f32.mrf.mxu0
        %v854 = vpop.f32.mrf.mxu0
        %v855 = vpop.f32.mrf.mxu0
        %856 = vdwg.mxu0
        %857 = vrot.lane.b32.xlu0 %v462, 96
        %v858 = vpop.permute.xlu0 %857
        %v860 = vsel %vm466, %v711, 0
        %v863 = vsel %vm717, %v858, 0
        %865 = vmatprep.subr.bf16.mxu0 0
        %866 = vmatpush1.bf16.msra.mxu0 0
        %867 = vmatprep.subr.bf16.mxu0 0
        %868 = vmatpush1.bf16.msra.mxu0 0
        %869 = vmatprep.subr.bf16.mxu0 0
        %870 = vmatpush1.bf16.msra.mxu0 0
        %871 = vmatprep.subr.bf16.mxu0 0
        %872 = vmatpush1.bf16.msra.mxu0 0
        %873 = vmatprep.subr.bf16.mxu0 0
        %874 = vmatpush1.bf16.msra.mxu0 0
        %875 = vmatprep.subr.bf16.mxu0 0
        %876 = vmatpush1.bf16.msra.mxu0 0
        %877 = vmatprep.subr.bf16.mxu0 0
        %878 = vmatpush1.bf16.msra.mxu0 0
        %879 = vmatprep.subr.bf16.mxu0 0
        %880 = vmatpush1.bf16.msra.mxu0 %v863
        %881 = vmatprep.subr.bf16.mxu0 0
        %882 = vmatpush2.bf16.msra.mxu0 0
        %883 = vmatprep.subr.bf16.mxu0 0
        %884 = vmatpush2.bf16.msra.mxu0 0
        %885 = vmatprep.subr.bf16.mxu0 0
        %886 = vmatpush2.bf16.msra.mxu0 0
        %887 = vmatprep.subr.bf16.mxu0 0
        %888 = vmatpush2.bf16.msra.mxu0 0
        %889 = vmatprep.subr.bf16.mxu0 0
        %890 = vmatpush2.bf16.msra.mxu0 0
        %891 = vmatprep.subr.bf16.mxu0 0
        %892 = vmatpush2.bf16.msra.mxu0 0
        %893 = vmatprep.subr.bf16.mxu0 0
        %894 = vmatpush2.bf16.msra.mxu0 0
        %895 = vmatprep.subr.bf16.mxu0 0
        %896 = vmatpush2.bf16.msra.mxu0 0
        %897 = vmatprep.mubr.bf16.mxu0 0
        %898 = vmatmul.mubr.bf16.gmra.mxu0 %v860
        %v899 = vpop.f32.mrf.mxu0
        %v900 = vadd.f32 0.0, %v899
        %v901 = vpop.f32.mrf.mxu0
        %v902 = vpop.f32.mrf.mxu0
        %v903 = vpop.f32.mrf.mxu0
        %904 = vdwg.mxu0
        %905 = vrot.lane.b32.xlu0 %v459, 120
        %v906 = vpop.permute.xlu0 %905
        %907 = vrot.lane.b32.xlu0 %v459, 104
        %v908 = vpop.permute.xlu0 %907
        %v910 = vsel %vm466, %v906, 0
        %v913 = vsel %vm466, %v908, 0
        %915 = vmatprep.subr.bf16.mxu0 0
        %916 = vmatpush1.bf16.xpose.msra.mxu0 0
        %917 = vmatprep.subr.bf16.mxu0 0
        %918 = vmatpush1.bf16.xpose.msra.mxu0 0
        %919 = vmatprep.subr.bf16.mxu0 0
        %920 = vmatpush1.bf16.xpose.msra.mxu0 0
        %921 = vmatprep.subr.bf16.mxu0 0
        %922 = vmatpush1.bf16.xpose.msra.mxu0 0
        %923 = vmatprep.subr.bf16.mxu0 0
        %924 = vmatpush1.bf16.xpose.msra.mxu0 0
        %925 = vmatprep.subr.bf16.mxu0 0
        %926 = vmatpush1.bf16.xpose.msra.mxu0 0
        %927 = vmatprep.subr.bf16.mxu0 0
        %928 = vmatpush1.bf16.xpose.msra.mxu0 0
        %929 = vmatprep.subr.bf16.mxu0 0
        %930 = vmatpush1.bf16.xpose.msra.mxu0 %v913
        %931 = vmatprep.subr.bf16.mxu0 0
        %932 = vmatpush2.bf16.xpose.msra.mxu0 0
        %933 = vmatprep.subr.bf16.mxu0 0
        %934 = vmatpush2.bf16.xpose.msra.mxu0 0
        %935 = vmatprep.subr.bf16.mxu0 0
        %936 = vmatpush2.bf16.xpose.msra.mxu0 0
        %937 = vmatprep.subr.bf16.mxu0 0
        %938 = vmatpush2.bf16.xpose.msra.mxu0 0
        %939 = vmatprep.subr.bf16.mxu0 0
        %940 = vmatpush2.bf16.xpose.msra.mxu0 0
        %941 = vmatprep.subr.bf16.mxu0 0
        %942 = vmatpush2.bf16.xpose.msra.mxu0 0
        %943 = vmatprep.subr.bf16.mxu0 0
        %944 = vmatpush2.bf16.xpose.msra.mxu0 0
        %945 = vmatprep.subr.bf16.mxu0 0
        %946 = vmatpush2.bf16.xpose.msra.mxu0 0
        %947 = vmatprep.mubr.bf16.mxu0 0
        %948 = vmatmul.mubr.bf16.gmra.mxu0 %v910
        %v949 = vpop.f32.mrf.mxu0
        %v950 = vadd.f32 0.0, %v949
        %v951 = vpop.f32.mrf.mxu0
        %v952 = vpop.f32.mrf.mxu0
        %v953 = vpop.f32.mrf.mxu0
        %954 = vdwg.mxu0
        %955 = vrot.lane.b32.xlu0 %v460, 120
        %v956 = vpop.permute.xlu0 %955
        %957 = vrot.lane.b32.xlu0 %v460, 104
        %v958 = vpop.permute.xlu0 %957
        %v960 = vsel %vm466, %v956, 0
        %v963 = vsel %vm466, %v958, 0
        %965 = vmatprep.subr.bf16.mxu0 0
        %966 = vmatpush1.bf16.xpose.msra.mxu0 0
        %967 = vmatprep.subr.bf16.mxu0 0
        %968 = vmatpush1.bf16.xpose.msra.mxu0 0
        %969 = vmatprep.subr.bf16.mxu0 0
        %970 = vmatpush1.bf16.xpose.msra.mxu0 0
        %971 = vmatprep.subr.bf16.mxu0 0
        %972 = vmatpush1.bf16.xpose.msra.mxu0 0
        %973 = vmatprep.subr.bf16.mxu0 0
        %974 = vmatpush1.bf16.xpose.msra.mxu0 0
        %975 = vmatprep.subr.bf16.mxu0 0
        %976 = vmatpush1.bf16.xpose.msra.mxu0 0
        %977 = vmatprep.subr.bf16.mxu0 0
        %978 = vmatpush1.bf16.xpose.msra.mxu0 0
        %979 = vmatprep.subr.bf16.mxu0 0
        %980 = vmatpush1.bf16.xpose.msra.mxu0 %v963
        %981 = vmatprep.subr.bf16.mxu0 0
        %982 = vmatpush2.bf16.xpose.msra.mxu0 0
        %983 = vmatprep.subr.bf16.mxu0 0
        %984 = vmatpush2.bf16.xpose.msra.mxu0 0
        %985 = vmatprep.subr.bf16.mxu0 0
        %986 = vmatpush2.bf16.xpose.msra.mxu0 0
        %987 = vmatprep.subr.bf16.mxu0 0
        %988 = vmatpush2.bf16.xpose.msra.mxu0 0
        %989 = vmatprep.subr.bf16.mxu0 0
        %990 = vmatpush2.bf16.xpose.msra.mxu0 0
        %991 = vmatprep.subr.bf16.mxu0 0
        %992 = vmatpush2.bf16.xpose.msra.mxu0 0
        %993 = vmatprep.subr.bf16.mxu0 0
        %994 = vmatpush2.bf16.xpose.msra.mxu0 0
        %995 = vmatprep.subr.bf16.mxu0 0
        %996 = vmatpush2.bf16.xpose.msra.mxu0 0
        %997 = vmatprep.mubr.bf16.mxu0 0
        %998 = vmatmul.mubr.bf16.gmra.mxu0 %v960
        %v999 = vpop.f32.mrf.mxu0
        %v1000 = vadd.f32 0.0, %v999
        %v1001 = vpop.f32.mrf.mxu0
        %v1002 = vpop.f32.mrf.mxu0
        %v1003 = vpop.f32.mrf.mxu0
        %1004 = vdwg.mxu0
        %1005 = vrot.lane.b32.xlu0 %v461, 120
        %v1006 = vpop.permute.xlu0 %1005
        %1007 = vrot.lane.b32.xlu0 %v461, 104
        %v1008 = vpop.permute.xlu0 %1007
        %v1010 = vsel %vm466, %v1006, 0
        %v1013 = vsel %vm466, %v1008, 0
        %1015 = vmatprep.subr.bf16.mxu0 0
        %1016 = vmatpush1.bf16.xpose.msra.mxu0 0
        %1017 = vmatprep.subr.bf16.mxu0 0
        %1018 = vmatpush1.bf16.xpose.msra.mxu0 0
        %1019 = vmatprep.subr.bf16.mxu0 0
        %1020 = vmatpush1.bf16.xpose.msra.mxu0 0
        %1021 = vmatprep.subr.bf16.mxu0 0
        %1022 = vmatpush1.bf16.xpose.msra.mxu0 0
        %1023 = vmatprep.subr.bf16.mxu0 0
        %1024 = vmatpush1.bf16.xpose.msra.mxu0 0
        %1025 = vmatprep.subr.bf16.mxu0 0
        %1026 = vmatpush1.bf16.xpose.msra.mxu0 0
        %1027 = vmatprep.subr.bf16.mxu0 0
        %1028 = vmatpush1.bf16.xpose.msra.mxu0 0
        %1029 = vmatprep.subr.bf16.mxu0 0
        %1030 = vmatpush1.bf16.xpose.msra.mxu0 %v1013
        %1031 = vmatprep.subr.bf16.mxu0 0
        %1032 = vmatpush2.bf16.xpose.msra.mxu0 0
        %1033 = vmatprep.subr.bf16.mxu0 0
        %1034 = vmatpush2.bf16.xpose.msra.mxu0 0
        %1035 = vmatprep.subr.bf16.mxu0 0
        %1036 = vmatpush2.bf16.xpose.msra.mxu0 0
        %1037 = vmatprep.subr.bf16.mxu0 0
        %1038 = vmatpush2.bf16.xpose.msra.mxu0 0
        %1039 = vmatprep.subr.bf16.mxu0 0
        %1040 = vmatpush2.bf16.xpose.msra.mxu0 0
        %1041 = vmatprep.subr.bf16.mxu0 0
        %1042 = vmatpush2.bf16.xpose.msra.mxu0 0
        %1043 = vmatprep.subr.bf16.mxu0 0
        %1044 = vmatpush2.bf16.xpose.msra.mxu0 0
        %1045 = vmatprep.subr.bf16.mxu0 0
        %1046 = vmatpush2.bf16.xpose.msra.mxu0 0
        %1047 = vmatprep.mubr.bf16.mxu0 0
        %1048 = vmatmul.mubr.bf16.gmra.mxu0 %v1010
        %v1049 = vpop.f32.mrf.mxu0
        %v1050 = vadd.f32 0.0, %v1049
        %v1051 = vpop.f32.mrf.mxu0
        %v1052 = vpop.f32.mrf.mxu0
        %v1053 = vpop.f32.mrf.mxu0
        %1054 = vdwg.mxu0
        %1055 = vrot.lane.b32.xlu0 %v462, 120
        %v1056 = vpop.permute.xlu0 %1055
        %1057 = vrot.lane.b32.xlu0 %v462, 104
        %v1058 = vpop.permute.xlu0 %1057
        %v1060 = vsel %vm466, %v1056, 0
        %v1063 = vsel %vm466, %v1058, 0
        %1065 = vmatprep.subr.bf16.mxu0 0
        %1066 = vmatpush1.bf16.xpose.msra.mxu0 0
        %1067 = vmatprep.subr.bf16.mxu0 0
        %1068 = vmatpush1.bf16.xpose.msra.mxu0 0
        %1069 = vmatprep.subr.bf16.mxu0 0
        %1070 = vmatpush1.bf16.xpose.msra.mxu0 0
        %1071 = vmatprep.subr.bf16.mxu0 0
        %1072 = vmatpush1.bf16.xpose.msra.mxu0 0
        %1073 = vmatprep.subr.bf16.mxu0 0
        %1074 = vmatpush1.bf16.xpose.msra.mxu0 0
        %1075 = vmatprep.subr.bf16.mxu0 0
        %1076 = vmatpush1.bf16.xpose.msra.mxu0 0
        %1077 = vmatprep.subr.bf16.mxu0 0
        %1078 = vmatpush1.bf16.xpose.msra.mxu0 0
        %1079 = vmatprep.subr.bf16.mxu0 0
        %1080 = vmatpush1.bf16.xpose.msra.mxu0 %v1063
        %1081 = vmatprep.subr.bf16.mxu0 0
        %1082 = vmatpush2.bf16.xpose.msra.mxu0 0
        %1083 = vmatprep.subr.bf16.mxu0 0
        %1084 = vmatpush2.bf16.xpose.msra.mxu0 0
        %1085 = vmatprep.subr.bf16.mxu0 0
        %1086 = vmatpush2.bf16.xpose.msra.mxu0 0
        %1087 = vmatprep.subr.bf16.mxu0 0
        %1088 = vmatpush2.bf16.xpose.msra.mxu0 0
        %1089 = vmatprep.subr.bf16.mxu0 0
        %1090 = vmatpush2.bf16.xpose.msra.mxu0 0
        %1091 = vmatprep.subr.bf16.mxu0 0
        %1092 = vmatpush2.bf16.xpose.msra.mxu0 0
        %1093 = vmatprep.subr.bf16.mxu0 0
        %1094 = vmatpush2.bf16.xpose.msra.mxu0 0
        %1095 = vmatprep.subr.bf16.mxu0 0
        %1096 = vmatpush2.bf16.xpose.msra.mxu0 0
        %1097 = vmatprep.mubr.bf16.mxu0 0
        %1098 = vmatmul.mubr.bf16.gmra.mxu0 %v1060
        %v1099 = vpop.f32.mrf.mxu0
        %v1100 = vadd.f32 0.0, %v1099
        %v1101 = vpop.f32.mrf.mxu0
        %v1102 = vpop.f32.mrf.mxu0
        %v1103 = vpop.f32.mrf.mxu0
        %1104 = vdwg.mxu0
        %v1105 = vmul.f32 %v950, 0.35355338
        %v1106 = vmul.f32 %v1000, 0.35355338
        %v1107 = vmul.f32 %v1050, 0.35355338
        %v1108 = vmul.f32 %v1100, 0.35355338
        %v1109 = vsel %vm466, %v1105, -inf
        %1110 = vmax.xlane.f32.xlu0 %v1109
        %v1111 = vpop.xlane.xlu0 %1110
        %v1112 = vsel %vm466, %v1106, -inf
        %1113 = vmax.xlane.f32.xlu0 %v1112
        %v1114 = vpop.xlane.xlu0 %1113
        %v1115 = vsel %vm466, %v1107, -inf
        %1116 = vmax.xlane.f32.xlu0 %v1115
        %v1117 = vpop.xlane.xlu0 %1116
        %v1118 = vsel %vm466, %v1108, -inf
        %1119 = vmax.xlane.f32.xlu0 %v1118
        %v1120 = vpop.xlane.xlu0 %1119
        %v1121 = vsub.f32 %v1105, %v1111
        %v1122 = vsub.f32 %v1106, %v1114
        %v1123 = vsub.f32 %v1107, %v1117
        %v1124 = vsub.f32 %v1108, %v1120
        %v1125 = vmul.f32 %v1121, 1.442695
        %v1126 = vpow.pop %v1125
        %v1127 = vmul.f32 %v1122, 1.442695
        %v1128 = vpow.pop %v1127
        %v1129 = vmul.f32 %v1123, 1.442695
        %v1130 = vpow.pop %v1129
        %v1131 = vmul.f32 %v1124, 1.442695
        %v1132 = vpow.pop %v1131
        %v1133 = vsel %vm466, %v1126, 0.0
        %1134 = vadd.xlane.f32.xlu0 %v1133
        %v1135 = vpop.xlane.xlu0 %1134
        %v1136 = vsel %vm466, %v1128, 0.0
        %1137 = vadd.xlane.f32.xlu0 %v1136
        %v1138 = vpop.xlane.xlu0 %1137
        %v1139 = vsel %vm466, %v1130, 0.0
        %1140 = vadd.xlane.f32.xlu0 %v1139
        %v1141 = vpop.xlane.xlu0 %1140
        %v1142 = vsel %vm466, %v1132, 0.0
        %1143 = vadd.xlane.f32.xlu0 %v1142
        %v1144 = vpop.xlane.xlu0 %1143
        %v1145 = vrcp.pop %v1135
        %v1146 = vrcp.pop %v1138
        %v1147 = vrcp.pop %v1141
        %v1148 = vrcp.pop %v1144
        %v1149 = vmul.f32 %v1126, %v1145
        %v1150 = vmul.f32 %v1128, %v1146
        %v1151 = vmul.f32 %v1130, %v1147
        %v1152 = vmul.f32 %v1132, %v1148
        %v1153 = vpack.c.bf16 %v1149, %v1149
        %v1154 = vpack.c.bf16 %v1150, %v1150
        %v1155 = vpack.c.bf16 %v1151, %v1151
        %v1156 = vpack.c.bf16 %v1152, %v1152
        %1157 = vrot.lane.b32.xlu0 %v459, 88
        %v1158 = vpop.permute.xlu0 %1157
        %v1160 = vsel %vm466, %v1153, 0
        %v1163 = vsel %vm717, %v1158, 0
        %1165 = vmatprep.subr.bf16.mxu0 0
        %1166 = vmatpush1.bf16.msra.mxu0 0
        %1167 = vmatprep.subr.bf16.mxu0 0
        %1168 = vmatpush1.bf16.msra.mxu0 0
        %1169 = vmatprep.subr.bf16.mxu0 0
        %1170 = vmatpush1.bf16.msra.mxu0 0
        %1171 = vmatprep.subr.bf16.mxu0 0
        %1172 = vmatpush1.bf16.msra.mxu0 0
        %1173 = vmatprep.subr.bf16.mxu0 0
        %1174 = vmatpush1.bf16.msra.mxu0 0
        %1175 = vmatprep.subr.bf16.mxu0 0
        %1176 = vmatpush1.bf16.msra.mxu0 0
        %1177 = vmatprep.subr.bf16.mxu0 0
        %1178 = vmatpush1.bf16.msra.mxu0 0
        %1179 = vmatprep.subr.bf16.mxu0 0
        %1180 = vmatpush1.bf16.msra.mxu0 %v1163
        %1181 = vmatprep.subr.bf16.mxu0 0
        %1182 = vmatpush2.bf16.msra.mxu0 0
        %1183 = vmatprep.subr.bf16.mxu0 0
        %1184 = vmatpush2.bf16.msra.mxu0 0
        %1185 = vmatprep.subr.bf16.mxu0 0
        %1186 = vmatpush2.bf16.msra.mxu0 0
        %1187 = vmatprep.subr.bf16.mxu0 0
        %1188 = vmatpush2.bf16.msra.mxu0 0
        %1189 = vmatprep.subr.bf16.mxu0 0
        %1190 = vmatpush2.bf16.msra.mxu0 0
        %1191 = vmatprep.subr.bf16.mxu0 0
        %1192 = vmatpush2.bf16.msra.mxu0 0
        %1193 = vmatprep.subr.bf16.mxu0 0
        %1194 = vmatpush2.bf16.msra.mxu0 0
        %1195 = vmatprep.subr.bf16.mxu0 0
        %1196 = vmatpush2.bf16.msra.mxu0 0
        %1197 = vmatprep.mubr.bf16.mxu0 0
        %1198 = vmatmul.mubr.bf16.gmra.mxu0 %v1160
        %v1199 = vpop.f32.mrf.mxu0
        %v1200 = vadd.f32 0.0, %v1199
        %v1201 = vpop.f32.mrf.mxu0
        %v1202 = vpop.f32.mrf.mxu0
        %v1203 = vpop.f32.mrf.mxu0
        %1204 = vdwg.mxu0
        %1205 = vrot.lane.b32.xlu0 %v460, 88
        %v1206 = vpop.permute.xlu0 %1205
        %v1208 = vsel %vm466, %v1154, 0
        %v1211 = vsel %vm717, %v1206, 0
        %1213 = vmatprep.subr.bf16.mxu0 0
        %1214 = vmatpush1.bf16.msra.mxu0 0
        %1215 = vmatprep.subr.bf16.mxu0 0
        %1216 = vmatpush1.bf16.msra.mxu0 0
        %1217 = vmatprep.subr.bf16.mxu0 0
        %1218 = vmatpush1.bf16.msra.mxu0 0
        %1219 = vmatprep.subr.bf16.mxu0 0
        %1220 = vmatpush1.bf16.msra.mxu0 0
        %1221 = vmatprep.subr.bf16.mxu0 0
        %1222 = vmatpush1.bf16.msra.mxu0 0
        %1223 = vmatprep.subr.bf16.mxu0 0
        %1224 = vmatpush1.bf16.msra.mxu0 0
        %1225 = vmatprep.subr.bf16.mxu0 0
        %1226 = vmatpush1.bf16.msra.mxu0 0
        %1227 = vmatprep.subr.bf16.mxu0 0
        %1228 = vmatpush1.bf16.msra.mxu0 %v1211
        %1229 = vmatprep.subr.bf16.mxu0 0
        %1230 = vmatpush2.bf16.msra.mxu0 0
        %1231 = vmatprep.subr.bf16.mxu0 0
        %1232 = vmatpush2.bf16.msra.mxu0 0
        %1233 = vmatprep.subr.bf16.mxu0 0
        %1234 = vmatpush2.bf16.msra.mxu0 0
        %1235 = vmatprep.subr.bf16.mxu0 0
        %1236 = vmatpush2.bf16.msra.mxu0 0
        %1237 = vmatprep.subr.bf16.mxu0 0
        %1238 = vmatpush2.bf16.msra.mxu0 0
        %1239 = vmatprep.subr.bf16.mxu0 0
        %1240 = vmatpush2.bf16.msra.mxu0 0
        %1241 = vmatprep.subr.bf16.mxu0 0
        %1242 = vmatpush2.bf16.msra.mxu0 0
        %1243 = vmatprep.subr.bf16.mxu0 0
        %1244 = vmatpush2.bf16.msra.mxu0 0
        %1245 = vmatprep.mubr.bf16.mxu0 0
        %1246 = vmatmul.mubr.bf16.gmra.mxu0 %v1208
        %v1247 = vpop.f32.mrf.mxu0
        %v1248 = vadd.f32 0.0, %v1247
        %v1249 = vpop.f32.mrf.mxu0
        %v1250 = vpop.f32.mrf.mxu0
        %v1251 = vpop.f32.mrf.mxu0
        %1252 = vdwg.mxu0
        %1253 = vrot.lane.b32.xlu0 %v461, 88
        %v1254 = vpop.permute.xlu0 %1253
        %v1256 = vsel %vm466, %v1155, 0
        %v1259 = vsel %vm717, %v1254, 0
        %1261 = vmatprep.subr.bf16.mxu0 0
        %1262 = vmatpush1.bf16.msra.mxu0 0
        %1263 = vmatprep.subr.bf16.mxu0 0
        %1264 = vmatpush1.bf16.msra.mxu0 0
        %1265 = vmatprep.subr.bf16.mxu0 0
        %1266 = vmatpush1.bf16.msra.mxu0 0
        %1267 = vmatprep.subr.bf16.mxu0 0
        %1268 = vmatpush1.bf16.msra.mxu0 0
        %1269 = vmatprep.subr.bf16.mxu0 0
        %1270 = vmatpush1.bf16.msra.mxu0 0
        %1271 = vmatprep.subr.bf16.mxu0 0
        %1272 = vmatpush1.bf16.msra.mxu0 0
        %1273 = vmatprep.subr.bf16.mxu0 0
        %1274 = vmatpush1.bf16.msra.mxu0 0
        %1275 = vmatprep.subr.bf16.mxu0 0
        %1276 = vmatpush1.bf16.msra.mxu0 %v1259
        %1277 = vmatprep.subr.bf16.mxu0 0
        %1278 = vmatpush2.bf16.msra.mxu0 0
        %1279 = vmatprep.subr.bf16.mxu0 0
        %1280 = vmatpush2.bf16.msra.mxu0 0
        %1281 = vmatprep.subr.bf16.mxu0 0
        %1282 = vmatpush2.bf16.msra.mxu0 0
        %1283 = vmatprep.subr.bf16.mxu0 0
        %1284 = vmatpush2.bf16.msra.mxu0 0
        %1285 = vmatprep.subr.bf16.mxu0 0
        %1286 = vmatpush2.bf16.msra.mxu0 0
        %1287 = vmatprep.subr.bf16.mxu0 0
        %1288 = vmatpush2.bf16.msra.mxu0 0
        %1289 = vmatprep.subr.bf16.mxu0 0
        %1290 = vmatpush2.bf16.msra.mxu0 0
        %1291 = vmatprep.subr.bf16.mxu0 0
        %1292 = vmatpush2.bf16.msra.mxu0 0
        %1293 = vmatprep.mubr.bf16.mxu0 0
        %1294 = vmatmul.mubr.bf16.gmra.mxu0 %v1256
        %v1295 = vpop.f32.mrf.mxu0
        %v1296 = vadd.f32 0.0, %v1295
        %v1297 = vpop.f32.mrf.mxu0
        %v1298 = vpop.f32.mrf.mxu0
        %v1299 = vpop.f32.mrf.mxu0
        %1300 = vdwg.mxu0
        %1301 = vrot.lane.b32.xlu0 %v462, 88
        %v1302 = vpop.permute.xlu0 %1301
        %v1304 = vsel %vm466, %v1156, 0
        %v1307 = vsel %vm717, %v1302, 0
        %1309 = vmatprep.subr.bf16.mxu0 0
        %1310 = vmatpush1.bf16.msra.mxu0 0
        %1311 = vmatprep.subr.bf16.mxu0 0
        %1312 = vmatpush1.bf16.msra.mxu0 0
        %1313 = vmatprep.subr.bf16.mxu0 0
        %1314 = vmatpush1.bf16.msra.mxu0 0
        %1315 = vmatprep.subr.bf16.mxu0 0
        %1316 = vmatpush1.bf16.msra.mxu0 0
        %1317 = vmatprep.subr.bf16.mxu0 0
        %1318 = vmatpush1.bf16.msra.mxu0 0
        %1319 = vmatprep.subr.bf16.mxu0 0
        %1320 = vmatpush1.bf16.msra.mxu0 0
        %1321 = vmatprep.subr.bf16.mxu0 0
        %1322 = vmatpush1.bf16.msra.mxu0 0
        %1323 = vmatprep.subr.bf16.mxu0 0
        %1324 = vmatpush1.bf16.msra.mxu0 %v1307
        %1325 = vmatprep.subr.bf16.mxu0 0
        %1326 = vmatpush2.bf16.msra.mxu0 0
        %1327 = vmatprep.subr.bf16.mxu0 0
        %1328 = vmatpush2.bf16.msra.mxu0 0
        %1329 = vmatprep.subr.bf16.mxu0 0
        %1330 = vmatpush2.bf16.msra.mxu0 0
        %1331 = vmatprep.subr.bf16.mxu0 0
        %1332 = vmatpush2.bf16.msra.mxu0 0
        %1333 = vmatprep.subr.bf16.mxu0 0
        %1334 = vmatpush2.bf16.msra.mxu0 0
        %1335 = vmatprep.subr.bf16.mxu0 0
        %1336 = vmatpush2.bf16.msra.mxu0 0
        %1337 = vmatprep.subr.bf16.mxu0 0
        %1338 = vmatpush2.bf16.msra.mxu0 0
        %1339 = vmatprep.subr.bf16.mxu0 0
        %1340 = vmatpush2.bf16.msra.mxu0 0
        %1341 = vmatprep.mubr.bf16.mxu0 0
        %1342 = vmatmul.mubr.bf16.gmra.mxu0 %v1304
        %v1343 = vpop.f32.mrf.mxu0
        %v1344 = vadd.f32 0.0, %v1343
        %v1345 = vpop.f32.mrf.mxu0
        %v1346 = vpop.f32.mrf.mxu0
        %v1347 = vpop.f32.mrf.mxu0
        %1348 = vdwg.mxu0
        %1353 = vrot.lane.b32.xlu0 %v1200, 8
        %v1354 = vpop.permute.xlu0 %1353
        %1355 = vrot.lane.b32.xlu0 %v1248, 8
        %v1356 = vpop.permute.xlu0 %1355
        %1357 = vrot.lane.b32.xlu0 %v1296, 8
        %v1358 = vpop.permute.xlu0 %1357
        %1359 = vrot.lane.b32.xlu0 %v1344, 8
        %v1360 = vpop.permute.xlu0 %1359
        %v1365 = vsel %vm466, %v756, %v1354
        %v1366 = vsel %vm466, %v804, %v1356
        %v1367 = vsel %vm466, %v852, %v1358
        %v1368 = vsel %vm466, %v900, %v1360
        %v1369 = vpack.c.bf16 %v1366, %v1365
        %v1370 = vpack.c.bf16 %v1368, %v1367
        %v1371 = vld [vmem:[#allocation2] sm:$0xf]
        %v1372 = vld [vmem:[#allocation2 + $0x4] sm:$0xf]
        %v1373 = vlaneseq
        %v1374 = vshrl.u32 %v1373, 7
        %v1375 = vsub.s32 2, %v1374
        %v1376 = vrot.slane %v315, %v1375
        %v1379 = vunpack.c.l.b16 %v1371
        %v1380 = vunpack.c.l.b16 %v1372
        %v1381 = vpack.c.b16 %v1380, %v1379
        %vm1383 = vcmask 130048
        %v1385 = vsel %vm1383, %v1369, 0
        %v1388 = vsel %vm1383, %v1370, 0
        %1390 = vmatprep.subr.bf16.mxu0 0
        %1391 = vmatpush1.bf16.msra.mxu0 0
        %1392 = vmatprep.subr.bf16.mxu0 0
        %1393 = vmatpush1.bf16.msra.mxu0 0
        %1394 = vmatprep.subr.bf16.mxu0 0
        %1395 = vmatpush1.bf16.msra.mxu0 0
        %1396 = vmatprep.subr.bf16.mxu0 0
        %1397 = vmatpush1.bf16.msra.mxu0 0
        %1398 = vmatprep.subr.bf16.mxu0 0
        %1399 = vmatpush1.bf16.msra.mxu0 0
        %1400 = vmatprep.subr.bf16.mxu0 0
        %1401 = vmatpush1.bf16.msra.mxu0 0
        %1402 = vmatprep.subr.bf16.mxu0 0
        %1403 = vmatpush1.bf16.msra.mxu0 0
        %1404 = vmatprep.subr.bf16.mxu0 0
        %1405 = vmatpush1.bf16.msra.mxu0 %v1381
        %1406 = vmatprep.subr.bf16.mxu0 0
        %1407 = vmatpush2.bf16.msra.mxu0 0
        %1408 = vmatprep.subr.bf16.mxu0 0
        %1409 = vmatpush2.bf16.msra.mxu0 0
        %1410 = vmatprep.subr.bf16.mxu0 0
        %1411 = vmatpush2.bf16.msra.mxu0 0
        %1412 = vmatprep.subr.bf16.mxu0 0
        %1413 = vmatpush2.bf16.msra.mxu0 0
        %1414 = vmatprep.subr.bf16.mxu0 0
        %1415 = vmatpush2.bf16.msra.mxu0 0
        %1416 = vmatprep.subr.bf16.mxu0 0
        %1417 = vmatpush2.bf16.msra.mxu0 0
        %1418 = vmatprep.subr.bf16.mxu0 0
        %1419 = vmatpush2.bf16.msra.mxu0 0
        %1420 = vmatprep.subr.bf16.mxu0 0
        %1421 = vmatpush2.bf16.msra.mxu0 0
        %1422 = vmatprep.mubr.bf16.mxu0 0
        %1423 = vmatmul.mubr.bf16.gmra.mxu0 %v1385
        %v1424 = vpop.f32.mrf.mxu0
        %v1425 = vadd.f32 %v1376, %v1424
        %v1426 = vpop.f32.mrf.mxu0
        %v1427 = vpop.f32.mrf.mxu0
        %v1428 = vadd.f32 %v1376, %v1427
        %v1429 = vpop.f32.mrf.mxu0
        %1430 = vmatprep.mubr.bf16.mxu0 0
        %1431 = vmatmul.mubr.bf16.gmra.mxu0 %v1388
        %v1432 = vpop.f32.mrf.mxu0
        %v1433 = vadd.f32 %v1376, %v1432
        %v1434 = vpop.f32.mrf.mxu0
        %v1435 = vpop.f32.mrf.mxu0
        %v1436 = vadd.f32 %v1376, %v1435
        %v1437 = vpop.f32.mrf.mxu0
        %1438 = vdwg.mxu0
        %v1439 = vadd.f32 %v311, %v1425
        %v1440 = vadd.f32 %v312, %v1428
        %v1441 = vadd.f32 %v313, %v1433
        %v1442 = vadd.f32 %v314, %v1436
        %v1443 = vsel %vm316, %v1439, 0.0
        %1444 = vadd.xlane.f32.xlu0 %v1443
        %v1445 = vpop.xlane.xlu0 %1444
        %v1446 = vsel %vm316, %v1440, 0.0
        %1447 = vadd.xlane.f32.xlu0 %v1446
        %v1448 = vpop.xlane.xlu0 %1447
        %v1449 = vsel %vm316, %v1441, 0.0
        %1450 = vadd.xlane.f32.xlu0 %v1449
        %v1451 = vpop.xlane.xlu0 %1450
        %v1452 = vsel %vm316, %v1442, 0.0
        %1453 = vadd.xlane.f32.xlu0 %v1452
        %v1454 = vpop.xlane.xlu0 %1453
        %v1455 = vmul.f32 %v1445, %v329
        %v1456 = vmul.f32 %v1448, %v329
        %v1457 = vmul.f32 %v1451, %v329
        %v1458 = vmul.f32 %v1454, %v329
        %v1459 = vsub.f32 %v1439, %v1455
        %v1460 = vsub.f32 %v1440, %v1456
        %v1461 = vsub.f32 %v1441, %v1457
        %v1462 = vsub.f32 %v1442, %v1458
        %v1463 = vmul.f32 %v1459, %v1459
        %v1464 = vmul.f32 %v1460, %v1460
        %v1465 = vmul.f32 %v1461, %v1461
        %v1466 = vmul.f32 %v1462, %v1462
        %v1467 = vsel %vm316, %v1463, 0.0
        %1468 = vadd.xlane.f32.xlu0 %v1467
        %v1469 = vpop.xlane.xlu0 %1468
        %v1470 = vsel %vm316, %v1464, 0.0
        %1471 = vadd.xlane.f32.xlu0 %v1470
        %v1472 = vpop.xlane.xlu0 %1471
        %v1473 = vsel %vm316, %v1465, 0.0
        %1474 = vadd.xlane.f32.xlu0 %v1473
        %v1475 = vpop.xlane.xlu0 %1474
        %v1476 = vsel %vm316, %v1466, 0.0
        %1477 = vadd.xlane.f32.xlu0 %v1476
        %v1478 = vpop.xlane.xlu0 %1477
        %v1479 = vmul.f32 %v1469, %v329
        %v1480 = vmul.f32 %v1472, %v329
        %v1481 = vmul.f32 %v1475, %v329
        %v1482 = vmul.f32 %v1478, %v329
        %v1483 = vadd.f32 %v1479, 1e-05
        %v1484 = vadd.f32 %v1480, 1e-05
        %v1485 = vadd.f32 %v1481, 1e-05
        %v1486 = vadd.f32 %v1482, 1e-05
        %v1487 = vrsqrt.pop %v1483
        %v1488 = vrsqrt.pop %v1484
        %v1489 = vrsqrt.pop %v1485
        %v1490 = vrsqrt.pop %v1486
        %v1491 = vmul.f32 %v1459, %v1487
        %v1492 = vmul.f32 %v1460, %v1488
        %v1493 = vmul.f32 %v1461, %v1489
        %v1494 = vmul.f32 %v1462, %v1490
        %v1495 = vlaneseq
        %v1496 = vshrl.u32 %v1495, 7
        %v1497 = vsub.s32 3, %v1496
        %v1498 = vrot.slane %v315, %v1497
        %v1499 = vmul.f32 %v1491, %v1498
        %v1500 = vmul.f32 %v1492, %v1498
        %v1501 = vmul.f32 %v1493, %v1498
        %v1502 = vmul.f32 %v1494, %v1498
        %v1503 = vlaneseq
        %v1504 = vshrl.u32 %v1503, 7
        %v1505 = vsub.s32 4, %v1504
        %v1506 = vrot.slane %v315, %v1505
        %v1507 = vadd.f32 %v1499, %v1506
        %v1508 = vadd.f32 %v1500, %v1506
        %v1509 = vadd.f32 %v1501, %v1506
        %v1510 = vadd.f32 %v1502, %v1506
        %v1511 = vpack.c.bf16 %v1508, %v1507
        %v1512 = vpack.c.bf16 %v1510, %v1509
        %v1513 = vld [vmem:[#allocation5] sm:$0xf]
        %v1514 = vld [vmem:[#allocation5 + $0x4] sm:$0xf]
        %v1515 = vld [vmem:[#allocation5 + $0x8] sm:$0xf]
        %v1516 = vld [vmem:[#allocation5 + $0xc] sm:$0xf]
        %v1517 = vld [vmem:[%s2] sm:$0x1]
        %v1518 = vlaneseq
        %v1519 = vshrl.u32 %v1518, 7
        %v1520 = vsub.s32 0, %v1519
        %v1521 = vrot.slane %v1517, %v1520
        %v1526 = vunpack.c.l.b16 %v1513
        %v1527 = vunpack.c.l.b16 %v1514
        %v1528 = vunpack.c.l.b16 %v1515
        %v1529 = vunpack.c.l.b16 %v1516
        %v1530 = vpack.c.b16 %v1527, %v1526
        %v1531 = vpack.c.b16 %v1529, %v1528
        %v1535 = vsel %vm316, %v1511, 0
        %v1538 = vsel %vm316, %v1512, 0
        %1540 = vmatprep.subr.bf16.mxu0 0
        %1541 = vmatpush1.bf16.msra.mxu0 0
        %1542 = vmatprep.subr.bf16.mxu0 0
        %1543 = vmatpush1.bf16.msra.mxu0 0
        %1544 = vmatprep.subr.bf16.mxu0 0
        %1545 = vmatpush1.bf16.msra.mxu0 0
        %1546 = vmatprep.subr.bf16.mxu0 0
        %1547 = vmatpush1.bf16.msra.mxu0 0
        %1548 = vmatprep.subr.bf16.mxu0 0
        %1549 = vmatpush1.bf16.msra.mxu0 0
        %1550 = vmatprep.subr.bf16.mxu0 0
        %1551 = vmatpush1.bf16.msra.mxu0 0
        %1552 = vmatprep.subr.bf16.mxu0 0
        %1553 = vmatpush1.bf16.msra.mxu0 %v1531
        %1554 = vmatprep.subr.bf16.mxu0 0
        %1555 = vmatpush1.bf16.msra.mxu0 %v1530
        %1556 = vmatprep.subr.bf16.mxu0 0
        %1557 = vmatpush2.bf16.msra.mxu0 0
        %1558 = vmatprep.subr.bf16.mxu0 0
        %1559 = vmatpush2.bf16.msra.mxu0 0
        %1560 = vmatprep.subr.bf16.mxu0 0
        %1561 = vmatpush2.bf16.msra.mxu0 0
        %1562 = vmatprep.subr.bf16.mxu0 0
        %1563 = vmatpush2.bf16.msra.mxu0 0
        %1564 = vmatprep.subr.bf16.mxu0 0
        %1565 = vmatpush2.bf16.msra.mxu0 0
        %1566 = vmatprep.subr.bf16.mxu0 0
        %1567 = vmatpush2.bf16.msra.mxu0 0
        %1568 = vmatprep.subr.bf16.mxu0 0
        %1569 = vmatpush2.bf16.msra.mxu0 0
        %1570 = vmatprep.subr.bf16.mxu0 0
        %1571 = vmatpush2.bf16.msra.mxu0 0
        %1572 = vmatprep.mubr.bf16.mxu0 0
        %1573 = vmatmul.mubr.bf16.gmra.mxu0 %v1535
        %v1574 = vpop.f32.mrf.mxu0
        %v1575 = vadd.f32 %v1521, %v1574
        %v1576 = vpop.f32.mrf.mxu0
        %v1577 = vpop.f32.mrf.mxu0
        %v1578 = vadd.f32 %v1521, %v1577
        %v1579 = vpop.f32.mrf.mxu0
        %1580 = vmatprep.mubr.bf16.mxu0 0
        %1581 = vmatmul.mubr.bf16.gmra.mxu0 %v1538
        %v1582 = vpop.f32.mrf.mxu0
        %v1583 = vadd.f32 %v1521, %v1582
        %v1584 = vpop.f32.mrf.mxu0
        %v1585 = vpop.f32.mrf.mxu0
        %v1586 = vadd.f32 %v1521, %v1585
        %v1587 = vpop.f32.mrf.mxu0
        %1588 = vdwg.mxu0
        %v1589 = vxor.u32 %v1575, 2147483648
        %v1590 = vxor.u32 %v1578, 2147483648
        %v1591 = vxor.u32 %v1583, 2147483648
        %v1592 = vxor.u32 %v1586, 2147483648
        %v1593 = vmul.f32 %v1589, 1.442695
        %v1594 = vpow.pop %v1593
        %v1595 = vmul.f32 %v1590, 1.442695
        %v1596 = vpow.pop %v1595
        %v1597 = vmul.f32 %v1591, 1.442695
        %v1598 = vpow.pop %v1597
        %v1599 = vmul.f32 %v1592, 1.442695
        %v1600 = vpow.pop %v1599
        %v1601 = vadd.f32 %v1594, 1.0
        %v1602 = vadd.f32 %v1596, 1.0
        %v1603 = vadd.f32 %v1598, 1.0
        %v1604 = vadd.f32 %v1600, 1.0
        %v1605 = vrcp.pop %v1601
        %v1606 = vmul.f32 1.0, %v1605
        %v1607 = vrcp.pop %v1602
        %v1608 = vmul.f32 1.0, %v1607
        %v1609 = vrcp.pop %v1603
        %v1610 = vmul.f32 1.0, %v1609
        %v1611 = vrcp.pop %v1604
        %v1612 = vmul.f32 1.0, %v1611
        %v1613 = vmul.f32 %v1575, %v1606
        %v1614 = vmul.f32 %v1578, %v1608
        %v1615 = vmul.f32 %v1583, %v1610
        %v1616 = vmul.f32 %v1586, %v1612
        %v1617 = vpack.c.bf16 %v1614, %v1613
        %v1618 = vpack.c.bf16 %v1616, %v1615
        %v1619 = vld [vmem:[%s6] sm:$0xf]
        %v1620 = vld [vmem:[%s6 + $0x4] sm:$0xf]
        %v1621 = vld [vmem:[%s6 + $0x8] sm:$0xf]
        %v1622 = vld [vmem:[%s6 + $0xc] sm:$0xf]
        %v1623 = vld [vmem:[%s6 + $0x10] sm:$0xf]
        %v1624 = vld [vmem:[%s6 + $0x14] sm:$0xf]
        %v1625 = vld [vmem:[%s6 + $0x18] sm:$0xf]
        %v1626 = vld [vmem:[%s6 + $0x1c] sm:$0xf]
        %v1627 = vlaneseq
        %v1628 = vshrl.u32 %v1627, 7
        %v1629 = vsub.s32 5, %v1628
        %v1630 = vrot.slane %v315, %v1629
        %v1639 = vunpack.c.l.b16 %v1619
        %v1640 = vunpack.c.l.b16 %v1620
        %v1641 = vunpack.c.l.b16 %v1621
        %v1642 = vunpack.c.l.b16 %v1622
        %v1643 = vunpack.c.l.b16 %v1623
        %v1644 = vunpack.c.l.b16 %v1624
        %v1645 = vunpack.c.l.b16 %v1625
        %v1646 = vunpack.c.l.b16 %v1626
        %v1647 = vpack.c.b16 %v1640, %v1639
        %v1648 = vpack.c.b16 %v1642, %v1641
        %v1649 = vpack.c.b16 %v1644, %v1643
        %v1650 = vpack.c.b16 %v1646, %v1645
        %vm1655 = vcmask 523264
        %v1657 = vsel %vm1655, %v1617, 0
        %v1660 = vsel %vm1655, %v1618, 0
        %1662 = vmatprep.subr.bf16.mxu0 0
        %1663 = vmatpush1.bf16.msra.mxu0 0
        %1664 = vmatprep.subr.bf16.mxu0 0
        %1665 = vmatpush1.bf16.msra.mxu0 0
        %1666 = vmatprep.subr.bf16.mxu0 0
        %1667 = vmatpush1.bf16.msra.mxu0 0
        %1668 = vmatprep.subr.bf16.mxu0 0
        %1669 = vmatpush1.bf16.msra.mxu0 0
        %1670 = vmatprep.subr.bf16.mxu0 0
        %1671 = vmatpush1.bf16.msra.mxu0 %v1650
        %1672 = vmatprep.subr.bf16.mxu0 0
        %1673 = vmatpush1.bf16.msra.mxu0 %v1649
        %1674 = vmatprep.subr.bf16.mxu0 0
        %1675 = vmatpush1.bf16.msra.mxu0 %v1648
        %1676 = vmatprep.subr.bf16.mxu0 0
        %1677 = vmatpush1.bf16.msra.mxu0 %v1647
        %1678 = vmatprep.subr.bf16.mxu0 0
        %1679 = vmatpush2.bf16.msra.mxu0 0
        %1680 = vmatprep.subr.bf16.mxu0 0
        %1681 = vmatpush2.bf16.msra.mxu0 0
        %1682 = vmatprep.subr.bf16.mxu0 0
        %1683 = vmatpush2.bf16.msra.mxu0 0
        %1684 = vmatprep.subr.bf16.mxu0 0
        %1685 = vmatpush2.bf16.msra.mxu0 0
        %1686 = vmatprep.subr.bf16.mxu0 0
        %1687 = vmatpush2.bf16.msra.mxu0 0
        %1688 = vmatprep.subr.bf16.mxu0 0
        %1689 = vmatpush2.bf16.msra.mxu0 0
        %1690 = vmatprep.subr.bf16.mxu0 0
        %1691 = vmatpush2.bf16.msra.mxu0 0
        %1692 = vmatprep.subr.bf16.mxu0 0
        %1693 = vmatpush2.bf16.msra.mxu0 0
        %1694 = vmatprep.mubr.bf16.mxu0 0
        %1695 = vmatmul.mubr.bf16.gmra.mxu0 %v1657
        %v1696 = vpop.f32.mrf.mxu0
        %v1697 = vadd.f32 %v1630, %v1696
        %v1698 = vpop.f32.mrf.mxu0
        %v1699 = vpop.f32.mrf.mxu0
        %v1700 = vadd.f32 %v1630, %v1699
        %v1701 = vpop.f32.mrf.mxu0
        %1702 = vmatprep.mubr.bf16.mxu0 0
        %1703 = vmatmul.mubr.bf16.gmra.mxu0 %v1660
        %v1704 = vpop.f32.mrf.mxu0
        %v1705 = vadd.f32 %v1630, %v1704
        %v1706 = vpop.f32.mrf.mxu0
        %v1707 = vpop.f32.mrf.mxu0
        %v1708 = vadd.f32 %v1630, %v1707
        %v1709 = vpop.f32.mrf.mxu0
        %1710 = vdwg.mxu0
        %v1711 = vadd.f32 %v1439, %v1697
        %v1712 = vadd.f32 %v1440, %v1700
        %v1713 = vadd.f32 %v1441, %v1705
        %v1714 = vadd.f32 %v1442, %v1708
        %s1715 = scalar_lea.vmem %s1, 8
        %v1716 = vld [vmem:[%s1715] sm:$0x3f]
        %v1717 = vsel %vm316, %v1711, 0.0
        %1718 = vadd.xlane.f32.xlu0 %v1717
        %v1719 = vpop.xlane.xlu0 %1718
        %v1720 = vsel %vm316, %v1712, 0.0
        %1721 = vadd.xlane.f32.xlu0 %v1720
        %v1722 = vpop.xlane.xlu0 %1721
        %v1723 = vsel %vm316, %v1713, 0.0
        %1724 = vadd.xlane.f32.xlu0 %v1723
        %v1725 = vpop.xlane.xlu0 %1724
        %v1726 = vsel %vm316, %v1714, 0.0
        %1727 = vadd.xlane.f32.xlu0 %v1726
        %v1728 = vpop.xlane.xlu0 %1727
        %v1729 = vmul.f32 %v1719, %v329
        %v1730 = vmul.f32 %v1722, %v329
        %v1731 = vmul.f32 %v1725, %v329
        %v1732 = vmul.f32 %v1728, %v329
        %v1733 = vsub.f32 %v1711, %v1729
        %v1734 = vsub.f32 %v1712, %v1730
        %v1735 = vsub.f32 %v1713, %v1731
        %v1736 = vsub.f32 %v1714, %v1732
        %v1737 = vmul.f32 %v1733, %v1733
        %v1738 = vmul.f32 %v1734, %v1734
        %v1739 = vmul.f32 %v1735, %v1735
        %v1740 = vmul.f32 %v1736, %v1736
        %v1741 = vsel %vm316, %v1737, 0.0
        %1742 = vadd.xlane.f32.xlu0 %v1741
        %v1743 = vpop.xlane.xlu0 %1742
        %v1744 = vsel %vm316, %v1738, 0.0
        %1745 = vadd.xlane.f32.xlu0 %v1744
        %v1746 = vpop.xlane.xlu0 %1745
        %v1747 = vsel %vm316, %v1739, 0.0
        %1748 = vadd.xlane.f32.xlu0 %v1747
        %v1749 = vpop.xlane.xlu0 %1748
        %v1750 = vsel %vm316, %v1740, 0.0
        %1751 = vadd.xlane.f32.xlu0 %v1750
        %v1752 = vpop.xlane.xlu0 %1751
        %v1753 = vmul.f32 %v1743, %v329
        %v1754 = vmul.f32 %v1746, %v329
        %v1755 = vmul.f32 %v1749, %v329
        %v1756 = vmul.f32 %v1752, %v329
        %v1757 = vadd.f32 %v1753, 1e-05
        %v1758 = vadd.f32 %v1754, 1e-05
        %v1759 = vadd.f32 %v1755, 1e-05
        %v1760 = vadd.f32 %v1756, 1e-05
        %v1761 = vrsqrt.pop %v1757
        %v1762 = vrsqrt.pop %v1758
        %v1763 = vrsqrt.pop %v1759
        %v1764 = vrsqrt.pop %v1760
        %v1765 = vmul.f32 %v1733, %v1761
        %v1766 = vmul.f32 %v1734, %v1762
        %v1767 = vmul.f32 %v1735, %v1763
        %v1768 = vmul.f32 %v1736, %v1764
        %v1769 = vlaneseq
        %v1770 = vshrl.u32 %v1769, 7
        %v1771 = vsub.s32 0, %v1770
        %v1772 = vrot.slane %v1716, %v1771
        %v1773 = vmul.f32 %v1765, %v1772
        %v1774 = vmul.f32 %v1766, %v1772
        %v1775 = vmul.f32 %v1767, %v1772
        %v1776 = vmul.f32 %v1768, %v1772
        %v1777 = vlaneseq
        %v1778 = vshrl.u32 %v1777, 7
        %v1779 = vsub.s32 1, %v1778
        %v1780 = vrot.slane %v1716, %v1779
        %v1781 = vadd.f32 %v1773, %v1780
        %v1782 = vadd.f32 %v1774, %v1780
        %v1783 = vadd.f32 %v1775, %v1780
        %v1784 = vadd.f32 %v1776, %v1780
        %v1785 = vpack.c.bf16 %v1782, %v1781
        %v1786 = vpack.c.bf16 %v1784, %v1783
        %s1787 = scalar_lea.vmem %s3, 16
        %v1788 = vld [vmem:[%s1787] sm:$0xf]
        %v1789 = vld [vmem:[%s1787 + $0x4] sm:$0xf]
        %v1790 = vld [vmem:[%s1787 + $0x8] sm:$0xf]
        %v1791 = vld [vmem:[%s1787 + $0xc] sm:$0xf]
        %v1796 = vunpack.c.l.b16 %v1788
        %v1797 = vunpack.c.l.b16 %v1789
        %v1798 = vunpack.c.l.b16 %v1790
        %v1799 = vunpack.c.l.b16 %v1791
        %v1800 = vpack.c.b16 %v1797, %v1796
        %v1801 = vpack.c.b16 %v1799, %v1798
        %v1805 = vsel %vm316, %v1785, 0
        %v1808 = vsel %vm316, %v1786, 0
        %1810 = vmatprep.subr.bf16.mxu0 0
        %1811 = vmatpush1.bf16.msra.mxu0 0
        %1812 = vmatprep.subr.bf16.mxu0 0
        %1813 = vmatpush1.bf16.msra.mxu0 0
        %1814 = vmatprep.subr.bf16.mxu0 0
        %1815 = vmatpush1.bf16.msra.mxu0 0
        %1816 = vmatprep.subr.bf16.mxu0 0
        %1817 = vmatpush1.bf16.msra.mxu0 0
        %1818 = vmatprep.subr.bf16.mxu0 0
        %1819 = vmatpush1.bf16.msra.mxu0 0
        %1820 = vmatprep.subr.bf16.mxu0 0
        %1821 = vmatpush1.bf16.msra.mxu0 0
        %1822 = vmatprep.subr.bf16.mxu0 0
        %1823 = vmatpush1.bf16.msra.mxu0 %v1801
        %1824 = vmatprep.subr.bf16.mxu0 0
        %1825 = vmatpush1.bf16.msra.mxu0 %v1800
        %1826 = vmatprep.subr.bf16.mxu0 0
        %1827 = vmatpush2.bf16.msra.mxu0 0
        %1828 = vmatprep.subr.bf16.mxu0 0
        %1829 = vmatpush2.bf16.msra.mxu0 0
        %1830 = vmatprep.subr.bf16.mxu0 0
        %1831 = vmatpush2.bf16.msra.mxu0 0
        %1832 = vmatprep.subr.bf16.mxu0 0
        %1833 = vmatpush2.bf16.msra.mxu0 0
        %1834 = vmatprep.subr.bf16.mxu0 0
        %1835 = vmatpush2.bf16.msra.mxu0 0
        %1836 = vmatprep.subr.bf16.mxu0 0
        %1837 = vmatpush2.bf16.msra.mxu0 0
        %1838 = vmatprep.subr.bf16.mxu0 0
        %1839 = vmatpush2.bf16.msra.mxu0 0
        %1840 = vmatprep.subr.bf16.mxu0 0
        %1841 = vmatpush2.bf16.msra.mxu0 0
        %1842 = vmatprep.mubr.bf16.mxu0 0
        %1843 = vmatmul.mubr.bf16.gmra.mxu0 %v1805
        %v1844 = vpop.f32.mrf.mxu0
        %v1845 = vadd.f32 0.0, %v1844
        %v1846 = vpop.f32.mrf.mxu0
        %v1847 = vpop.f32.mrf.mxu0
        %v1848 = vadd.f32 0.0, %v1847
        %v1849 = vpop.f32.mrf.mxu0
        %1850 = vmatprep.mubr.bf16.mxu0 0
        %1851 = vmatmul.mubr.bf16.gmra.mxu0 %v1808
        %v1852 = vpop.f32.mrf.mxu0
        %v1853 = vadd.f32 0.0, %v1852
        %v1854 = vpop.f32.mrf.mxu0
        %v1855 = vpop.f32.mrf.mxu0
        %v1856 = vadd.f32 0.0, %v1855
        %v1857 = vpop.f32.mrf.mxu0
        %1858 = vdwg.mxu0
        %v1859 = vpack.c.bf16 %v1845, %v1845
        %v1860 = vpack.c.bf16 %v1848, %v1848
        %v1861 = vpack.c.bf16 %v1853, %v1853
        %v1862 = vpack.c.bf16 %v1856, %v1856
        %1864 = vrot.lane.b32.xlu0 %v1859, 112
        %v1865 = vpop.permute.xlu0 %1864
        %v1867 = vsel %vm466, %v1859, 0
        %v1870 = vsel %vm466, %v1865, 0
        %1872 = vmatprep.subr.bf16.mxu0 0
        %1873 = vmatpush1.bf16.xpose.msra.mxu0 0
        %1874 = vmatprep.subr.bf16.mxu0 0
        %1875 = vmatpush1.bf16.xpose.msra.mxu0 0
        %1876 = vmatprep.subr.bf16.mxu0 0
        %1877 = vmatpush1.bf16.xpose.msra.mxu0 0
        %1878 = vmatprep.subr.bf16.mxu0 0
        %1879 = vmatpush1.bf16.xpose.msra.mxu0 0
        %1880 = vmatprep.subr.bf16.mxu0 0
        %1881 = vmatpush1.bf16.xpose.msra.mxu0 0
        %1882 = vmatprep.subr.bf16.mxu0 0
        %1883 = vmatpush1.bf16.xpose.msra.mxu0 0
        %1884 = vmatprep.subr.bf16.mxu0 0
        %1885 = vmatpush1.bf16.xpose.msra.mxu0 0
        %1886 = vmatprep.subr.bf16.mxu0 0
        %1887 = vmatpush1.bf16.xpose.msra.mxu0 %v1870
        %1888 = vmatprep.subr.bf16.mxu0 0
        %1889 = vmatpush2.bf16.xpose.msra.mxu0 0
        %1890 = vmatprep.subr.bf16.mxu0 0
        %1891 = vmatpush2.bf16.xpose.msra.mxu0 0
        %1892 = vmatprep.subr.bf16.mxu0 0
        %1893 = vmatpush2.bf16.xpose.msra.mxu0 0
        %1894 = vmatprep.subr.bf16.mxu0 0
        %1895 = vmatpush2.bf16.xpose.msra.mxu0 0
        %1896 = vmatprep.subr.bf16.mxu0 0
        %1897 = vmatpush2.bf16.xpose.msra.mxu0 0
        %1898 = vmatprep.subr.bf16.mxu0 0
        %1899 = vmatpush2.bf16.xpose.msra.mxu0 0
        %1900 = vmatprep.subr.bf16.mxu0 0
        %1901 = vmatpush2.bf16.xpose.msra.mxu0 0
        %1902 = vmatprep.subr.bf16.mxu0 0
        %1903 = vmatpush2.bf16.xpose.msra.mxu0 0
        %1904 = vmatprep.mubr.bf16.mxu0 0
        %1905 = vmatmul.mubr.bf16.gmra.mxu0 %v1867
        %v1906 = vpop.f32.mrf.mxu0
        %v1907 = vadd.f32 0.0, %v1906
        %v1908 = vpop.f32.mrf.mxu0
        %v1909 = vpop.f32.mrf.mxu0
        %v1910 = vpop.f32.mrf.mxu0
        %1911 = vdwg.mxu0
        %1913 = vrot.lane.b32.xlu0 %v1860, 112
        %v1914 = vpop.permute.xlu0 %1913
        %v1916 = vsel %vm466, %v1860, 0
        %v1919 = vsel %vm466, %v1914, 0
        %1921 = vmatprep.subr.bf16.mxu0 0
        %1922 = vmatpush1.bf16.xpose.msra.mxu0 0
        %1923 = vmatprep.subr.bf16.mxu0 0
        %1924 = vmatpush1.bf16.xpose.msra.mxu0 0
        %1925 = vmatprep.subr.bf16.mxu0 0
        %1926 = vmatpush1.bf16.xpose.msra.mxu0 0
        %1927 = vmatprep.subr.bf16.mxu0 0
        %1928 = vmatpush1.bf16.xpose.msra.mxu0 0
        %1929 = vmatprep.subr.bf16.mxu0 0
        %1930 = vmatpush1.bf16.xpose.msra.mxu0 0
        %1931 = vmatprep.subr.bf16.mxu0 0
        %1932 = vmatpush1.bf16.xpose.msra.mxu0 0
        %1933 = vmatprep.subr.bf16.mxu0 0
        %1934 = vmatpush1.bf16.xpose.msra.mxu0 0
        %1935 = vmatprep.subr.bf16.mxu0 0
        %1936 = vmatpush1.bf16.xpose.msra.mxu0 %v1919
        %1937 = vmatprep.subr.bf16.mxu0 0
        %1938 = vmatpush2.bf16.xpose.msra.mxu0 0
        %1939 = vmatprep.subr.bf16.mxu0 0
        %1940 = vmatpush2.bf16.xpose.msra.mxu0 0
        %1941 = vmatprep.subr.bf16.mxu0 0
        %1942 = vmatpush2.bf16.xpose.msra.mxu0 0
        %1943 = vmatprep.subr.bf16.mxu0 0
        %1944 = vmatpush2.bf16.xpose.msra.mxu0 0
        %1945 = vmatprep.subr.bf16.mxu0 0
        %1946 = vmatpush2.bf16.xpose.msra.mxu0 0
        %1947 = vmatprep.subr.bf16.mxu0 0
        %1948 = vmatpush2.bf16.xpose.msra.mxu0 0
        %1949 = vmatprep.subr.bf16.mxu0 0
        %1950 = vmatpush2.bf16.xpose.msra.mxu0 0
        %1951 = vmatprep.subr.bf16.mxu0 0
        %1952 = vmatpush2.bf16.xpose.msra.mxu0 0
        %1953 = vmatprep.mubr.bf16.mxu0 0
        %1954 = vmatmul.mubr.bf16.gmra.mxu0 %v1916
        %v1955 = vpop.f32.mrf.mxu0
        %v1956 = vadd.f32 0.0, %v1955
        %v1957 = vpop.f32.mrf.mxu0
        %v1958 = vpop.f32.mrf.mxu0
        %v1959 = vpop.f32.mrf.mxu0
        %1960 = vdwg.mxu0
        %1962 = vrot.lane.b32.xlu0 %v1861, 112
        %v1963 = vpop.permute.xlu0 %1962
        %v1965 = vsel %vm466, %v1861, 0
        %v1968 = vsel %vm466, %v1963, 0
        %1970 = vmatprep.subr.bf16.mxu0 0
        %1971 = vmatpush1.bf16.xpose.msra.mxu0 0
        %1972 = vmatprep.subr.bf16.mxu0 0
        %1973 = vmatpush1.bf16.xpose.msra.mxu0 0
        %1974 = vmatprep.subr.bf16.mxu0 0
        %1975 = vmatpush1.bf16.xpose.msra.mxu0 0
        %1976 = vmatprep.subr.bf16.mxu0 0
        %1977 = vmatpush1.bf16.xpose.msra.mxu0 0
        %1978 = vmatprep.subr.bf16.mxu0 0
        %1979 = vmatpush1.bf16.xpose.msra.mxu0 0
        %1980 = vmatprep.subr.bf16.mxu0 0
        %1981 = vmatpush1.bf16.xpose.msra.mxu0 0
        %1982 = vmatprep.subr.bf16.mxu0 0
        %1983 = vmatpush1.bf16.xpose.msra.mxu0 0
        %1984 = vmatprep.subr.bf16.mxu0 0
        %1985 = vmatpush1.bf16.xpose.msra.mxu0 %v1968
        %1986 = vmatprep.subr.bf16.mxu0 0
        %1987 = vmatpush2.bf16.xpose.msra.mxu0 0
        %1988 = vmatprep.subr.bf16.mxu0 0
        %1989 = vmatpush2.bf16.xpose.msra.mxu0 0
        %1990 = vmatprep.subr.bf16.mxu0 0
        %1991 = vmatpush2.bf16.xpose.msra.mxu0 0
        %1992 = vmatprep.subr.bf16.mxu0 0
        %1993 = vmatpush2.bf16.xpose.msra.mxu0 0
        %1994 = vmatprep.subr.bf16.mxu0 0
        %1995 = vmatpush2.bf16.xpose.msra.mxu0 0
        %1996 = vmatprep.subr.bf16.mxu0 0
        %1997 = vmatpush2.bf16.xpose.msra.mxu0 0
        %1998 = vmatprep.subr.bf16.mxu0 0
        %1999 = vmatpush2.bf16.xpose.msra.mxu0 0
        %2000 = vmatprep.subr.bf16.mxu0 0
        %2001 = vmatpush2.bf16.xpose.msra.mxu0 0
        %2002 = vmatprep.mubr.bf16.mxu0 0
        %2003 = vmatmul.mubr.bf16.gmra.mxu0 %v1965
        %v2004 = vpop.f32.mrf.mxu0
        %v2005 = vadd.f32 0.0, %v2004
        %v2006 = vpop.f32.mrf.mxu0
        %v2007 = vpop.f32.mrf.mxu0
        %v2008 = vpop.f32.mrf.mxu0
        %2009 = vdwg.mxu0
        %2011 = vrot.lane.b32.xlu0 %v1862, 112
        %v2012 = vpop.permute.xlu0 %2011
        %v2014 = vsel %vm466, %v1862, 0
        %v2017 = vsel %vm466, %v2012, 0
        %2019 = vmatprep.subr.bf16.mxu0 0
        %2020 = vmatpush1.bf16.xpose.msra.mxu0 0
        %2021 = vmatprep.subr.bf16.mxu0 0
        %2022 = vmatpush1.bf16.xpose.msra.mxu0 0
        %2023 = vmatprep.subr.bf16.mxu0 0
        %2024 = vmatpush1.bf16.xpose.msra.mxu0 0
        %2025 = vmatprep.subr.bf16.mxu0 0
        %2026 = vmatpush1.bf16.xpose.msra.mxu0 0
        %2027 = vmatprep.subr.bf16.mxu0 0
        %2028 = vmatpush1.bf16.xpose.msra.mxu0 0
        %2029 = vmatprep.subr.bf16.mxu0 0
        %2030 = vmatpush1.bf16.xpose.msra.mxu0 0
        %2031 = vmatprep.subr.bf16.mxu0 0
        %2032 = vmatpush1.bf16.xpose.msra.mxu0 0
        %2033 = vmatprep.subr.bf16.mxu0 0
        %2034 = vmatpush1.bf16.xpose.msra.mxu0 %v2017
        %2035 = vmatprep.subr.bf16.mxu0 0
        %2036 = vmatpush2.bf16.xpose.msra.mxu0 0
        %2037 = vmatprep.subr.bf16.mxu0 0
        %2038 = vmatpush2.bf16.xpose.msra.mxu0 0
        %2039 = vmatprep.subr.bf16.mxu0 0
        %2040 = vmatpush2.bf16.xpose.msra.mxu0 0
        %2041 = vmatprep.subr.bf16.mxu0 0
        %2042 = vmatpush2.bf16.xpose.msra.mxu0 0
        %2043 = vmatprep.subr.bf16.mxu0 0
        %2044 = vmatpush2.bf16.xpose.msra.mxu0 0
        %2045 = vmatprep.subr.bf16.mxu0 0
        %2046 = vmatpush2.bf16.xpose.msra.mxu0 0
        %2047 = vmatprep.subr.bf16.mxu0 0
        %2048 = vmatpush2.bf16.xpose.msra.mxu0 0
        %2049 = vmatprep.subr.bf16.mxu0 0
        %2050 = vmatpush2.bf16.xpose.msra.mxu0 0
        %2051 = vmatprep.mubr.bf16.mxu0 0
        %2052 = vmatmul.mubr.bf16.gmra.mxu0 %v2014
        %v2053 = vpop.f32.mrf.mxu0
        %v2054 = vadd.f32 0.0, %v2053
        %v2055 = vpop.f32.mrf.mxu0
        %v2056 = vpop.f32.mrf.mxu0
        %v2057 = vpop.f32.mrf.mxu0
        %2058 = vdwg.mxu0
        %v2059 = vmul.f32 %v1907, 0.35355338
        %v2060 = vmul.f32 %v1956, 0.35355338
        %v2061 = vmul.f32 %v2005, 0.35355338
        %v2062 = vmul.f32 %v2054, 0.35355338
        %v2063 = vsel %vm466, %v2059, -inf
        %2064 = vmax.xlane.f32.xlu0 %v2063
        %v2065 = vpop.xlane.xlu0 %2064
        %v2066 = vsel %vm466, %v2060, -inf
        %2067 = vmax.xlane.f32.xlu0 %v2066
        %v2068 = vpop.xlane.xlu0 %2067
        %v2069 = vsel %vm466, %v2061, -inf
        %2070 = vmax.xlane.f32.xlu0 %v2069
        %v2071 = vpop.xlane.xlu0 %2070
        %v2072 = vsel %vm466, %v2062, -inf
        %2073 = vmax.xlane.f32.xlu0 %v2072
        %v2074 = vpop.xlane.xlu0 %2073
        %v2075 = vsub.f32 %v2059, %v2065
        %v2076 = vsub.f32 %v2060, %v2068
        %v2077 = vsub.f32 %v2061, %v2071
        %v2078 = vsub.f32 %v2062, %v2074
        %v2079 = vmul.f32 %v2075, 1.442695
        %v2080 = vpow.pop %v2079
        %v2081 = vmul.f32 %v2076, 1.442695
        %v2082 = vpow.pop %v2081
        %v2083 = vmul.f32 %v2077, 1.442695
        %v2084 = vpow.pop %v2083
        %v2085 = vmul.f32 %v2078, 1.442695
        %v2086 = vpow.pop %v2085
        %v2087 = vsel %vm466, %v2080, 0.0
        %2088 = vadd.xlane.f32.xlu0 %v2087
        %v2089 = vpop.xlane.xlu0 %2088
        %v2090 = vsel %vm466, %v2082, 0.0
        %2091 = vadd.xlane.f32.xlu0 %v2090
        %v2092 = vpop.xlane.xlu0 %2091
        %v2093 = vsel %vm466, %v2084, 0.0
        %2094 = vadd.xlane.f32.xlu0 %v2093
        %v2095 = vpop.xlane.xlu0 %2094
        %v2096 = vsel %vm466, %v2086, 0.0
        %2097 = vadd.xlane.f32.xlu0 %v2096
        %v2098 = vpop.xlane.xlu0 %2097
        %v2099 = vrcp.pop %v2089
        %v2100 = vrcp.pop %v2092
        %v2101 = vrcp.pop %v2095
        %v2102 = vrcp.pop %v2098
        %v2103 = vmul.f32 %v2080, %v2099
        %v2104 = vmul.f32 %v2082, %v2100
        %v2105 = vmul.f32 %v2084, %v2101
        %v2106 = vmul.f32 %v2086, %v2102
        %v2107 = vpack.c.bf16 %v2103, %v2103
        %v2108 = vpack.c.bf16 %v2104, %v2104
        %v2109 = vpack.c.bf16 %v2105, %v2105
        %v2110 = vpack.c.bf16 %v2106, %v2106
        %2111 = vrot.lane.b32.xlu0 %v1859, 96
        %v2112 = vpop.permute.xlu0 %2111
        %v2114 = vsel %vm466, %v2107, 0
        %v2117 = vsel %vm717, %v2112, 0
        %2119 = vmatprep.subr.bf16.mxu0 0
        %2120 = vmatpush1.bf16.msra.mxu0 0
        %2121 = vmatprep.subr.bf16.mxu0 0
        %2122 = vmatpush1.bf16.msra.mxu0 0
        %2123 = vmatprep.subr.bf16.mxu0 0
        %2124 = vmatpush1.bf16.msra.mxu0 0
        %2125 = vmatprep.subr.bf16.mxu0 0
        %2126 = vmatpush1.bf16.msra.mxu0 0
        %2127 = vmatprep.subr.bf16.mxu0 0
        %2128 = vmatpush1.bf16.msra.mxu0 0
        %2129 = vmatprep.subr.bf16.mxu0 0
        %2130 = vmatpush1.bf16.msra.mxu0 0
        %2131 = vmatprep.subr.bf16.mxu0 0
        %2132 = vmatpush1.bf16.msra.mxu0 0
        %2133 = vmatprep.subr.bf16.mxu0 0
        %2134 = vmatpush1.bf16.msra.mxu0 %v2117
        %2135 = vmatprep.subr.bf16.mxu0 0
        %2136 = vmatpush2.bf16.msra.mxu0 0
        %2137 = vmatprep.subr.bf16.mxu0 0
        %2138 = vmatpush2.bf16.msra.mxu0 0
        %2139 = vmatprep.subr.bf16.mxu0 0
        %2140 = vmatpush2.bf16.msra.mxu0 0
        %2141 = vmatprep.subr.bf16.mxu0 0
        %2142 = vmatpush2.bf16.msra.mxu0 0
        %2143 = vmatprep.subr.bf16.mxu0 0
        %2144 = vmatpush2.bf16.msra.mxu0 0
        %2145 = vmatprep.subr.bf16.mxu0 0
        %2146 = vmatpush2.bf16.msra.mxu0 0
        %2147 = vmatprep.subr.bf16.mxu0 0
        %2148 = vmatpush2.bf16.msra.mxu0 0
        %2149 = vmatprep.subr.bf16.mxu0 0
        %2150 = vmatpush2.bf16.msra.mxu0 0
        %2151 = vmatprep.mubr.bf16.mxu0 0
        %2152 = vmatmul.mubr.bf16.gmra.mxu0 %v2114
        %v2153 = vpop.f32.mrf.mxu0
        %v2154 = vadd.f32 0.0, %v2153
        %v2155 = vpop.f32.mrf.mxu0
        %v2156 = vpop.f32.mrf.mxu0
        %v2157 = vpop.f32.mrf.mxu0
        %2158 = vdwg.mxu0
        %2159 = vrot.lane.b32.xlu0 %v1860, 96
        %v2160 = vpop.permute.xlu0 %2159
        %v2162 = vsel %vm466, %v2108, 0
        %v2165 = vsel %vm717, %v2160, 0
        %2167 = vmatprep.subr.bf16.mxu0 0
        %2168 = vmatpush1.bf16.msra.mxu0 0
        %2169 = vmatprep.subr.bf16.mxu0 0
        %2170 = vmatpush1.bf16.msra.mxu0 0
        %2171 = vmatprep.subr.bf16.mxu0 0
        %2172 = vmatpush1.bf16.msra.mxu0 0
        %2173 = vmatprep.subr.bf16.mxu0 0
        %2174 = vmatpush1.bf16.msra.mxu0 0
        %2175 = vmatprep.subr.bf16.mxu0 0
        %2176 = vmatpush1.bf16.msra.mxu0 0
        %2177 = vmatprep.subr.bf16.mxu0 0
        %2178 = vmatpush1.bf16.msra.mxu0 0
        %2179 = vmatprep.subr.bf16.mxu0 0
        %2180 = vmatpush1.bf16.msra.mxu0 0
        %2181 = vmatprep.subr.bf16.mxu0 0
        %2182 = vmatpush1.bf16.msra.mxu0 %v2165
        %2183 = vmatprep.subr.bf16.mxu0 0
        %2184 = vmatpush2.bf16.msra.mxu0 0
        %2185 = vmatprep.subr.bf16.mxu0 0
        %2186 = vmatpush2.bf16.msra.mxu0 0
        %2187 = vmatprep.subr.bf16.mxu0 0
        %2188 = vmatpush2.bf16.msra.mxu0 0
        %2189 = vmatprep.subr.bf16.mxu0 0
        %2190 = vmatpush2.bf16.msra.mxu0 0
        %2191 = vmatprep.subr.bf16.mxu0 0
        %2192 = vmatpush2.bf16.msra.mxu0 0
        %2193 = vmatprep.subr.bf16.mxu0 0
        %2194 = vmatpush2.bf16.msra.mxu0 0
        %2195 = vmatprep.subr.bf16.mxu0 0
        %2196 = vmatpush2.bf16.msra.mxu0 0
        %2197 = vmatprep.subr.bf16.mxu0 0
        %2198 = vmatpush2.bf16.msra.mxu0 0
        %2199 = vmatprep.mubr.bf16.mxu0 0
        %2200 = vmatmul.mubr.bf16.gmra.mxu0 %v2162
        %v2201 = vpop.f32.mrf.mxu0
        %v2202 = vadd.f32 0.0, %v2201
        %v2203 = vpop.f32.mrf.mxu0
        %v2204 = vpop.f32.mrf.mxu0
        %v2205 = vpop.f32.mrf.mxu0
        %2206 = vdwg.mxu0
        %2207 = vrot.lane.b32.xlu0 %v1861, 96
        %v2208 = vpop.permute.xlu0 %2207
        %v2210 = vsel %vm466, %v2109, 0
        %v2213 = vsel %vm717, %v2208, 0
        %2215 = vmatprep.subr.bf16.mxu0 0
        %2216 = vmatpush1.bf16.msra.mxu0 0
        %2217 = vmatprep.subr.bf16.mxu0 0
        %2218 = vmatpush1.bf16.msra.mxu0 0
        %2219 = vmatprep.subr.bf16.mxu0 0
        %2220 = vmatpush1.bf16.msra.mxu0 0
        %2221 = vmatprep.subr.bf16.mxu0 0
        %2222 = vmatpush1.bf16.msra.mxu0 0
        %2223 = vmatprep.subr.bf16.mxu0 0
        %2224 = vmatpush1.bf16.msra.mxu0 0
        %2225 = vmatprep.subr.bf16.mxu0 0
        %2226 = vmatpush1.bf16.msra.mxu0 0
        %2227 = vmatprep.subr.bf16.mxu0 0
        %2228 = vmatpush1.bf16.msra.mxu0 0
        %2229 = vmatprep.subr.bf16.mxu0 0
        %2230 = vmatpush1.bf16.msra.mxu0 %v2213
        %2231 = vmatprep.subr.bf16.mxu0 0
        %2232 = vmatpush2.bf16.msra.mxu0 0
        %2233 = vmatprep.subr.bf16.mxu0 0
        %2234 = vmatpush2.bf16.msra.mxu0 0
        %2235 = vmatprep.subr.bf16.mxu0 0
        %2236 = vmatpush2.bf16.msra.mxu0 0
        %2237 = vmatprep.subr.bf16.mxu0 0
        %2238 = vmatpush2.bf16.msra.mxu0 0
        %2239 = vmatprep.subr.bf16.mxu0 0
        %2240 = vmatpush2.bf16.msra.mxu0 0
        %2241 = vmatprep.subr.bf16.mxu0 0
        %2242 = vmatpush2.bf16.msra.mxu0 0
        %2243 = vmatprep.subr.bf16.mxu0 0
        %2244 = vmatpush2.bf16.msra.mxu0 0
        %2245 = vmatprep.subr.bf16.mxu0 0
        %2246 = vmatpush2.bf16.msra.mxu0 0
        %2247 = vmatprep.mubr.bf16.mxu0 0
        %2248 = vmatmul.mubr.bf16.gmra.mxu0 %v2210
        %v2249 = vpop.f32.mrf.mxu0
        %v2250 = vadd.f32 0.0, %v2249
        %v2251 = vpop.f32.mrf.mxu0
        %v2252 = vpop.f32.mrf.mxu0
        %v2253 = vpop.f32.mrf.mxu0
        %2254 = vdwg.mxu0
        %2255 = vrot.lane.b32.xlu0 %v1862, 96
        %v2256 = vpop.permute.xlu0 %2255
        %v2258 = vsel %vm466, %v2110, 0
        %v2261 = vsel %vm717, %v2256, 0
        %2263 = vmatprep.subr.bf16.mxu0 0
        %2264 = vmatpush1.bf16.msra.mxu0 0
        %2265 = vmatprep.subr.bf16.mxu0 0
        %2266 = vmatpush1.bf16.msra.mxu0 0
        %2267 = vmatprep.subr.bf16.mxu0 0
        %2268 = vmatpush1.bf16.msra.mxu0 0
        %2269 = vmatprep.subr.bf16.mxu0 0
        %2270 = vmatpush1.bf16.msra.mxu0 0
        %2271 = vmatprep.subr.bf16.mxu0 0
        %2272 = vmatpush1.bf16.msra.mxu0 0
        %2273 = vmatprep.subr.bf16.mxu0 0
        %2274 = vmatpush1.bf16.msra.mxu0 0
        %2275 = vmatprep.subr.bf16.mxu0 0
        %2276 = vmatpush1.bf16.msra.mxu0 0
        %2277 = vmatprep.subr.bf16.mxu0 0
        %2278 = vmatpush1.bf16.msra.mxu0 %v2261
        %2279 = vmatprep.subr.bf16.mxu0 0
        %2280 = vmatpush2.bf16.msra.mxu0 0
        %2281 = vmatprep.subr.bf16.mxu0 0
        %2282 = vmatpush2.bf16.msra.mxu0 0
        %2283 = vmatprep.subr.bf16.mxu0 0
        %2284 = vmatpush2.bf16.msra.mxu0 0
        %2285 = vmatprep.subr.bf16.mxu0 0
        %2286 = vmatpush2.bf16.msra.mxu0 0
        %2287 = vmatprep.subr.bf16.mxu0 0
        %2288 = vmatpush2.bf16.msra.mxu0 0
        %2289 = vmatprep.subr.bf16.mxu0 0
        %2290 = vmatpush2.bf16.msra.mxu0 0
        %2291 = vmatprep.subr.bf16.mxu0 0
        %2292 = vmatpush2.bf16.msra.mxu0 0
        %2293 = vmatprep.subr.bf16.mxu0 0
        %2294 = vmatpush2.bf16.msra.mxu0 0
        %2295 = vmatprep.mubr.bf16.mxu0 0
        %2296 = vmatmul.mubr.bf16.gmra.mxu0 %v2258
        %v2297 = vpop.f32.mrf.mxu0
        %v2298 = vadd.f32 0.0, %v2297
        %v2299 = vpop.f32.mrf.mxu0
        %v2300 = vpop.f32.mrf.mxu0
        %v2301 = vpop.f32.mrf.mxu0
        %2302 = vdwg.mxu0
        %2303 = vrot.lane.b32.xlu0 %v1859, 120
        %v2304 = vpop.permute.xlu0 %2303
        %2305 = vrot.lane.b32.xlu0 %v1859, 104
        %v2306 = vpop.permute.xlu0 %2305
        %v2308 = vsel %vm466, %v2304, 0
        %v2311 = vsel %vm466, %v2306, 0
        %2313 = vmatprep.subr.bf16.mxu0 0
        %2314 = vmatpush1.bf16.xpose.msra.mxu0 0
        %2315 = vmatprep.subr.bf16.mxu0 0
        %2316 = vmatpush1.bf16.xpose.msra.mxu0 0
        %2317 = vmatprep.subr.bf16.mxu0 0
        %2318 = vmatpush1.bf16.xpose.msra.mxu0 0
        %2319 = vmatprep.subr.bf16.mxu0 0
        %2320 = vmatpush1.bf16.xpose.msra.mxu0 0
        %2321 = vmatprep.subr.bf16.mxu0 0
        %2322 = vmatpush1.bf16.xpose.msra.mxu0 0
        %2323 = vmatprep.subr.bf16.mxu0 0
        %2324 = vmatpush1.bf16.xpose.msra.mxu0 0
        %2325 = vmatprep.subr.bf16.mxu0 0
        %2326 = vmatpush1.bf16.xpose.msra.mxu0 0
        %2327 = vmatprep.subr.bf16.mxu0 0
        %2328 = vmatpush1.bf16.xpose.msra.mxu0 %v2311
        %2329 = vmatprep.subr.bf16.mxu0 0
        %2330 = vmatpush2.bf16.xpose.msra.mxu0 0
        %2331 = vmatprep.subr.bf16.mxu0 0
        %2332 = vmatpush2.bf16.xpose.msra.mxu0 0
        %2333 = vmatprep.subr.bf16.mxu0 0
        %2334 = vmatpush2.bf16.xpose.msra.mxu0 0
        %2335 = vmatprep.subr.bf16.mxu0 0
        %2336 = vmatpush2.bf16.xpose.msra.mxu0 0
        %2337 = vmatprep.subr.bf16.mxu0 0
        %2338 = vmatpush2.bf16.xpose.msra.mxu0 0
        %2339 = vmatprep.subr.bf16.mxu0 0
        %2340 = vmatpush2.bf16.xpose.msra.mxu0 0
        %2341 = vmatprep.subr.bf16.mxu0 0
        %2342 = vmatpush2.bf16.xpose.msra.mxu0 0
        %2343 = vmatprep.subr.bf16.mxu0 0
        %2344 = vmatpush2.bf16.xpose.msra.mxu0 0
        %2345 = vmatprep.mubr.bf16.mxu0 0
        %2346 = vmatmul.mubr.bf16.gmra.mxu0 %v2308
        %v2347 = vpop.f32.mrf.mxu0
        %v2348 = vadd.f32 0.0, %v2347
        %v2349 = vpop.f32.mrf.mxu0
        %v2350 = vpop.f32.mrf.mxu0
        %v2351 = vpop.f32.mrf.mxu0
        %2352 = vdwg.mxu0
        %2353 = vrot.lane.b32.xlu0 %v1860, 120
        %v2354 = vpop.permute.xlu0 %2353
        %2355 = vrot.lane.b32.xlu0 %v1860, 104
        %v2356 = vpop.permute.xlu0 %2355
        %v2358 = vsel %vm466, %v2354, 0
        %v2361 = vsel %vm466, %v2356, 0
        %2363 = vmatprep.subr.bf16.mxu0 0
        %2364 = vmatpush1.bf16.xpose.msra.mxu0 0
        %2365 = vmatprep.subr.bf16.mxu0 0
        %2366 = vmatpush1.bf16.xpose.msra.mxu0 0
        %2367 = vmatprep.subr.bf16.mxu0 0
        %2368 = vmatpush1.bf16.xpose.msra.mxu0 0
        %2369 = vmatprep.subr.bf16.mxu0 0
        %2370 = vmatpush1.bf16.xpose.msra.mxu0 0
        %2371 = vmatprep.subr.bf16.mxu0 0
        %2372 = vmatpush1.bf16.xpose.msra.mxu0 0
        %2373 = vmatprep.subr.bf16.mxu0 0
        %2374 = vmatpush1.bf16.xpose.msra.mxu0 0
        %2375 = vmatprep.subr.bf16.mxu0 0
        %2376 = vmatpush1.bf16.xpose.msra.mxu0 0
        %2377 = vmatprep.subr.bf16.mxu0 0
        %2378 = vmatpush1.bf16.xpose.msra.mxu0 %v2361
        %2379 = vmatprep.subr.bf16.mxu0 0
        %2380 = vmatpush2.bf16.xpose.msra.mxu0 0
        %2381 = vmatprep.subr.bf16.mxu0 0
        %2382 = vmatpush2.bf16.xpose.msra.mxu0 0
        %2383 = vmatprep.subr.bf16.mxu0 0
        %2384 = vmatpush2.bf16.xpose.msra.mxu0 0
        %2385 = vmatprep.subr.bf16.mxu0 0
        %2386 = vmatpush2.bf16.xpose.msra.mxu0 0
        %2387 = vmatprep.subr.bf16.mxu0 0
        %2388 = vmatpush2.bf16.xpose.msra.mxu0 0
        %2389 = vmatprep.subr.bf16.mxu0 0
        %2390 = vmatpush2.bf16.xpose.msra.mxu0 0
        %2391 = vmatprep.subr.bf16.mxu0 0
        %2392 = vmatpush2.bf16.xpose.msra.mxu0 0
        %2393 = vmatprep.subr.bf16.mxu0 0
        %2394 = vmatpush2.bf16.xpose.msra.mxu0 0
        %2395 = vmatprep.mubr.bf16.mxu0 0
        %2396 = vmatmul.mubr.bf16.gmra.mxu0 %v2358
        %v2397 = vpop.f32.mrf.mxu0
        %v2398 = vadd.f32 0.0, %v2397
        %v2399 = vpop.f32.mrf.mxu0
        %v2400 = vpop.f32.mrf.mxu0
        %v2401 = vpop.f32.mrf.mxu0
        %2402 = vdwg.mxu0
        %2403 = vrot.lane.b32.xlu0 %v1861, 120
        %v2404 = vpop.permute.xlu0 %2403
        %2405 = vrot.lane.b32.xlu0 %v1861, 104
        %v2406 = vpop.permute.xlu0 %2405
        %v2408 = vsel %vm466, %v2404, 0
        %v2411 = vsel %vm466, %v2406, 0
        %2413 = vmatprep.subr.bf16.mxu0 0
        %2414 = vmatpush1.bf16.xpose.msra.mxu0 0
        %2415 = vmatprep.subr.bf16.mxu0 0
        %2416 = vmatpush1.bf16.xpose.msra.mxu0 0
        %2417 = vmatprep.subr.bf16.mxu0 0
        %2418 = vmatpush1.bf16.xpose.msra.mxu0 0
        %2419 = vmatprep.subr.bf16.mxu0 0
        %2420 = vmatpush1.bf16.xpose.msra.mxu0 0
        %2421 = vmatprep.subr.bf16.mxu0 0
        %2422 = vmatpush1.bf16.xpose.msra.mxu0 0
        %2423 = vmatprep.subr.bf16.mxu0 0
        %2424 = vmatpush1.bf16.xpose.msra.mxu0 0
        %2425 = vmatprep.subr.bf16.mxu0 0
        %2426 = vmatpush1.bf16.xpose.msra.mxu0 0
        %2427 = vmatprep.subr.bf16.mxu0 0
        %2428 = vmatpush1.bf16.xpose.msra.mxu0 %v2411
        %2429 = vmatprep.subr.bf16.mxu0 0
        %2430 = vmatpush2.bf16.xpose.msra.mxu0 0
        %2431 = vmatprep.subr.bf16.mxu0 0
        %2432 = vmatpush2.bf16.xpose.msra.mxu0 0
        %2433 = vmatprep.subr.bf16.mxu0 0
        %2434 = vmatpush2.bf16.xpose.msra.mxu0 0
        %2435 = vmatprep.subr.bf16.mxu0 0
        %2436 = vmatpush2.bf16.xpose.msra.mxu0 0
        %2437 = vmatprep.subr.bf16.mxu0 0
        %2438 = vmatpush2.bf16.xpose.msra.mxu0 0
        %2439 = vmatprep.subr.bf16.mxu0 0
        %2440 = vmatpush2.bf16.xpose.msra.mxu0 0
        %2441 = vmatprep.subr.bf16.mxu0 0
        %2442 = vmatpush2.bf16.xpose.msra.mxu0 0
        %2443 = vmatprep.subr.bf16.mxu0 0
        %2444 = vmatpush2.bf16.xpose.msra.mxu0 0
        %2445 = vmatprep.mubr.bf16.mxu0 0
        %2446 = vmatmul.mubr.bf16.gmra.mxu0 %v2408
        %v2447 = vpop.f32.mrf.mxu0
        %v2448 = vadd.f32 0.0, %v2447
        %v2449 = vpop.f32.mrf.mxu0
        %v2450 = vpop.f32.mrf.mxu0
        %v2451 = vpop.f32.mrf.mxu0
        %2452 = vdwg.mxu0
        %2453 = vrot.lane.b32.xlu0 %v1862, 120
        %v2454 = vpop.permute.xlu0 %2453
        %2455 = vrot.lane.b32.xlu0 %v1862, 104
        %v2456 = vpop.permute.xlu0 %2455
        %v2458 = vsel %vm466, %v2454, 0
        %v2461 = vsel %vm466, %v2456, 0
        %2463 = vmatprep.subr.bf16.mxu0 0
        %2464 = vmatpush1.bf16.xpose.msra.mxu0 0
        %2465 = vmatprep.subr.bf16.mxu0 0
        %2466 = vmatpush1.bf16.xpose.msra.mxu0 0
        %2467 = vmatprep.subr.bf16.mxu0 0
        %2468 = vmatpush1.bf16.xpose.msra.mxu0 0
        %2469 = vmatprep.subr.bf16.mxu0 0
        %2470 = vmatpush1.bf16.xpose.msra.mxu0 0
        %2471 = vmatprep.subr.bf16.mxu0 0
        %2472 = vmatpush1.bf16.xpose.msra.mxu0 0
        %2473 = vmatprep.subr.bf16.mxu0 0
        %2474 = vmatpush1.bf16.xpose.msra.mxu0 0
        %2475 = vmatprep.subr.bf16.mxu0 0
        %2476 = vmatpush1.bf16.xpose.msra.mxu0 0
        %2477 = vmatprep.subr.bf16.mxu0 0
        %2478 = vmatpush1.bf16.xpose.msra.mxu0 %v2461
        %2479 = vmatprep.subr.bf16.mxu0 0
        %2480 = vmatpush2.bf16.xpose.msra.mxu0 0
        %2481 = vmatprep.subr.bf16.mxu0 0
        %2482 = vmatpush2.bf16.xpose.msra.mxu0 0
        %2483 = vmatprep.subr.bf16.mxu0 0
        %2484 = vmatpush2.bf16.xpose.msra.mxu0 0
        %2485 = vmatprep.subr.bf16.mxu0 0
        %2486 = vmatpush2.bf16.xpose.msra.mxu0 0
        %2487 = vmatprep.subr.bf16.mxu0 0
        %2488 = vmatpush2.bf16.xpose.msra.mxu0 0
        %2489 = vmatprep.subr.bf16.mxu0 0
        %2490 = vmatpush2.bf16.xpose.msra.mxu0 0
        %2491 = vmatprep.subr.bf16.mxu0 0
        %2492 = vmatpush2.bf16.xpose.msra.mxu0 0
        %2493 = vmatprep.subr.bf16.mxu0 0
        %2494 = vmatpush2.bf16.xpose.msra.mxu0 0
        %2495 = vmatprep.mubr.bf16.mxu0 0
        %2496 = vmatmul.mubr.bf16.gmra.mxu0 %v2458
        %v2497 = vpop.f32.mrf.mxu0
        %v2498 = vadd.f32 0.0, %v2497
        %v2499 = vpop.f32.mrf.mxu0
        %v2500 = vpop.f32.mrf.mxu0
        %v2501 = vpop.f32.mrf.mxu0
        %2502 = vdwg.mxu0
        %v2503 = vmul.f32 %v2348, 0.35355338
        %v2504 = vmul.f32 %v2398, 0.35355338
        %v2505 = vmul.f32 %v2448, 0.35355338
        %v2506 = vmul.f32 %v2498, 0.35355338
        %v2507 = vsel %vm466, %v2503, -inf
        %2508 = vmax.xlane.f32.xlu0 %v2507
        %v2509 = vpop.xlane.xlu0 %2508
        %v2510 = vsel %vm466, %v2504, -inf
        %2511 = vmax.xlane.f32.xlu0 %v2510
        %v2512 = vpop.xlane.xlu0 %2511
        %v2513 = vsel %vm466, %v2505, -inf
        %2514 = vmax.xlane.f32.xlu0 %v2513
        %v2515 = vpop.xlane.xlu0 %2514
        %v2516 = vsel %vm466, %v2506, -inf
        %2517 = vmax.xlane.f32.xlu0 %v2516
        %v2518 = vpop.xlane.xlu0 %2517
        %v2519 = vsub.f32 %v2503, %v2509
        %v2520 = vsub.f32 %v2504, %v2512
        %v2521 = vsub.f32 %v2505, %v2515
        %v2522 = vsub.f32 %v2506, %v2518
        %v2523 = vmul.f32 %v2519, 1.442695
        %v2524 = vpow.pop %v2523
        %v2525 = vmul.f32 %v2520, 1.442695
        %v2526 = vpow.pop %v2525
        %v2527 = vmul.f32 %v2521, 1.442695
        %v2528 = vpow.pop %v2527
        %v2529 = vmul.f32 %v2522, 1.442695
        %v2530 = vpow.pop %v2529
        %v2531 = vsel %vm466, %v2524, 0.0
        %2532 = vadd.xlane.f32.xlu0 %v2531
        %v2533 = vpop.xlane.xlu0 %2532
        %v2534 = vsel %vm466, %v2526, 0.0
        %2535 = vadd.xlane.f32.xlu0 %v2534
        %v2536 = vpop.xlane.xlu0 %2535
        %v2537 = vsel %vm466, %v2528, 0.0
        %2538 = vadd.xlane.f32.xlu0 %v2537
        %v2539 = vpop.xlane.xlu0 %2538
        %v2540 = vsel %vm466, %v2530, 0.0
        %2541 = vadd.xlane.f32.xlu0 %v2540
        %v2542 = vpop.xlane.xlu0 %2541
        %v2543 = vrcp.pop %v2533
        %v2544 = vrcp.pop %v2536
        %v2545 = vrcp.pop %v2539
        %v2546 = vrcp.pop %v2542
        %v2547 = vmul.f32 %v2524, %v2543
        %v2548 = vmul.f32 %v2526, %v2544
        %v2549 = vmul.f32 %v2528, %v2545
        %v2550 = vmul.f32 %v2530, %v2546
        %v2551 = vpack.c.bf16 %v2547, %v2547
        %v2552 = vpack.c.bf16 %v2548, %v2548
        %v2553 = vpack.c.bf16 %v2549, %v2549
        %v2554 = vpack.c.bf16 %v2550, %v2550
        %2555 = vrot.lane.b32.xlu0 %v1859, 88
        %v2556 = vpop.permute.xlu0 %2555
        %v2558 = vsel %vm466, %v2551, 0
        %v2561 = vsel %vm717, %v2556, 0
        %2563 = vmatprep.subr.bf16.mxu0 0
        %2564 = vmatpush1.bf16.msra.mxu0 0
        %2565 = vmatprep.subr.bf16.mxu0 0
        %2566 = vmatpush1.bf16.msra.mxu0 0
        %2567 = vmatprep.subr.bf16.mxu0 0
        %2568 = vmatpush1.bf16.msra.mxu0 0
        %2569 = vmatprep.subr.bf16.mxu0 0
        %2570 = vmatpush1.bf16.msra.mxu0 0
        %2571 = vmatprep.subr.bf16.mxu0 0
        %2572 = vmatpush1.bf16.msra.mxu0 0
        %2573 = vmatprep.subr.bf16.mxu0 0
        %2574 = vmatpush1.bf16.msra.mxu0 0
        %2575 = vmatprep.subr.bf16.mxu0 0
        %2576 = vmatpush1.bf16.msra.mxu0 0
        %2577 = vmatprep.subr.bf16.mxu0 0
        %2578 = vmatpush1.bf16.msra.mxu0 %v2561
        %2579 = vmatprep.subr.bf16.mxu0 0
        %2580 = vmatpush2.bf16.msra.mxu0 0
        %2581 = vmatprep.subr.bf16.mxu0 0
        %2582 = vmatpush2.bf16.msra.mxu0 0
        %2583 = vmatprep.subr.bf16.mxu0 0
        %2584 = vmatpush2.bf16.msra.mxu0 0
        %2585 = vmatprep.subr.bf16.mxu0 0
        %2586 = vmatpush2.bf16.msra.mxu0 0
        %2587 = vmatprep.subr.bf16.mxu0 0
        %2588 = vmatpush2.bf16.msra.mxu0 0
        %2589 = vmatprep.subr.bf16.mxu0 0
        %2590 = vmatpush2.bf16.msra.mxu0 0
        %2591 = vmatprep.subr.bf16.mxu0 0
        %2592 = vmatpush2.bf16.msra.mxu0 0
        %2593 = vmatprep.subr.bf16.mxu0 0
        %2594 = vmatpush2.bf16.msra.mxu0 0
        %2595 = vmatprep.mubr.bf16.mxu0 0
        %2596 = vmatmul.mubr.bf16.gmra.mxu0 %v2558
        %v2597 = vpop.f32.mrf.mxu0
        %v2598 = vadd.f32 0.0, %v2597
        %v2599 = vpop.f32.mrf.mxu0
        %v2600 = vpop.f32.mrf.mxu0
        %v2601 = vpop.f32.mrf.mxu0
        %2602 = vdwg.mxu0
        %2603 = vrot.lane.b32.xlu0 %v1860, 88
        %v2604 = vpop.permute.xlu0 %2603
        %v2606 = vsel %vm466, %v2552, 0
        %v2609 = vsel %vm717, %v2604, 0
        %2611 = vmatprep.subr.bf16.mxu0 0
        %2612 = vmatpush1.bf16.msra.mxu0 0
        %2613 = vmatprep.subr.bf16.mxu0 0
        %2614 = vmatpush1.bf16.msra.mxu0 0
        %2615 = vmatprep.subr.bf16.mxu0 0
        %2616 = vmatpush1.bf16.msra.mxu0 0
        %2617 = vmatprep.subr.bf16.mxu0 0
        %2618 = vmatpush1.bf16.msra.mxu0 0
        %2619 = vmatprep.subr.bf16.mxu0 0
        %2620 = vmatpush1.bf16.msra.mxu0 0
        %2621 = vmatprep.subr.bf16.mxu0 0
        %2622 = vmatpush1.bf16.msra.mxu0 0
        %2623 = vmatprep.subr.bf16.mxu0 0
        %2624 = vmatpush1.bf16.msra.mxu0 0
        %2625 = vmatprep.subr.bf16.mxu0 0
        %2626 = vmatpush1.bf16.msra.mxu0 %v2609
        %2627 = vmatprep.subr.bf16.mxu0 0
        %2628 = vmatpush2.bf16.msra.mxu0 0
        %2629 = vmatprep.subr.bf16.mxu0 0
        %2630 = vmatpush2.bf16.msra.mxu0 0
        %2631 = vmatprep.subr.bf16.mxu0 0
        %2632 = vmatpush2.bf16.msra.mxu0 0
        %2633 = vmatprep.subr.bf16.mxu0 0
        %2634 = vmatpush2.bf16.msra.mxu0 0
        %2635 = vmatprep.subr.bf16.mxu0 0
        %2636 = vmatpush2.bf16.msra.mxu0 0
        %2637 = vmatprep.subr.bf16.mxu0 0
        %2638 = vmatpush2.bf16.msra.mxu0 0
        %2639 = vmatprep.subr.bf16.mxu0 0
        %2640 = vmatpush2.bf16.msra.mxu0 0
        %2641 = vmatprep.subr.bf16.mxu0 0
        %2642 = vmatpush2.bf16.msra.mxu0 0
        %2643 = vmatprep.mubr.bf16.mxu0 0
        %2644 = vmatmul.mubr.bf16.gmra.mxu0 %v2606
        %v2645 = vpop.f32.mrf.mxu0
        %v2646 = vadd.f32 0.0, %v2645
        %v2647 = vpop.f32.mrf.mxu0
        %v2648 = vpop.f32.mrf.mxu0
        %v2649 = vpop.f32.mrf.mxu0
        %2650 = vdwg.mxu0
        %2651 = vrot.lane.b32.xlu0 %v1861, 88
        %v2652 = vpop.permute.xlu0 %2651
        %v2654 = vsel %vm466, %v2553, 0
        %v2657 = vsel %vm717, %v2652, 0
        %2659 = vmatprep.subr.bf16.mxu0 0
        %2660 = vmatpush1.bf16.msra.mxu0 0
        %2661 = vmatprep.subr.bf16.mxu0 0
        %2662 = vmatpush1.bf16.msra.mxu0 0
        %2663 = vmatprep.subr.bf16.mxu0 0
        %2664 = vmatpush1.bf16.msra.mxu0 0
        %2665 = vmatprep.subr.bf16.mxu0 0
        %2666 = vmatpush1.bf16.msra.mxu0 0
        %2667 = vmatprep.subr.bf16.mxu0 0
        %2668 = vmatpush1.bf16.msra.mxu0 0
        %2669 = vmatprep.subr.bf16.mxu0 0
        %2670 = vmatpush1.bf16.msra.mxu0 0
        %2671 = vmatprep.subr.bf16.mxu0 0
        %2672 = vmatpush1.bf16.msra.mxu0 0
        %2673 = vmatprep.subr.bf16.mxu0 0
        %2674 = vmatpush1.bf16.msra.mxu0 %v2657
        %2675 = vmatprep.subr.bf16.mxu0 0
        %2676 = vmatpush2.bf16.msra.mxu0 0
        %2677 = vmatprep.subr.bf16.mxu0 0
        %2678 = vmatpush2.bf16.msra.mxu0 0
        %2679 = vmatprep.subr.bf16.mxu0 0
        %2680 = vmatpush2.bf16.msra.mxu0 0
        %2681 = vmatprep.subr.bf16.mxu0 0
        %2682 = vmatpush2.bf16.msra.mxu0 0
        %2683 = vmatprep.subr.bf16.mxu0 0
        %2684 = vmatpush2.bf16.msra.mxu0 0
        %2685 = vmatprep.subr.bf16.mxu0 0
        %2686 = vmatpush2.bf16.msra.mxu0 0
        %2687 = vmatprep.subr.bf16.mxu0 0
        %2688 = vmatpush2.bf16.msra.mxu0 0
        %2689 = vmatprep.subr.bf16.mxu0 0
        %2690 = vmatpush2.bf16.msra.mxu0 0
        %2691 = vmatprep.mubr.bf16.mxu0 0
        %2692 = vmatmul.mubr.bf16.gmra.mxu0 %v2654
        %v2693 = vpop.f32.mrf.mxu0
        %v2694 = vadd.f32 0.0, %v2693
        %v2695 = vpop.f32.mrf.mxu0
        %v2696 = vpop.f32.mrf.mxu0
        %v2697 = vpop.f32.mrf.mxu0
        %2698 = vdwg.mxu0
        %2699 = vrot.lane.b32.xlu0 %v1862, 88
        %v2700 = vpop.permute.xlu0 %2699
        %v2702 = vsel %vm466, %v2554, 0
        %v2705 = vsel %vm717, %v2700, 0
        %2707 = vmatprep.subr.bf16.mxu0 0
        %2708 = vmatpush1.bf16.msra.mxu0 0
        %2709 = vmatprep.subr.bf16.mxu0 0
        %2710 = vmatpush1.bf16.msra.mxu0 0
        %2711 = vmatprep.subr.bf16.mxu0 0
        %2712 = vmatpush1.bf16.msra.mxu0 0
        %2713 = vmatprep.subr.bf16.mxu0 0
        %2714 = vmatpush1.bf16.msra.mxu0 0
        %2715 = vmatprep.subr.bf16.mxu0 0
        %2716 = vmatpush1.bf16.msra.mxu0 0
        %2717 = vmatprep.subr.bf16.mxu0 0
        %2718 = vmatpush1.bf16.msra.mxu0 0
        %2719 = vmatprep.subr.bf16.mxu0 0
        %2720 = vmatpush1.bf16.msra.mxu0 0
        %2721 = vmatprep.subr.bf16.mxu0 0
        %2722 = vmatpush1.bf16.msra.mxu0 %v2705
        %2723 = vmatprep.subr.bf16.mxu0 0
        %2724 = vmatpush2.bf16.msra.mxu0 0
        %2725 = vmatprep.subr.bf16.mxu0 0
        %2726 = vmatpush2.bf16.msra.mxu0 0
        %2727 = vmatprep.subr.bf16.mxu0 0
        %2728 = vmatpush2.bf16.msra.mxu0 0
        %2729 = vmatprep.subr.bf16.mxu0 0
        %2730 = vmatpush2.bf16.msra.mxu0 0
        %2731 = vmatprep.subr.bf16.mxu0 0
        %2732 = vmatpush2.bf16.msra.mxu0 0
        %2733 = vmatprep.subr.bf16.mxu0 0
        %2734 = vmatpush2.bf16.msra.mxu0 0
        %2735 = vmatprep.subr.bf16.mxu0 0
        %2736 = vmatpush2.bf16.msra.mxu0 0
        %2737 = vmatprep.subr.bf16.mxu0 0
        %2738 = vmatpush2.bf16.msra.mxu0 0
        %2739 = vmatprep.mubr.bf16.mxu0 0
        %2740 = vmatmul.mubr.bf16.gmra.mxu0 %v2702
        %v2741 = vpop.f32.mrf.mxu0
        %v2742 = vadd.f32 0.0, %v2741
        %v2743 = vpop.f32.mrf.mxu0
        %v2744 = vpop.f32.mrf.mxu0
        %v2745 = vpop.f32.mrf.mxu0
        %2746 = vdwg.mxu0
        %2751 = vrot.lane.b32.xlu0 %v2598, 8
        %v2752 = vpop.permute.xlu0 %2751
        %2753 = vrot.lane.b32.xlu0 %v2646, 8
        %v2754 = vpop.permute.xlu0 %2753
        %2755 = vrot.lane.b32.xlu0 %v2694, 8
        %v2756 = vpop.permute.xlu0 %2755
        %2757 = vrot.lane.b32.xlu0 %v2742, 8
        %v2758 = vpop.permute.xlu0 %2757
        %v2763 = vsel %vm466, %v2154, %v2752
        %v2764 = vsel %vm466, %v2202, %v2754
        %v2765 = vsel %vm466, %v2250, %v2756
        %v2766 = vsel %vm466, %v2298, %v2758
        %v2767 = vpack.c.bf16 %v2764, %v2763
        %v2768 = vpack.c.bf16 %v2766, %v2765
        %s2769 = scalar_lea.vmem [#allocation2], 8
        %v2770 = vld [vmem:[%s2769] sm:$0xf]
        %v2771 = vld [vmem:[%s2769 + $0x4] sm:$0xf]
        %v2772 = vlaneseq
        %v2773 = vshrl.u32 %v2772, 7
        %v2774 = vsub.s32 2, %v2773
        %v2775 = vrot.slane %v1716, %v2774
        %v2778 = vunpack.c.l.b16 %v2770
        %v2779 = vunpack.c.l.b16 %v2771
        %v2780 = vpack.c.b16 %v2779, %v2778
        %v2783 = vsel %vm1383, %v2767, 0
        %v2786 = vsel %vm1383, %v2768, 0
        %2788 = vmatprep.subr.bf16.mxu0 0
        %2789 = vmatpush1.bf16.msra.mxu0 0
        %2790 = vmatprep.subr.bf16.mxu0 0
        %2791 = vmatpush1.bf16.msra.mxu0 0
        %2792 = vmatprep.subr.bf16.mxu0 0
        %2793 = vmatpush1.bf16.msra.mxu0 0
        %2794 = vmatprep.subr.bf16.mxu0 0
        %2795 = vmatpush1.bf16.msra.mxu0 0
        %2796 = vmatprep.subr.bf16.mxu0 0
        %2797 = vmatpush1.bf16.msra.mxu0 0
        %2798 = vmatprep.subr.bf16.mxu0 0
        %2799 = vmatpush1.bf16.msra.mxu0 0
        %2800 = vmatprep.subr.bf16.mxu0 0
        %2801 = vmatpush1.bf16.msra.mxu0 0
        %2802 = vmatprep.subr.bf16.mxu0 0
        %2803 = vmatpush1.bf16.msra.mxu0 %v2780
        %2804 = vmatprep.subr.bf16.mxu0 0
        %2805 = vmatpush2.bf16.msra.mxu0 0
        %2806 = vmatprep.subr.bf16.mxu0 0
        %2807 = vmatpush2.bf16.msra.mxu0 0
        %2808 = vmatprep.subr.bf16.mxu0 0
        %2809 = vmatpush2.bf16.msra.mxu0 0
        %2810 = vmatprep.subr.bf16.mxu0 0
        %2811 = vmatpush2.bf16.msra.mxu0 0
        %2812 = vmatprep.subr.bf16.mxu0 0
        %2813 = vmatpush2.bf16.msra.mxu0 0
        %2814 = vmatprep.subr.bf16.mxu0 0
        %2815 = vmatpush2.bf16.msra.mxu0 0
        %2816 = vmatprep.subr.bf16.mxu0 0
        %2817 = vmatpush2.bf16.msra.mxu0 0
        %2818 = vmatprep.subr.bf16.mxu0 0
        %2819 = vmatpush2.bf16.msra.mxu0 0
        %2820 = vmatprep.mubr.bf16.mxu0 0
        %2821 = vmatmul.mubr.bf16.gmra.mxu0 %v2783
        %v2822 = vpop.f32.mrf.mxu0
        %v2823 = vadd.f32 %v2775, %v2822
        %v2824 = vpop.f32.mrf.mxu0
        %v2825 = vpop.f32.mrf.mxu0
        %v2826 = vadd.f32 %v2775, %v2825
        %v2827 = vpop.f32.mrf.mxu0
        %2828 = vmatprep.mubr.bf16.mxu0 0
        %2829 = vmatmul.mubr.bf16.gmra.mxu0 %v2786
        %v2830 = vpop.f32.mrf.mxu0
        %v2831 = vadd.f32 %v2775, %v2830
        %v2832 = vpop.f32.mrf.mxu0
        %v2833 = vpop.f32.mrf.mxu0
        %v2834 = vadd.f32 %v2775, %v2833
        %v2835 = vpop.f32.mrf.mxu0
        %2836 = vdwg.mxu0
        %v2837 = vadd.f32 %v1711, %v2823
        %v2838 = vadd.f32 %v1712, %v2826
        %v2839 = vadd.f32 %v1713, %v2831
        %v2840 = vadd.f32 %v1714, %v2834
        %v2841 = vsel %vm316, %v2837, 0.0
        %2842 = vadd.xlane.f32.xlu0 %v2841
        %v2843 = vpop.xlane.xlu0 %2842
        %v2844 = vsel %vm316, %v2838, 0.0
        %2845 = vadd.xlane.f32.xlu0 %v2844
        %v2846 = vpop.xlane.xlu0 %2845
        %v2847 = vsel %vm316, %v2839, 0.0
        %2848 = vadd.xlane.f32.xlu0 %v2847
        %v2849 = vpop.xlane.xlu0 %2848
        %v2850 = vsel %vm316, %v2840, 0.0
        %2851 = vadd.xlane.f32.xlu0 %v2850
        %v2852 = vpop.xlane.xlu0 %2851
        %v2853 = vmul.f32 %v2843, %v329
        %v2854 = vmul.f32 %v2846, %v329
        %v2855 = vmul.f32 %v2849, %v329
        %v2856 = vmul.f32 %v2852, %v329
        %v2857 = vsub.f32 %v2837, %v2853
        %v2858 = vsub.f32 %v2838, %v2854
        %v2859 = vsub.f32 %v2839, %v2855
        %v2860 = vsub.f32 %v2840, %v2856
        %v2861 = vmul.f32 %v2857, %v2857
        %v2862 = vmul.f32 %v2858, %v2858
        %v2863 = vmul.f32 %v2859, %v2859
        %v2864 = vmul.f32 %v2860, %v2860
        %v2865 = vsel %vm316, %v2861, 0.0
        %2866 = vadd.xlane.f32.xlu0 %v2865
        %v2867 = vpop.xlane.xlu0 %2866
        %v2868 = vsel %vm316, %v2862, 0.0
        %2869 = vadd.xlane.f32.xlu0 %v2868
        %v2870 = vpop.xlane.xlu0 %2869
        %v2871 = vsel %vm316, %v2863, 0.0
        %2872 = vadd.xlane.f32.xlu0 %v2871
        %v2873 = vpop.xlane.xlu0 %2872
        %v2874 = vsel %vm316, %v2864, 0.0
        %2875 = vadd.xlane.f32.xlu0 %v2874
        %v2876 = vpop.xlane.xlu0 %2875
        %v2877 = vmul.f32 %v2867, %v329
        %v2878 = vmul.f32 %v2870, %v329
        %v2879 = vmul.f32 %v2873, %v329
        %v2880 = vmul.f32 %v2876, %v329
        %v2881 = vadd.f32 %v2877, 1e-05
        %v2882 = vadd.f32 %v2878, 1e-05
        %v2883 = vadd.f32 %v2879, 1e-05
        %v2884 = vadd.f32 %v2880, 1e-05
        %v2885 = vrsqrt.pop %v2881
        %v2886 = vrsqrt.pop %v2882
        %v2887 = vrsqrt.pop %v2883
        %v2888 = vrsqrt.pop %v2884
        %v2889 = vmul.f32 %v2857, %v2885
        %v2890 = vmul.f32 %v2858, %v2886
        %v2891 = vmul.f32 %v2859, %v2887
        %v2892 = vmul.f32 %v2860, %v2888
        %v2893 = vlaneseq
        %v2894 = vshrl.u32 %v2893, 7
        %v2895 = vsub.s32 3, %v2894
        %v2896 = vrot.slane %v1716, %v2895
        %v2897 = vmul.f32 %v2889, %v2896
        %v2898 = vmul.f32 %v2890, %v2896
        %v2899 = vmul.f32 %v2891, %v2896
        %v2900 = vmul.f32 %v2892, %v2896
        %v2901 = vlaneseq
        %v2902 = vshrl.u32 %v2901, 7
        %v2903 = vsub.s32 4, %v2902
        %v2904 = vrot.slane %v1716, %v2903
        %v2905 = vadd.f32 %v2897, %v2904
        %v2906 = vadd.f32 %v2898, %v2904
        %v2907 = vadd.f32 %v2899, %v2904
        %v2908 = vadd.f32 %v2900, %v2904
        %v2909 = vpack.c.bf16 %v2906, %v2905
        %v2910 = vpack.c.bf16 %v2908, %v2907
        %s2911 = scalar_lea.vmem [#allocation5], 16
        %v2912 = vld [vmem:[%s2911] sm:$0xf]
        %v2913 = vld [vmem:[%s2911 + $0x4] sm:$0xf]
        %v2914 = vld [vmem:[%s2911 + $0x8] sm:$0xf]
        %v2915 = vld [vmem:[%s2911 + $0xc] sm:$0xf]
        %v2916 = vld [vmem:[%s2 + $0x1] sm:$0x1]
        %v2917 = vlaneseq
        %v2918 = vshrl.u32 %v2917, 7
        %v2919 = vsub.s32 0, %v2918
        %v2920 = vrot.slane %v2916, %v2919
        %v2925 = vunpack.c.l.b16 %v2912
        %v2926 = vunpack.c.l.b16 %v2913
        %v2927 = vunpack.c.l.b16 %v2914
        %v2928 = vunpack.c.l.b16 %v2915
        %v2929 = vpack.c.b16 %v2926, %v2925
        %v2930 = vpack.c.b16 %v2928, %v2927
        %v2934 = vsel %vm316, %v2909, 0
        %v2937 = vsel %vm316, %v2910, 0
        %2939 = vmatprep.subr.bf16.mxu0 0
        %2940 = vmatpush1.bf16.msra.mxu0 0
        %2941 = vmatprep.subr.bf16.mxu0 0
        %2942 = vmatpush1.bf16.msra.mxu0 0
        %2943 = vmatprep.subr.bf16.mxu0 0
        %2944 = vmatpush1.bf16.msra.mxu0 0
        %2945 = vmatprep.subr.bf16.mxu0 0
        %2946 = vmatpush1.bf16.msra.mxu0 0
        %2947 = vmatprep.subr.bf16.mxu0 0
        %2948 = vmatpush1.bf16.msra.mxu0 0
        %2949 = vmatprep.subr.bf16.mxu0 0
        %2950 = vmatpush1.bf16.msra.mxu0 0
        %2951 = vmatprep.subr.bf16.mxu0 0
        %2952 = vmatpush1.bf16.msra.mxu0 %v2930
        %2953 = vmatprep.subr.bf16.mxu0 0
        %2954 = vmatpush1.bf16.msra.mxu0 %v2929
        %2955 = vmatprep.subr.bf16.mxu0 0
        %2956 = vmatpush2.bf16.msra.mxu0 0
        %2957 = vmatprep.subr.bf16.mxu0 0
        %2958 = vmatpush2.bf16.msra.mxu0 0
        %2959 = vmatprep.subr.bf16.mxu0 0
        %2960 = vmatpush2.bf16.msra.mxu0 0
        %2961 = vmatprep.subr.bf16.mxu0 0
        %2962 = vmatpush2.bf16.msra.mxu0 0
        %2963 = vmatprep.subr.bf16.mxu0 0
        %2964 = vmatpush2.bf16.msra.mxu0 0
        %2965 = vmatprep.subr.bf16.mxu0 0
        %2966 = vmatpush2.bf16.msra.mxu0 0
        %2967 = vmatprep.subr.bf16.mxu0 0
        %2968 = vmatpush2.bf16.msra.mxu0 0
        %2969 = vmatprep.subr.bf16.mxu0 0
        %2970 = vmatpush2.bf16.msra.mxu0 0
        %2971 = vmatprep.mubr.bf16.mxu0 0
        %2972 = vmatmul.mubr.bf16.gmra.mxu0 %v2934
        %v2973 = vpop.f32.mrf.mxu0
        %v2974 = vadd.f32 %v2920, %v2973
        %v2975 = vpop.f32.mrf.mxu0
        %v2976 = vpop.f32.mrf.mxu0
        %v2977 = vadd.f32 %v2920, %v2976
        %v2978 = vpop.f32.mrf.mxu0
        %2979 = vmatprep.mubr.bf16.mxu0 0
        %2980 = vmatmul.mubr.bf16.gmra.mxu0 %v2937
        %v2981 = vpop.f32.mrf.mxu0
        %v2982 = vadd.f32 %v2920, %v2981
        %v2983 = vpop.f32.mrf.mxu0
        %v2984 = vpop.f32.mrf.mxu0
        %v2985 = vadd.f32 %v2920, %v2984
        %v2986 = vpop.f32.mrf.mxu0
        %2987 = vdwg.mxu0
        %v2988 = vxor.u32 %v2974, 2147483648
        %v2989 = vxor.u32 %v2977, 2147483648
        %v2990 = vxor.u32 %v2982, 2147483648
        %v2991 = vxor.u32 %v2985, 2147483648
        %v2992 = vmul.f32 %v2988, 1.442695
        %v2993 = vpow.pop %v2992
        %v2994 = vmul.f32 %v2989, 1.442695
        %v2995 = vpow.pop %v2994
        %v2996 = vmul.f32 %v2990, 1.442695
        %v2997 = vpow.pop %v2996
        %v2998 = vmul.f32 %v2991, 1.442695
        %v2999 = vpow.pop %v2998
        %v3000 = vadd.f32 %v2993, 1.0
        %v3001 = vadd.f32 %v2995, 1.0
        %v3002 = vadd.f32 %v2997, 1.0
        %v3003 = vadd.f32 %v2999, 1.0
        %v3004 = vrcp.pop %v3000
        %v3005 = vmul.f32 1.0, %v3004
        %v3006 = vrcp.pop %v3001
        %v3007 = vmul.f32 1.0, %v3006
        %v3008 = vrcp.pop %v3002
        %v3009 = vmul.f32 1.0, %v3008
        %v3010 = vrcp.pop %v3003
        %v3011 = vmul.f32 1.0, %v3010
        %v3012 = vmul.f32 %v2974, %v3005
        %v3013 = vmul.f32 %v2977, %v3007
        %v3014 = vmul.f32 %v2982, %v3009
        %v3015 = vmul.f32 %v2985, %v3011
        %v3016 = vpack.c.bf16 %v3013, %v3012
        %v3017 = vpack.c.bf16 %v3015, %v3014
        %s3018 = scalar_lea.vmem %s6, 32
        %v3019 = vld [vmem:[%s3018] sm:$0xf]
        %v3020 = vld [vmem:[%s3018 + $0x4] sm:$0xf]
        %v3021 = vld [vmem:[%s3018 + $0x8] sm:$0xf]
        %v3022 = vld [vmem:[%s3018 + $0xc] sm:$0xf]
        %v3023 = vld [vmem:[%s3018 + $0x10] sm:$0xf]
        %v3024 = vld [vmem:[%s3018 + $0x14] sm:$0xf]
        %v3025 = vld [vmem:[%s3018 + $0x18] sm:$0xf]
        %v3026 = vld [vmem:[%s3018 + $0x1c] sm:$0xf]
        %v3027 = vlaneseq
        %v3028 = vshrl.u32 %v3027, 7
        %v3029 = vsub.s32 5, %v3028
        %v3030 = vrot.slane %v1716, %v3029
        %v3039 = vunpack.c.l.b16 %v3019
        %v3040 = vunpack.c.l.b16 %v3020
        %v3041 = vunpack.c.l.b16 %v3021
        %v3042 = vunpack.c.l.b16 %v3022
        %v3043 = vunpack.c.l.b16 %v3023
        %v3044 = vunpack.c.l.b16 %v3024
        %v3045 = vunpack.c.l.b16 %v3025
        %v3046 = vunpack.c.l.b16 %v3026
        %v3047 = vpack.c.b16 %v3040, %v3039
        %v3048 = vpack.c.b16 %v3042, %v3041
        %v3049 = vpack.c.b16 %v3044, %v3043
        %v3050 = vpack.c.b16 %v3046, %v3045
        %v3056 = vsel %vm1655, %v3016, 0
        %v3059 = vsel %vm1655, %v3017, 0
        %3061 = vmatprep.subr.bf16.mxu0 0
        %3062 = vmatpush1.bf16.msra.mxu0 0
        %3063 = vmatprep.subr.bf16.mxu0 0
        %3064 = vmatpush1.bf16.msra.mxu0 0
        %3065 = vmatprep.subr.bf16.mxu0 0
        %3066 = vmatpush1.bf16.msra.mxu0 0
        %3067 = vmatprep.subr.bf16.mxu0 0
        %3068 = vmatpush1.bf16.msra.mxu0 0
        %3069 = vmatprep.subr.bf16.mxu0 0
        %3070 = vmatpush1.bf16.msra.mxu0 %v3050
        %3071 = vmatprep.subr.bf16.mxu0 0
        %3072 = vmatpush1.bf16.msra.mxu0 %v3049
        %3073 = vmatprep.subr.bf16.mxu0 0
        %3074 = vmatpush1.bf16.msra.mxu0 %v3048
        %3075 = vmatprep.subr.bf16.mxu0 0
        %3076 = vmatpush1.bf16.msra.mxu0 %v3047
        %3077 = vmatprep.subr.bf16.mxu0 0
        %3078 = vmatpush2.bf16.msra.mxu0 0
        %3079 = vmatprep.subr.bf16.mxu0 0
        %3080 = vmatpush2.bf16.msra.mxu0 0
        %3081 = vmatprep.subr.bf16.mxu0 0
        %3082 = vmatpush2.bf16.msra.mxu0 0
        %3083 = vmatprep.subr.bf16.mxu0 0
        %3084 = vmatpush2.bf16.msra.mxu0 0
        %3085 = vmatprep.subr.bf16.mxu0 0
        %3086 = vmatpush2.bf16.msra.mxu0 0
        %3087 = vmatprep.subr.bf16.mxu0 0
        %3088 = vmatpush2.bf16.msra.mxu0 0
        %3089 = vmatprep.subr.bf16.mxu0 0
        %3090 = vmatpush2.bf16.msra.mxu0 0
        %3091 = vmatprep.subr.bf16.mxu0 0
        %3092 = vmatpush2.bf16.msra.mxu0 0
        %3093 = vmatprep.mubr.bf16.mxu0 0
        %3094 = vmatmul.mubr.bf16.gmra.mxu0 %v3056
        %v3095 = vpop.f32.mrf.mxu0
        %v3096 = vadd.f32 %v3030, %v3095
        %v3097 = vpop.f32.mrf.mxu0
        %v3098 = vpop.f32.mrf.mxu0
        %v3099 = vadd.f32 %v3030, %v3098
        %v3100 = vpop.f32.mrf.mxu0
        %3101 = vmatprep.mubr.bf16.mxu0 0
        %3102 = vmatmul.mubr.bf16.gmra.mxu0 %v3059
        %v3103 = vpop.f32.mrf.mxu0
        %v3104 = vadd.f32 %v3030, %v3103
        %v3105 = vpop.f32.mrf.mxu0
        %v3106 = vpop.f32.mrf.mxu0
        %v3107 = vadd.f32 %v3030, %v3106
        %v3108 = vpop.f32.mrf.mxu0
        %3109 = vdwg.mxu0
        %v3110 = vadd.f32 %v2837, %v3096
        %v3111 = vadd.f32 %v2838, %v3099
        %v3112 = vadd.f32 %v2839, %v3104
        %v3113 = vadd.f32 %v2840, %v3107
        %3114 = vst.msk [vmem:[%s302] sm:$0xff] %vm316, %v3110
        %3115 = vst.msk [vmem:[%s302 + $0x8] sm:$0xff] %vm316, %v3111
        %3116 = vst.msk [vmem:[%s302 + $0x10] sm:$0xff] %vm316, %v3112
        %3117 = vst.msk [vmem:[%s302 + $0x18] sm:$0xff] %vm316, %v3113
        %s3118 = sand.u32 %s183, 1
        %s3119 = scalar_lea.sflag [#allocation4], %s3118
        %s3120 = sand.u32 %s183, 1
        %s3121 = smul.addr %s3120, 32
        %s3122 = scalar_lea.vmem [#allocation7], %s3121
        // Predicated region
        $region57: #{tpu_custom_call.1} parent=47 // pred_check
          %p3123 = pneg %p193
        $region58: #{tpu_custom_call.1} parent=47 // pred_check_branch
          %3125 = sbr.rel (%p3123) target = $region60
        $region59: #{tpu_custom_call.1} parent=47 // pred_region
          %s3126 = smul.u32 4, %s23
          %s3128 = ssub.s32 512, 512
          %3129 = vsyncadd %s3119, %s3128
          %s3130 = smul.addr %s3126, 128
          %s3131 = scalar_lea.hbm %s7, %s3130
          %s3132 = sshll.u32 %s3122, 4
          %s3133 = int_to_ptr.vmem [resolvable:$true] %s3132
          %3138 = dma.vmem_to_hbm [thread:$0]  %s3133, 512, %s3131, %s3119, 128, 128, 8
        $region60: #{tpu_custom_call.1} parent=47 // pred_fallthru
          _
      $region48: #{tpu_custom_call.1} parent=5 // pred_fallthru
        _
      %p3139 = scmp.le.s32.totalorder 2, %s18
      // Predicated region
      $region61: #{tpu_custom_call.1} parent=5 // pred_check
        %p3140 = pneg %p3139
      $region62: #{tpu_custom_call.1} parent=5 // pred_check_branch
        %3142 = sbr.rel (%p3140) target = $region64
      $region63: #{tpu_custom_call.1} parent=5 // pred_region
        %s3143 = ssub.s32 %s18, 2
        // Predicated region
        $region65: #{tpu_custom_call.1} parent=63 // pred_check
          %p3144 = pneg %p199
        $region66: #{tpu_custom_call.1} parent=63 // pred_check_branch
          %3146 = sbr.rel (%p3144) target = $region68
        $region67: #{tpu_custom_call.1} parent=63 // pred_region
          %s3147 = sand.u32 %s184, 1
          %s3148 = scalar_lea.sflag [#allocation4], %s3147
          %s3149 = sand.u32 %s184, 1
          %s3150 = smul.addr %s3149, 32
          %s3151 = scalar_lea.vmem [#allocation7], %s3150
          %3152 = dma.done %s3148, 512
        $region68: #{tpu_custom_call.1} parent=63 // pred_fallthru
          _
      $region64: #{tpu_custom_call.1} parent=5 // pred_fallthru
        _
    $region6: #{tpu_custom_call.1} parent=1 // loop_footer
      %s22 = sadd.s32 1, %s18
    $region7: #{tpu_custom_call.1} parent=1 // loop_footer_branch
      %17 = sbr.rel target = $region3
    $region8: #{tpu_custom_call.1} parent=1 // loop_exit
      _
    %3153 = vsyncpa [#allocation3], 1
    %s3154 = scalar_lea.sflag [#allocation3], 1
    %3155 = vsyncpa %s3154, 1
    %3156 = vsyncpa [#allocation6], 1
    %3157 = vsyncpa [#allocation4], 1
    %s3158 = scalar_lea.sflag [#allocation4], 1
    %3159 = vsyncpa %s3158, 1

</llo_original>
